<compile_context>
chip_gen: v6e
topology: v6e:2x2x1
jax: 0.10.0
libtpu: 0.0.40
codegen_flags: <defaults>
</compile_context>

<pallas_src>
import functools

import numpy as np
import jax
import jax.numpy as jnp
from jax.experimental import pallas as pl
from jax.experimental.pallas import tpu as pltpu

EPS = 1e-5  # nn.InstanceNorm3d default (affine=False, no running stats)


def _instance_norm(h):
    # one-pass per-channel (row) normalization over the spatial (lane) axis
    mean = jnp.mean(h, axis=-1, keepdims=True)
    mean_sq = jnp.mean(h * h, axis=-1, keepdims=True)
    var = jnp.maximum(mean_sq - mean * mean, 0.0)   # biased var, like PyTorch
    return (h - mean) * jax.lax.rsqrt(var + EPS)


def _idblock_kernel(x_ref, w1_ref, w2_ref, w3_ref, bits_ref, out_ref,
                    *, offsets, always_valid):
    S = x_ref.shape[-1]
    chid = w1_ref.shape[0]
    x = x_ref[0]                                           # (Cin, S) f32

    # ---- conv1 (1x1x1, bias cancelled by IN) + InstanceNorm + ReLU ----------
    h = jnp.dot(w1_ref[...], x, preferred_element_type=jnp.float32)
    h = jnp.maximum(_instance_norm(h), 0.0)                # (Chid, S)

    # ---- conv2 (KxKxK, 'same'): single fused MXU matmul over all taps, then
    #      roll / mask / accumulate the per-tap (Chid, S) output slabs. -------
    big = jnp.dot(w2_ref[...], h, preferred_element_type=jnp.float32)  # (K3*Chid, S)
    bits = bits_ref[...]                                   # (n_words, 1, S) uint32

    acc = None
    for t, off in enumerate(offsets):
        slab = big[t * chid:(t + 1) * chid, :]
        rolled = slab if off == 0 else pltpu.roll(slab, shift=(-off) % S, axis=1)
        if not always_valid[t]:
            valid = (jnp.bitwise_and(bits[t // 32],
                                     jnp.uint32(1 << (t % 32))) != 0)
            rolled = rolled * valid.astype(jnp.float32)    # (1,S) mask broadcast
        acc = rolled if acc is None else acc + rolled
    h2 = jnp.maximum(_instance_norm(acc), 0.0)             # (Chid, S)

    # ---- conv3 (1x1x1) + InstanceNorm + residual + ReLU ---------------------
    y = jnp.dot(w3_ref[...], h2, preferred_element_type=jnp.float32)
    y = _instance_norm(y)                                  # (Cin, S)
    out_ref[0] = jnp.maximum(y + x, 0.0).astype(out_ref.dtype)


def idblock_pallas(x_ncdhw, params, kernel_size):
    N, Cin, D, H, W = x_ncdhw.shape
    S = D * H * W
    K = kernel_size
    K3 = K ** 3
    w1, _b1, w2, _b2, w3, _b3 = params   # biases are mathematically dead (affine-less IN)
    Chid = w1.shape[0]

    x_flat = x_ncdhw.reshape(N, Cin, S).astype(jnp.float32)
    # (Cout, Cin, kD, kH, kW) -> (K3*Cout, Cin); row t*Chid + o = w2[o, :, kd, kh, kw]
    w2_flat = (jnp.transpose(w2, (2, 3, 4, 0, 1))
               .reshape(K3 * Chid, Chid).astype(jnp.float32))

    # per-tap lane offsets + bit-packed 'same'-padding validity masks (host numpy)
    p = (K - 1) // 2
    r = np.arange(S)
    d = r // (H * W)
    hh = (r // W) % H
    ww = r % W
    n_words = (K3 + 31) // 32
    bits64 = np.zeros((n_words, S), np.uint64)
    offsets, always_valid = [], []
    t = 0
    for kd in range(K):
        for kh in range(K):
            for kw in range(K):
                dd, dh, dw = kd - p, kh - p, kw - p
                offsets.append(dd * H * W + dh * W + dw)
                valid = ((d + dd >= 0) & (d + dd < D) &
                         (hh + dh >= 0) & (hh + dh < H) &
                         (ww + dw >= 0) & (ww + dw < W))
                always_valid.append(bool(valid.all()))
                bits64[t // 32] |= valid.astype(np.uint64) << np.uint64(t % 32)
                t += 1
    tap_bits = jnp.asarray(
        (bits64 & np.uint64(0xFFFFFFFF)).astype(np.uint32).reshape(n_words, 1, S))

    kernel = functools.partial(_idblock_kernel,
                               offsets=tuple(offsets),
                               always_valid=tuple(always_valid))

    out_flat = pl.pallas_call(
        kernel,
        out_shape=jax.ShapeDtypeStruct((N, Cin, S), jnp.float32),
        grid=(N,),
        in_specs=[
            pl.BlockSpec((1, Cin, S), lambda n: (n, 0, 0)),         # x
            pl.BlockSpec((Chid, Cin), lambda n: (0, 0)),            # w1
            pl.BlockSpec((K3 * Chid, Chid), lambda n: (0, 0)),      # w2 (fused taps)
            pl.BlockSpec((Cin, Chid), lambda n: (0, 0)),            # w3
            pl.BlockSpec((n_words, 1, S), lambda n: (0, 0, 0)),     # tap bitmasks
        ],
        out_specs=pl.BlockSpec((1, Cin, S), lambda n: (n, 0, 0)),
        compiler_params=pltpu.CompilerParams(
            dimension_semantics=("parallel",)),
    )(x_flat, w1.astype(jnp.float32), w2_flat, w3.astype(jnp.float32), tap_bits)

    return out_flat.reshape(N, Cin, D, H, W)


def idblock_ref(x, params, K):
    """Pure-numpy reference matching the PyTorch IdBlock forward (with biases)."""
    w1, b1, w2, b2, w3, b3 = [np.asarray(p, np.float32) for p in params]
    x = np.asarray(x, np.float32)
    N, Cin, D, H, W = x.shape

    def inorm(v):
        m = v.mean(axis=(2, 3, 4), keepdims=True)
        var = v.var(axis=(2, 3, 4), keepdims=True)
        return (v - m) / np.sqrt(var + EPS)

    def conv1x1(v, w, b):
        return np.einsum('ncdhw,oc->nodhw', v, w) + b[None, :, None, None, None]

    def conv_same(v, w, b):
        p = (K - 1) // 2
        Co = w.shape[0]
        vp = np.pad(v, ((0, 0), (0, 0),
                        (p, K - 1 - p), (p, K - 1 - p), (p, K - 1 - p)))
        out = np.zeros((N, Co, D, H, W), np.float32)
        for kd in range(K):
            for kh in range(K):
                for kw in range(K):
                    out += np.einsum('ncdhw,oc->nodhw',
                                     vp[:, :, kd:kd + D, kh:kh + H, kw:kw + W],
                                     w[:, :, kd, kh, kw])
        return out + b[None, :, None, None, None]

    h = np.maximum(inorm(conv1x1(x, w1, b1)), 0.0)
    h = np.maximum(inorm(conv_same(h, w2, b2)), 0.0)
    y = inorm(conv1x1(h, w3, b3))
    return np.maximum(y + x, 0.0)


if __name__ == "__main__":
    N, Cin, Chid, K = 2, 8, 16, 3
    D = H = W = 8

    key = jax.random.PRNGKey(0)
    ks = jax.random.split(key, 7)

    def uinit(k, shape, fan_in):
        bound = 1.0 / np.sqrt(fan_in)
        return jax.random.uniform(k, shape, jnp.float32, -bound, bound)

    # deterministic synthetic parameters (Conv3d shapes from __init__; bias=True)
    w1 = uinit(ks[0], (Chid, Cin), Cin)                  # conv1: 1x1x1 kernel
    b1 = uinit(ks[1], (Chid,), Cin)
    w2 = uinit(ks[2], (Chid, Chid, K, K, K), Chid * K ** 3)
    b2 = uinit(ks[3], (Chid,), Chid * K ** 3)
    w3 = uinit(ks[4], (Cin, Chid), Chid)                 # conv3: 1x1x1 kernel
    b3 = uinit(ks[5], (Cin,), Chid)
    x = jax.random.normal(ks[6], (N, Cin, D, H, W), jnp.float32)

    params = (w1, b1, w2, b2, w3, b3)

    out = idblock_pallas(x, params, K)
    out = jax.block_until_ready(out)

    ref = idblock_ref(np.asarray(x), [np.asarray(p) for p in params], K)
    np.testing.assert_allclose(np.asarray(out), ref, atol=5e-2, rtol=5e-2)

    print("KERNEL_OK")
</pallas_src>

<mosaic_0001>
module attributes {stable_mosaic.version = 11 : i64} {
  func.func @_idblock_kernel(%arg0: i32, %arg1: memref<1x8x512xf32, #tpu.memory_space<vmem>>, %arg2: memref<16x8xf32, #tpu.memory_space<vmem>>, %arg3: memref<432x16xf32, #tpu.memory_space<vmem>>, %arg4: memref<8x16xf32, #tpu.memory_space<vmem>>, %arg5: memref<1x1x512xi32, #tpu.memory_space<vmem>>, %arg6: memref<1x8x512xf32, #tpu.memory_space<vmem>>) attributes {dimension_semantics = [#tpu.dimension_semantics<parallel>], iteration_bounds = array<i64: 2>, scalar_prefetch = 0 : i64, scratch_operands = 0 : i64, tpu.core_type = #tpu.core_type<tc>, window_params = [{transform_indices = @transform_0, window_bounds = array<i64: 1, 8, 512>}, {pipeline_mode = #tpu.pipeline_mode<synchronous>, transform_indices = @transform_1, window_bounds = array<i64: 16, 8>}, {pipeline_mode = #tpu.pipeline_mode<synchronous>, transform_indices = @transform_2, window_bounds = array<i64: 432, 16>}, {pipeline_mode = #tpu.pipeline_mode<synchronous>, transform_indices = @transform_3, window_bounds = array<i64: 8, 16>}, {pipeline_mode = #tpu.pipeline_mode<synchronous>, transform_indices = @transform_4, window_bounds = array<i64: 1, 1, 512>}, {transform_indices = @transform_5, window_bounds = array<i64: 1, 8, 512>}]} {
    %c0 = arith.constant 0 : index
    %c0_0 = arith.constant 0 : index
    %c0_1 = arith.constant 0 : index
    %0 = vector.load %arg1[%c0, %c0_0, %c0_1] : memref<1x8x512xf32, #tpu.memory_space<vmem>>, vector<1x8x512xf32>
    %1 = vector.shape_cast %0 : vector<1x8x512xf32> to vector<8x512xf32>
    %c0_2 = arith.constant 0 : index
    %c0_3 = arith.constant 0 : index
    %2 = vector.load %arg2[%c0_2, %c0_3] : memref<16x8xf32, #tpu.memory_space<vmem>>, vector<16x8xf32>
    %cst = arith.constant dense<0.000000e+00> : vector<16x512xf32>
    %3 = tpu.matmul %2, %1, %cst {dimension_numbers = #tpu.dot_dimension_numbers<[1], [0], [0], [1], [0, 0, 1, 1], [], []>} : vector<16x8xf32>, vector<8x512xf32>, vector<16x512xf32> -> vector<16x512xf32>
    %cst_4 = arith.constant dense<0.000000e+00> : vector<16xf32>
    %4 = vector.multi_reduction <add>, %3, %cst_4 [1] : vector<16x512xf32> to vector<16xf32>
    %5 = vector.shape_cast %4 : vector<16xf32> to vector<16x1xf32>
    %cst_5 = arith.constant 5.120000e+02 : f32
    %6 = vector.broadcast %cst_5 : f32 to vector<16x1xf32>
    %7 = arith.divf %5, %6 : vector<16x1xf32>
    %8 = arith.mulf %3, %3 : vector<16x512xf32>
    %cst_6 = arith.constant dense<0.000000e+00> : vector<16xf32>
    %9 = vector.multi_reduction <add>, %8, %cst_6 [1] : vector<16x512xf32> to vector<16xf32>
    %10 = vector.shape_cast %9 : vector<16xf32> to vector<16x1xf32>
    %cst_7 = arith.constant 5.120000e+02 : f32
    %11 = vector.broadcast %cst_7 : f32 to vector<16x1xf32>
    %12 = arith.divf %10, %11 : vector<16x1xf32>
    %13 = arith.mulf %7, %7 : vector<16x1xf32>
    %14 = arith.subf %12, %13 : vector<16x1xf32>
    %cst_8 = arith.constant 0.000000e+00 : f32
    %15 = vector.broadcast %cst_8 : f32 to vector<16x1xf32>
    %16 = arith.maximumf %14, %15 : vector<16x1xf32>
    %17 = vector.broadcast %7 : vector<16x1xf32> to vector<16x512xf32>
    %18 = arith.subf %3, %17 : vector<16x512xf32>
    %cst_9 = arith.constant 9.99999974E-6 : f32
    %19 = vector.broadcast %cst_9 : f32 to vector<16x1xf32>
    %20 = arith.addf %16, %19 : vector<16x1xf32>
    %21 = math.rsqrt %20 : vector<16x1xf32>
    %22 = vector.broadcast %21 : vector<16x1xf32> to vector<16x512xf32>
    %23 = arith.mulf %18, %22 : vector<16x512xf32>
    %cst_10 = arith.constant 0.000000e+00 : f32
    %24 = vector.broadcast %cst_10 : f32 to vector<16x512xf32>
    %25 = arith.maximumf %23, %24 : vector<16x512xf32>
    %c0_11 = arith.constant 0 : index
    %c0_12 = arith.constant 0 : index
    %26 = vector.load %arg3[%c0_11, %c0_12] : memref<432x16xf32, #tpu.memory_space<vmem>>, vector<432x16xf32>
    %cst_13 = arith.constant dense<0.000000e+00> : vector<432x512xf32>
    %27 = tpu.matmul %26, %25, %cst_13 {dimension_numbers = #tpu.dot_dimension_numbers<[1], [0], [0], [1], [0, 0, 1, 1], [], []>} : vector<432x16xf32>, vector<16x512xf32>, vector<432x512xf32> -> vector<432x512xf32>
    %c0_14 = arith.constant 0 : index
    %c0_15 = arith.constant 0 : index
    %c0_16 = arith.constant 0 : index
    %28 = vector.load %arg5[%c0_14, %c0_15, %c0_16] : memref<1x1x512xi32, #tpu.memory_space<vmem>>, vector<1x1x512xi32>
    %29 = vector.extract_strided_slice %27 {offsets = [0, 0], sizes = [16, 512], strides = [1, 1]} : vector<432x512xf32> to vector<16x512xf32>
    %c73_i32 = arith.constant 73 : i32
    %30 = tpu.dynamic_rotate %29 by %c73_i32 dim 1 : vector<16x512xf32>, i32 -> vector<16x512xf32>
    %31 = vector.shape_cast %28 : vector<1x1x512xi32> to vector<1x512xi32>
    %c1_i32 = arith.constant 1 : i32
    %32 = vector.broadcast %c1_i32 : i32 to vector<1x512xi32>
    %33 = arith.andi %31, %32 : vector<1x512xi32>
    %c0_i32 = arith.constant 0 : i32
    %34 = vector.broadcast %c0_i32 : i32 to vector<1x512xi32>
    %35 = arith.cmpi ne, %33, %34 : vector<1x512xi32>
    %36 = arith.extui %35 : vector<1x512xi1> to vector<1x512xi32>
    %37 = arith.sitofp %36 : vector<1x512xi32> to vector<1x512xf32>
    %38 = vector.broadcast %37 : vector<1x512xf32> to vector<16x512xf32>
    %39 = arith.mulf %30, %38 : vector<16x512xf32>
    %40 = vector.extract_strided_slice %27 {offsets = [16, 0], sizes = [16, 512], strides = [1, 1]} : vector<432x512xf32> to vector<16x512xf32>
    %c72_i32 = arith.constant 72 : i32
    %41 = tpu.dynamic_rotate %40 by %c72_i32 dim 1 : vector<16x512xf32>, i32 -> vector<16x512xf32>
    %42 = vector.shape_cast %28 : vector<1x1x512xi32> to vector<1x512xi32>
    %c2_i32 = arith.constant 2 : i32
    %43 = vector.broadcast %c2_i32 : i32 to vector<1x512xi32>
    %44 = arith.andi %42, %43 : vector<1x512xi32>
    %c0_i32_17 = arith.constant 0 : i32
    %45 = vector.broadcast %c0_i32_17 : i32 to vector<1x512xi32>
    %46 = arith.cmpi ne, %44, %45 : vector<1x512xi32>
    %47 = arith.extui %46 : vector<1x512xi1> to vector<1x512xi32>
    %48 = arith.sitofp %47 : vector<1x512xi32> to vector<1x512xf32>
    %49 = vector.broadcast %48 : vector<1x512xf32> to vector<16x512xf32>
    %50 = arith.mulf %41, %49 : vector<16x512xf32>
    %51 = arith.addf %39, %50 : vector<16x512xf32>
    %52 = vector.extract_strided_slice %27 {offsets = [32, 0], sizes = [16, 512], strides = [1, 1]} : vector<432x512xf32> to vector<16x512xf32>
    %c71_i32 = arith.constant 71 : i32
    %53 = tpu.dynamic_rotate %52 by %c71_i32 dim 1 : vector<16x512xf32>, i32 -> vector<16x512xf32>
    %54 = vector.shape_cast %28 : vector<1x1x512xi32> to vector<1x512xi32>
    %c4_i32 = arith.constant 4 : i32
    %55 = vector.broadcast %c4_i32 : i32 to vector<1x512xi32>
    %56 = arith.andi %54, %55 : vector<1x512xi32>
    %c0_i32_18 = arith.constant 0 : i32
    %57 = vector.broadcast %c0_i32_18 : i32 to vector<1x512xi32>
    %58 = arith.cmpi ne, %56, %57 : vector<1x512xi32>
    %59 = arith.extui %58 : vector<1x512xi1> to vector<1x512xi32>
    %60 = arith.sitofp %59 : vector<1x512xi32> to vector<1x512xf32>
    %61 = vector.broadcast %60 : vector<1x512xf32> to vector<16x512xf32>
    %62 = arith.mulf %53, %61 : vector<16x512xf32>
    %63 = arith.addf %51, %62 : vector<16x512xf32>
    %64 = vector.extract_strided_slice %27 {offsets = [48, 0], sizes = [16, 512], strides = [1, 1]} : vector<432x512xf32> to vector<16x512xf32>
    %c65_i32 = arith.constant 65 : i32
    %65 = tpu.dynamic_rotate %64 by %c65_i32 dim 1 : vector<16x512xf32>, i32 -> vector<16x512xf32>
    %66 = vector.shape_cast %28 : vector<1x1x512xi32> to vector<1x512xi32>
    %c8_i32 = arith.constant 8 : i32
    %67 = vector.broadcast %c8_i32 : i32 to vector<1x512xi32>
    %68 = arith.andi %66, %67 : vector<1x512xi32>
    %c0_i32_19 = arith.constant 0 : i32
    %69 = vector.broadcast %c0_i32_19 : i32 to vector<1x512xi32>
    %70 = arith.cmpi ne, %68, %69 : vector<1x512xi32>
    %71 = arith.extui %70 : vector<1x512xi1> to vector<1x512xi32>
    %72 = arith.sitofp %71 : vector<1x512xi32> to vector<1x512xf32>
    %73 = vector.broadcast %72 : vector<1x512xf32> to vector<16x512xf32>
    %74 = arith.mulf %65, %73 : vector<16x512xf32>
    %75 = arith.addf %63, %74 : vector<16x512xf32>
    %76 = vector.extract_strided_slice %27 {offsets = [64, 0], sizes = [16, 512], strides = [1, 1]} : vector<432x512xf32> to vector<16x512xf32>
    %c64_i32 = arith.constant 64 : i32
    %77 = tpu.dynamic_rotate %76 by %c64_i32 dim 1 : vector<16x512xf32>, i32 -> vector<16x512xf32>
    %78 = vector.shape_cast %28 : vector<1x1x512xi32> to vector<1x512xi32>
    %c16_i32 = arith.constant 16 : i32
    %79 = vector.broadcast %c16_i32 : i32 to vector<1x512xi32>
    %80 = arith.andi %78, %79 : vector<1x512xi32>
    %c0_i32_20 = arith.constant 0 : i32
    %81 = vector.broadcast %c0_i32_20 : i32 to vector<1x512xi32>
    %82 = arith.cmpi ne, %80, %81 : vector<1x512xi32>
    %83 = arith.extui %82 : vector<1x512xi1> to vector<1x512xi32>
    %84 = arith.sitofp %83 : vector<1x512xi32> to vector<1x512xf32>
    %85 = vector.broadcast %84 : vector<1x512xf32> to vector<16x512xf32>
    %86 = arith.mulf %77, %85 : vector<16x512xf32>
    %87 = arith.addf %75, %86 : vector<16x512xf32>
    %88 = vector.extract_strided_slice %27 {offsets = [80, 0], sizes = [16, 512], strides = [1, 1]} : vector<432x512xf32> to vector<16x512xf32>
    %c63_i32 = arith.constant 63 : i32
    %89 = tpu.dynamic_rotate %88 by %c63_i32 dim 1 : vector<16x512xf32>, i32 -> vector<16x512xf32>
    %90 = vector.shape_cast %28 : vector<1x1x512xi32> to vector<1x512xi32>
    %c32_i32 = arith.constant 32 : i32
    %91 = vector.broadcast %c32_i32 : i32 to vector<1x512xi32>
    %92 = arith.andi %90, %91 : vector<1x512xi32>
    %c0_i32_21 = arith.constant 0 : i32
    %93 = vector.broadcast %c0_i32_21 : i32 to vector<1x512xi32>
    %94 = arith.cmpi ne, %92, %93 : vector<1x512xi32>
    %95 = arith.extui %94 : vector<1x512xi1> to vector<1x512xi32>
    %96 = arith.sitofp %95 : vector<1x512xi32> to vector<1x512xf32>
    %97 = vector.broadcast %96 : vector<1x512xf32> to vector<16x512xf32>
    %98 = arith.mulf %89, %97 : vector<16x512xf32>
    %99 = arith.addf %87, %98 : vector<16x512xf32>
    %100 = vector.extract_strided_slice %27 {offsets = [96, 0], sizes = [16, 512], strides = [1, 1]} : vector<432x512xf32> to vector<16x512xf32>
    %c57_i32 = arith.constant 57 : i32
    %101 = tpu.dynamic_rotate %100 by %c57_i32 dim 1 : vector<16x512xf32>, i32 -> vector<16x512xf32>
    %102 = vector.shape_cast %28 : vector<1x1x512xi32> to vector<1x512xi32>
    %c64_i32_22 = arith.constant 64 : i32
    %103 = vector.broadcast %c64_i32_22 : i32 to vector<1x512xi32>
    %104 = arith.andi %102, %103 : vector<1x512xi32>
    %c0_i32_23 = arith.constant 0 : i32
    %105 = vector.broadcast %c0_i32_23 : i32 to vector<1x512xi32>
    %106 = arith.cmpi ne, %104, %105 : vector<1x512xi32>
    %107 = arith.extui %106 : vector<1x512xi1> to vector<1x512xi32>
    %108 = arith.sitofp %107 : vector<1x512xi32> to vector<1x512xf32>
    %109 = vector.broadcast %108 : vector<1x512xf32> to vector<16x512xf32>
    %110 = arith.mulf %101, %109 : vector<16x512xf32>
    %111 = arith.addf %99, %110 : vector<16x512xf32>
    %112 = vector.extract_strided_slice %27 {offsets = [112, 0], sizes = [16, 512], strides = [1, 1]} : vector<432x512xf32> to vector<16x512xf32>
    %c56_i32 = arith.constant 56 : i32
    %113 = tpu.dynamic_rotate %112 by %c56_i32 dim 1 : vector<16x512xf32>, i32 -> vector<16x512xf32>
    %114 = vector.shape_cast %28 : vector<1x1x512xi32> to vector<1x512xi32>
    %c128_i32 = arith.constant 128 : i32
    %115 = vector.broadcast %c128_i32 : i32 to vector<1x512xi32>
    %116 = arith.andi %114, %115 : vector<1x512xi32>
    %c0_i32_24 = arith.constant 0 : i32
    %117 = vector.broadcast %c0_i32_24 : i32 to vector<1x512xi32>
    %118 = arith.cmpi ne, %116, %117 : vector<1x512xi32>
    %119 = arith.extui %118 : vector<1x512xi1> to vector<1x512xi32>
    %120 = arith.sitofp %119 : vector<1x512xi32> to vector<1x512xf32>
    %121 = vector.broadcast %120 : vector<1x512xf32> to vector<16x512xf32>
    %122 = arith.mulf %113, %121 : vector<16x512xf32>
    %123 = arith.addf %111, %122 : vector<16x512xf32>
    %124 = vector.extract_strided_slice %27 {offsets = [128, 0], sizes = [16, 512], strides = [1, 1]} : vector<432x512xf32> to vector<16x512xf32>
    %c55_i32 = arith.constant 55 : i32
    %125 = tpu.dynamic_rotate %124 by %c55_i32 dim 1 : vector<16x512xf32>, i32 -> vector<16x512xf32>
    %126 = vector.shape_cast %28 : vector<1x1x512xi32> to vector<1x512xi32>
    %c256_i32 = arith.constant 256 : i32
    %127 = vector.broadcast %c256_i32 : i32 to vector<1x512xi32>
    %128 = arith.andi %126, %127 : vector<1x512xi32>
    %c0_i32_25 = arith.constant 0 : i32
    %129 = vector.broadcast %c0_i32_25 : i32 to vector<1x512xi32>
    %130 = arith.cmpi ne, %128, %129 : vector<1x512xi32>
    %131 = arith.extui %130 : vector<1x512xi1> to vector<1x512xi32>
    %132 = arith.sitofp %131 : vector<1x512xi32> to vector<1x512xf32>
    %133 = vector.broadcast %132 : vector<1x512xf32> to vector<16x512xf32>
    %134 = arith.mulf %125, %133 : vector<16x512xf32>
    %135 = arith.addf %123, %134 : vector<16x512xf32>
    %136 = vector.extract_strided_slice %27 {offsets = [144, 0], sizes = [16, 512], strides = [1, 1]} : vector<432x512xf32> to vector<16x512xf32>
    %c9_i32 = arith.constant 9 : i32
    %137 = tpu.dynamic_rotate %136 by %c9_i32 dim 1 : vector<16x512xf32>, i32 -> vector<16x512xf32>
    %138 = vector.shape_cast %28 : vector<1x1x512xi32> to vector<1x512xi32>
    %c512_i32 = arith.constant 512 : i32
    %139 = vector.broadcast %c512_i32 : i32 to vector<1x512xi32>
    %140 = arith.andi %138, %139 : vector<1x512xi32>
    %c0_i32_26 = arith.constant 0 : i32
    %141 = vector.broadcast %c0_i32_26 : i32 to vector<1x512xi32>
    %142 = arith.cmpi ne, %140, %141 : vector<1x512xi32>
    %143 = arith.extui %142 : vector<1x512xi1> to vector<1x512xi32>
    %144 = arith.sitofp %143 : vector<1x512xi32> to vector<1x512xf32>
    %145 = vector.broadcast %144 : vector<1x512xf32> to vector<16x512xf32>
    %146 = arith.mulf %137, %145 : vector<16x512xf32>
    %147 = arith.addf %135, %146 : vector<16x512xf32>
    %148 = vector.extract_strided_slice %27 {offsets = [160, 0], sizes = [16, 512], strides = [1, 1]} : vector<432x512xf32> to vector<16x512xf32>
    %c8_i32_27 = arith.constant 8 : i32
    %149 = tpu.dynamic_rotate %148 by %c8_i32_27 dim 1 : vector<16x512xf32>, i32 -> vector<16x512xf32>
    %150 = vector.shape_cast %28 : vector<1x1x512xi32> to vector<1x512xi32>
    %c1024_i32 = arith.constant 1024 : i32
    %151 = vector.broadcast %c1024_i32 : i32 to vector<1x512xi32>
    %152 = arith.andi %150, %151 : vector<1x512xi32>
    %c0_i32_28 = arith.constant 0 : i32
    %153 = vector.broadcast %c0_i32_28 : i32 to vector<1x512xi32>
    %154 = arith.cmpi ne, %152, %153 : vector<1x512xi32>
    %155 = arith.extui %154 : vector<1x512xi1> to vector<1x512xi32>
    %156 = arith.sitofp %155 : vector<1x512xi32> to vector<1x512xf32>
    %157 = vector.broadcast %156 : vector<1x512xf32> to vector<16x512xf32>
    %158 = arith.mulf %149, %157 : vector<16x512xf32>
    %159 = arith.addf %147, %158 : vector<16x512xf32>
    %160 = vector.extract_strided_slice %27 {offsets = [176, 0], sizes = [16, 512], strides = [1, 1]} : vector<432x512xf32> to vector<16x512xf32>
    %c7_i32 = arith.constant 7 : i32
    %161 = tpu.dynamic_rotate %160 by %c7_i32 dim 1 : vector<16x512xf32>, i32 -> vector<16x512xf32>
    %162 = vector.shape_cast %28 : vector<1x1x512xi32> to vector<1x512xi32>
    %c2048_i32 = arith.constant 2048 : i32
    %163 = vector.broadcast %c2048_i32 : i32 to vector<1x512xi32>
    %164 = arith.andi %162, %163 : vector<1x512xi32>
    %c0_i32_29 = arith.constant 0 : i32
    %165 = vector.broadcast %c0_i32_29 : i32 to vector<1x512xi32>
    %166 = arith.cmpi ne, %164, %165 : vector<1x512xi32>
    %167 = arith.extui %166 : vector<1x512xi1> to vector<1x512xi32>
    %168 = arith.sitofp %167 : vector<1x512xi32> to vector<1x512xf32>
    %169 = vector.broadcast %168 : vector<1x512xf32> to vector<16x512xf32>
    %170 = arith.mulf %161, %169 : vector<16x512xf32>
    %171 = arith.addf %159, %170 : vector<16x512xf32>
    %172 = vector.extract_strided_slice %27 {offsets = [192, 0], sizes = [16, 512], strides = [1, 1]} : vector<432x512xf32> to vector<16x512xf32>
    %c1_i32_30 = arith.constant 1 : i32
    %173 = tpu.dynamic_rotate %172 by %c1_i32_30 dim 1 : vector<16x512xf32>, i32 -> vector<16x512xf32>
    %174 = vector.shape_cast %28 : vector<1x1x512xi32> to vector<1x512xi32>
    %c4096_i32 = arith.constant 4096 : i32
    %175 = vector.broadcast %c4096_i32 : i32 to vector<1x512xi32>
    %176 = arith.andi %174, %175 : vector<1x512xi32>
    %c0_i32_31 = arith.constant 0 : i32
    %177 = vector.broadcast %c0_i32_31 : i32 to vector<1x512xi32>
    %178 = arith.cmpi ne, %176, %177 : vector<1x512xi32>
    %179 = arith.extui %178 : vector<1x512xi1> to vector<1x512xi32>
    %180 = arith.sitofp %179 : vector<1x512xi32> to vector<1x512xf32>
    %181 = vector.broadcast %180 : vector<1x512xf32> to vector<16x512xf32>
    %182 = arith.mulf %173, %181 : vector<16x512xf32>
    %183 = arith.addf %171, %182 : vector<16x512xf32>
    %184 = vector.extract_strided_slice %27 {offsets = [208, 0], sizes = [16, 512], strides = [1, 1]} : vector<432x512xf32> to vector<16x512xf32>
    %185 = arith.addf %183, %184 : vector<16x512xf32>
    %186 = vector.extract_strided_slice %27 {offsets = [224, 0], sizes = [16, 512], strides = [1, 1]} : vector<432x512xf32> to vector<16x512xf32>
    %c511_i32 = arith.constant 511 : i32
    %187 = tpu.dynamic_rotate %186 by %c511_i32 dim 1 : vector<16x512xf32>, i32 -> vector<16x512xf32>
    %188 = vector.shape_cast %28 : vector<1x1x512xi32> to vector<1x512xi32>
    %c16384_i32 = arith.constant 16384 : i32
    %189 = vector.broadcast %c16384_i32 : i32 to vector<1x512xi32>
    %190 = arith.andi %188, %189 : vector<1x512xi32>
    %c0_i32_32 = arith.constant 0 : i32
    %191 = vector.broadcast %c0_i32_32 : i32 to vector<1x512xi32>
    %192 = arith.cmpi ne, %190, %191 : vector<1x512xi32>
    %193 = arith.extui %192 : vector<1x512xi1> to vector<1x512xi32>
    %194 = arith.sitofp %193 : vector<1x512xi32> to vector<1x512xf32>
    %195 = vector.broadcast %194 : vector<1x512xf32> to vector<16x512xf32>
    %196 = arith.mulf %187, %195 : vector<16x512xf32>
    %197 = arith.addf %185, %196 : vector<16x512xf32>
    %198 = vector.extract_strided_slice %27 {offsets = [240, 0], sizes = [16, 512], strides = [1, 1]} : vector<432x512xf32> to vector<16x512xf32>
    %c505_i32 = arith.constant 505 : i32
    %199 = tpu.dynamic_rotate %198 by %c505_i32 dim 1 : vector<16x512xf32>, i32 -> vector<16x512xf32>
    %200 = vector.shape_cast %28 : vector<1x1x512xi32> to vector<1x512xi32>
    %c32768_i32 = arith.constant 32768 : i32
    %201 = vector.broadcast %c32768_i32 : i32 to vector<1x512xi32>
    %202 = arith.andi %200, %201 : vector<1x512xi32>
    %c0_i32_33 = arith.constant 0 : i32
    %203 = vector.broadcast %c0_i32_33 : i32 to vector<1x512xi32>
    %204 = arith.cmpi ne, %202, %203 : vector<1x512xi32>
    %205 = arith.extui %204 : vector<1x512xi1> to vector<1x512xi32>
    %206 = arith.sitofp %205 : vector<1x512xi32> to vector<1x512xf32>
    %207 = vector.broadcast %206 : vector<1x512xf32> to vector<16x512xf32>
    %208 = arith.mulf %199, %207 : vector<16x512xf32>
    %209 = arith.addf %197, %208 : vector<16x512xf32>
    %210 = vector.extract_strided_slice %27 {offsets = [256, 0], sizes = [16, 512], strides = [1, 1]} : vector<432x512xf32> to vector<16x512xf32>
    %c504_i32 = arith.constant 504 : i32
    %211 = tpu.dynamic_rotate %210 by %c504_i32 dim 1 : vector<16x512xf32>, i32 -> vector<16x512xf32>
    %212 = vector.shape_cast %28 : vector<1x1x512xi32> to vector<1x512xi32>
    %c65536_i32 = arith.constant 65536 : i32
    %213 = vector.broadcast %c65536_i32 : i32 to vector<1x512xi32>
    %214 = arith.andi %212, %213 : vector<1x512xi32>
    %c0_i32_34 = arith.constant 0 : i32
    %215 = vector.broadcast %c0_i32_34 : i32 to vector<1x512xi32>
    %216 = arith.cmpi ne, %214, %215 : vector<1x512xi32>
    %217 = arith.extui %216 : vector<1x512xi1> to vector<1x512xi32>
    %218 = arith.sitofp %217 : vector<1x512xi32> to vector<1x512xf32>
    %219 = vector.broadcast %218 : vector<1x512xf32> to vector<16x512xf32>
    %220 = arith.mulf %211, %219 : vector<16x512xf32>
    %221 = arith.addf %209, %220 : vector<16x512xf32>
    %222 = vector.extract_strided_slice %27 {offsets = [272, 0], sizes = [16, 512], strides = [1, 1]} : vector<432x512xf32> to vector<16x512xf32>
    %c503_i32 = arith.constant 503 : i32
    %223 = tpu.dynamic_rotate %222 by %c503_i32 dim 1 : vector<16x512xf32>, i32 -> vector<16x512xf32>
    %224 = vector.shape_cast %28 : vector<1x1x512xi32> to vector<1x512xi32>
    %c131072_i32 = arith.constant 131072 : i32
    %225 = vector.broadcast %c131072_i32 : i32 to vector<1x512xi32>
    %226 = arith.andi %224, %225 : vector<1x512xi32>
    %c0_i32_35 = arith.constant 0 : i32
    %227 = vector.broadcast %c0_i32_35 : i32 to vector<1x512xi32>
    %228 = arith.cmpi ne, %226, %227 : vector<1x512xi32>
    %229 = arith.extui %228 : vector<1x512xi1> to vector<1x512xi32>
    %230 = arith.sitofp %229 : vector<1x512xi32> to vector<1x512xf32>
    %231 = vector.broadcast %230 : vector<1x512xf32> to vector<16x512xf32>
    %232 = arith.mulf %223, %231 : vector<16x512xf32>
    %233 = arith.addf %221, %232 : vector<16x512xf32>
    %234 = vector.extract_strided_slice %27 {offsets = [288, 0], sizes = [16, 512], strides = [1, 1]} : vector<432x512xf32> to vector<16x512xf32>
    %c457_i32 = arith.constant 457 : i32
    %235 = tpu.dynamic_rotate %234 by %c457_i32 dim 1 : vector<16x512xf32>, i32 -> vector<16x512xf32>
    %236 = vector.shape_cast %28 : vector<1x1x512xi32> to vector<1x512xi32>
    %c262144_i32 = arith.constant 262144 : i32
    %237 = vector.broadcast %c262144_i32 : i32 to vector<1x512xi32>
    %238 = arith.andi %236, %237 : vector<1x512xi32>
    %c0_i32_36 = arith.constant 0 : i32
    %239 = vector.broadcast %c0_i32_36 : i32 to vector<1x512xi32>
    %240 = arith.cmpi ne, %238, %239 : vector<1x512xi32>
    %241 = arith.extui %240 : vector<1x512xi1> to vector<1x512xi32>
    %242 = arith.sitofp %241 : vector<1x512xi32> to vector<1x512xf32>
    %243 = vector.broadcast %242 : vector<1x512xf32> to vector<16x512xf32>
    %244 = arith.mulf %235, %243 : vector<16x512xf32>
    %245 = arith.addf %233, %244 : vector<16x512xf32>
    %246 = vector.extract_strided_slice %27 {offsets = [304, 0], sizes = [16, 512], strides = [1, 1]} : vector<432x512xf32> to vector<16x512xf32>
    %c456_i32 = arith.constant 456 : i32
    %247 = tpu.dynamic_rotate %246 by %c456_i32 dim 1 : vector<16x512xf32>, i32 -> vector<16x512xf32>
    %248 = vector.shape_cast %28 : vector<1x1x512xi32> to vector<1x512xi32>
    %c524288_i32 = arith.constant 524288 : i32
    %249 = vector.broadcast %c524288_i32 : i32 to vector<1x512xi32>
    %250 = arith.andi %248, %249 : vector<1x512xi32>
    %c0_i32_37 = arith.constant 0 : i32
    %251 = vector.broadcast %c0_i32_37 : i32 to vector<1x512xi32>
    %252 = arith.cmpi ne, %250, %251 : vector<1x512xi32>
    %253 = arith.extui %252 : vector<1x512xi1> to vector<1x512xi32>
    %254 = arith.sitofp %253 : vector<1x512xi32> to vector<1x512xf32>
    %255 = vector.broadcast %254 : vector<1x512xf32> to vector<16x512xf32>
    %256 = arith.mulf %247, %255 : vector<16x512xf32>
    %257 = arith.addf %245, %256 : vector<16x512xf32>
    %258 = vector.extract_strided_slice %27 {offsets = [320, 0], sizes = [16, 512], strides = [1, 1]} : vector<432x512xf32> to vector<16x512xf32>
    %c455_i32 = arith.constant 455 : i32
    %259 = tpu.dynamic_rotate %258 by %c455_i32 dim 1 : vector<16x512xf32>, i32 -> vector<16x512xf32>
    %260 = vector.shape_cast %28 : vector<1x1x512xi32> to vector<1x512xi32>
    %c1048576_i32 = arith.constant 1048576 : i32
    %261 = vector.broadcast %c1048576_i32 : i32 to vector<1x512xi32>
    %262 = arith.andi %260, %261 : vector<1x512xi32>
    %c0_i32_38 = arith.constant 0 : i32
    %263 = vector.broadcast %c0_i32_38 : i32 to vector<1x512xi32>
    %264 = arith.cmpi ne, %262, %263 : vector<1x512xi32>
    %265 = arith.extui %264 : vector<1x512xi1> to vector<1x512xi32>
    %266 = arith.sitofp %265 : vector<1x512xi32> to vector<1x512xf32>
    %267 = vector.broadcast %266 : vector<1x512xf32> to vector<16x512xf32>
    %268 = arith.mulf %259, %267 : vector<16x512xf32>
    %269 = arith.addf %257, %268 : vector<16x512xf32>
    %270 = vector.extract_strided_slice %27 {offsets = [336, 0], sizes = [16, 512], strides = [1, 1]} : vector<432x512xf32> to vector<16x512xf32>
    %c449_i32 = arith.constant 449 : i32
    %271 = tpu.dynamic_rotate %270 by %c449_i32 dim 1 : vector<16x512xf32>, i32 -> vector<16x512xf32>
    %272 = vector.shape_cast %28 : vector<1x1x512xi32> to vector<1x512xi32>
    %c2097152_i32 = arith.constant 2097152 : i32
    %273 = vector.broadcast %c2097152_i32 : i32 to vector<1x512xi32>
    %274 = arith.andi %272, %273 : vector<1x512xi32>
    %c0_i32_39 = arith.constant 0 : i32
    %275 = vector.broadcast %c0_i32_39 : i32 to vector<1x512xi32>
    %276 = arith.cmpi ne, %274, %275 : vector<1x512xi32>
    %277 = arith.extui %276 : vector<1x512xi1> to vector<1x512xi32>
    %278 = arith.sitofp %277 : vector<1x512xi32> to vector<1x512xf32>
    %279 = vector.broadcast %278 : vector<1x512xf32> to vector<16x512xf32>
    %280 = arith.mulf %271, %279 : vector<16x512xf32>
    %281 = arith.addf %269, %280 : vector<16x512xf32>
    %282 = vector.extract_strided_slice %27 {offsets = [352, 0], sizes = [16, 512], strides = [1, 1]} : vector<432x512xf32> to vector<16x512xf32>
    %c448_i32 = arith.constant 448 : i32
    %283 = tpu.dynamic_rotate %282 by %c448_i32 dim 1 : vector<16x512xf32>, i32 -> vector<16x512xf32>
    %284 = vector.shape_cast %28 : vector<1x1x512xi32> to vector<1x512xi32>
    %c4194304_i32 = arith.constant 4194304 : i32
    %285 = vector.broadcast %c4194304_i32 : i32 to vector<1x512xi32>
    %286 = arith.andi %284, %285 : vector<1x512xi32>
    %c0_i32_40 = arith.constant 0 : i32
    %287 = vector.broadcast %c0_i32_40 : i32 to vector<1x512xi32>
    %288 = arith.cmpi ne, %286, %287 : vector<1x512xi32>
    %289 = arith.extui %288 : vector<1x512xi1> to vector<1x512xi32>
    %290 = arith.sitofp %289 : vector<1x512xi32> to vector<1x512xf32>
    %291 = vector.broadcast %290 : vector<1x512xf32> to vector<16x512xf32>
    %292 = arith.mulf %283, %291 : vector<16x512xf32>
    %293 = arith.addf %281, %292 : vector<16x512xf32>
    %294 = vector.extract_strided_slice %27 {offsets = [368, 0], sizes = [16, 512], strides = [1, 1]} : vector<432x512xf32> to vector<16x512xf32>
    %c447_i32 = arith.constant 447 : i32
    %295 = tpu.dynamic_rotate %294 by %c447_i32 dim 1 : vector<16x512xf32>, i32 -> vector<16x512xf32>
    %296 = vector.shape_cast %28 : vector<1x1x512xi32> to vector<1x512xi32>
    %c8388608_i32 = arith.constant 8388608 : i32
    %297 = vector.broadcast %c8388608_i32 : i32 to vector<1x512xi32>
    %298 = arith.andi %296, %297 : vector<1x512xi32>
    %c0_i32_41 = arith.constant 0 : i32
    %299 = vector.broadcast %c0_i32_41 : i32 to vector<1x512xi32>
    %300 = arith.cmpi ne, %298, %299 : vector<1x512xi32>
    %301 = arith.extui %300 : vector<1x512xi1> to vector<1x512xi32>
    %302 = arith.sitofp %301 : vector<1x512xi32> to vector<1x512xf32>
    %303 = vector.broadcast %302 : vector<1x512xf32> to vector<16x512xf32>
    %304 = arith.mulf %295, %303 : vector<16x512xf32>
    %305 = arith.addf %293, %304 : vector<16x512xf32>
    %306 = vector.extract_strided_slice %27 {offsets = [384, 0], sizes = [16, 512], strides = [1, 1]} : vector<432x512xf32> to vector<16x512xf32>
    %c441_i32 = arith.constant 441 : i32
    %307 = tpu.dynamic_rotate %306 by %c441_i32 dim 1 : vector<16x512xf32>, i32 -> vector<16x512xf32>
    %308 = vector.shape_cast %28 : vector<1x1x512xi32> to vector<1x512xi32>
    %c16777216_i32 = arith.constant 16777216 : i32
    %309 = vector.broadcast %c16777216_i32 : i32 to vector<1x512xi32>
    %310 = arith.andi %308, %309 : vector<1x512xi32>
    %c0_i32_42 = arith.constant 0 : i32
    %311 = vector.broadcast %c0_i32_42 : i32 to vector<1x512xi32>
    %312 = arith.cmpi ne, %310, %311 : vector<1x512xi32>
    %313 = arith.extui %312 : vector<1x512xi1> to vector<1x512xi32>
    %314 = arith.sitofp %313 : vector<1x512xi32> to vector<1x512xf32>
    %315 = vector.broadcast %314 : vector<1x512xf32> to vector<16x512xf32>
    %316 = arith.mulf %307, %315 : vector<16x512xf32>
    %317 = arith.addf %305, %316 : vector<16x512xf32>
    %318 = vector.extract_strided_slice %27 {offsets = [400, 0], sizes = [16, 512], strides = [1, 1]} : vector<432x512xf32> to vector<16x512xf32>
    %c440_i32 = arith.constant 440 : i32
    %319 = tpu.dynamic_rotate %318 by %c440_i32 dim 1 : vector<16x512xf32>, i32 -> vector<16x512xf32>
    %320 = vector.shape_cast %28 : vector<1x1x512xi32> to vector<1x512xi32>
    %c33554432_i32 = arith.constant 33554432 : i32
    %321 = vector.broadcast %c33554432_i32 : i32 to vector<1x512xi32>
    %322 = arith.andi %320, %321 : vector<1x512xi32>
    %c0_i32_43 = arith.constant 0 : i32
    %323 = vector.broadcast %c0_i32_43 : i32 to vector<1x512xi32>
    %324 = arith.cmpi ne, %322, %323 : vector<1x512xi32>
    %325 = arith.extui %324 : vector<1x512xi1> to vector<1x512xi32>
    %326 = arith.sitofp %325 : vector<1x512xi32> to vector<1x512xf32>
    %327 = vector.broadcast %326 : vector<1x512xf32> to vector<16x512xf32>
    %328 = arith.mulf %319, %327 : vector<16x512xf32>
    %329 = arith.addf %317, %328 : vector<16x512xf32>
    %330 = vector.extract_strided_slice %27 {offsets = [416, 0], sizes = [16, 512], strides = [1, 1]} : vector<432x512xf32> to vector<16x512xf32>
    %c439_i32 = arith.constant 439 : i32
    %331 = tpu.dynamic_rotate %330 by %c439_i32 dim 1 : vector<16x512xf32>, i32 -> vector<16x512xf32>
    %332 = vector.shape_cast %28 : vector<1x1x512xi32> to vector<1x512xi32>
    %c67108864_i32 = arith.constant 67108864 : i32
    %333 = vector.broadcast %c67108864_i32 : i32 to vector<1x512xi32>
    %334 = arith.andi %332, %333 : vector<1x512xi32>
    %c0_i32_44 = arith.constant 0 : i32
    %335 = vector.broadcast %c0_i32_44 : i32 to vector<1x512xi32>
    %336 = arith.cmpi ne, %334, %335 : vector<1x512xi32>
    %337 = arith.extui %336 : vector<1x512xi1> to vector<1x512xi32>
    %338 = arith.sitofp %337 : vector<1x512xi32> to vector<1x512xf32>
    %339 = vector.broadcast %338 : vector<1x512xf32> to vector<16x512xf32>
    %340 = arith.mulf %331, %339 : vector<16x512xf32>
    %341 = arith.addf %329, %340 : vector<16x512xf32>
    %cst_45 = arith.constant dense<0.000000e+00> : vector<16xf32>
    %342 = vector.multi_reduction <add>, %341, %cst_45 [1] : vector<16x512xf32> to vector<16xf32>
    %343 = vector.shape_cast %342 : vector<16xf32> to vector<16x1xf32>
    %cst_46 = arith.constant 5.120000e+02 : f32
    %344 = vector.broadcast %cst_46 : f32 to vector<16x1xf32>
    %345 = arith.divf %343, %344 : vector<16x1xf32>
    %346 = arith.mulf %341, %341 : vector<16x512xf32>
    %cst_47 = arith.constant dense<0.000000e+00> : vector<16xf32>
    %347 = vector.multi_reduction <add>, %346, %cst_47 [1] : vector<16x512xf32> to vector<16xf32>
    %348 = vector.shape_cast %347 : vector<16xf32> to vector<16x1xf32>
    %cst_48 = arith.constant 5.120000e+02 : f32
    %349 = vector.broadcast %cst_48 : f32 to vector<16x1xf32>
    %350 = arith.divf %348, %349 : vector<16x1xf32>
    %351 = arith.mulf %345, %345 : vector<16x1xf32>
    %352 = arith.subf %350, %351 : vector<16x1xf32>
    %cst_49 = arith.constant 0.000000e+00 : f32
    %353 = vector.broadcast %cst_49 : f32 to vector<16x1xf32>
    %354 = arith.maximumf %352, %353 : vector<16x1xf32>
    %355 = vector.broadcast %345 : vector<16x1xf32> to vector<16x512xf32>
    %356 = arith.subf %341, %355 : vector<16x512xf32>
    %cst_50 = arith.constant 9.99999974E-6 : f32
    %357 = vector.broadcast %cst_50 : f32 to vector<16x1xf32>
    %358 = arith.addf %354, %357 : vector<16x1xf32>
    %359 = math.rsqrt %358 : vector<16x1xf32>
    %360 = vector.broadcast %359 : vector<16x1xf32> to vector<16x512xf32>
    %361 = arith.mulf %356, %360 : vector<16x512xf32>
    %cst_51 = arith.constant 0.000000e+00 : f32
    %362 = vector.broadcast %cst_51 : f32 to vector<16x512xf32>
    %363 = arith.maximumf %361, %362 : vector<16x512xf32>
    %c0_52 = arith.constant 0 : index
    %c0_53 = arith.constant 0 : index
    %364 = vector.load %arg4[%c0_52, %c0_53] : memref<8x16xf32, #tpu.memory_space<vmem>>, vector<8x16xf32>
    %cst_54 = arith.constant dense<0.000000e+00> : vector<8x512xf32>
    %365 = tpu.matmul %364, %363, %cst_54 {dimension_numbers = #tpu.dot_dimension_numbers<[1], [0], [0], [1], [0, 0, 1, 1], [], []>} : vector<8x16xf32>, vector<16x512xf32>, vector<8x512xf32> -> vector<8x512xf32>
    %cst_55 = arith.constant dense<0.000000e+00> : vector<8xf32>
    %366 = vector.multi_reduction <add>, %365, %cst_55 [1] : vector<8x512xf32> to vector<8xf32>
    %367 = vector.shape_cast %366 : vector<8xf32> to vector<8x1xf32>
    %cst_56 = arith.constant 5.120000e+02 : f32
    %368 = vector.broadcast %cst_56 : f32 to vector<8x1xf32>
    %369 = arith.divf %367, %368 : vector<8x1xf32>
    %370 = arith.mulf %365, %365 : vector<8x512xf32>
    %cst_57 = arith.constant dense<0.000000e+00> : vector<8xf32>
    %371 = vector.multi_reduction <add>, %370, %cst_57 [1] : vector<8x512xf32> to vector<8xf32>
    %372 = vector.shape_cast %371 : vector<8xf32> to vector<8x1xf32>
    %cst_58 = arith.constant 5.120000e+02 : f32
    %373 = vector.broadcast %cst_58 : f32 to vector<8x1xf32>
    %374 = arith.divf %372, %373 : vector<8x1xf32>
    %375 = arith.mulf %369, %369 : vector<8x1xf32>
    %376 = arith.subf %374, %375 : vector<8x1xf32>
    %cst_59 = arith.constant 0.000000e+00 : f32
    %377 = vector.broadcast %cst_59 : f32 to vector<8x1xf32>
    %378 = arith.maximumf %376, %377 : vector<8x1xf32>
    %379 = vector.broadcast %369 : vector<8x1xf32> to vector<8x512xf32>
    %380 = arith.subf %365, %379 : vector<8x512xf32>
    %cst_60 = arith.constant 9.99999974E-6 : f32
    %381 = vector.broadcast %cst_60 : f32 to vector<8x1xf32>
    %382 = arith.addf %378, %381 : vector<8x1xf32>
    %383 = math.rsqrt %382 : vector<8x1xf32>
    %384 = vector.broadcast %383 : vector<8x1xf32> to vector<8x512xf32>
    %385 = arith.mulf %380, %384 : vector<8x512xf32>
    %386 = arith.addf %385, %1 : vector<8x512xf32>
    %cst_61 = arith.constant 0.000000e+00 : f32
    %387 = vector.broadcast %cst_61 : f32 to vector<8x512xf32>
    %388 = arith.maximumf %386, %387 : vector<8x512xf32>
    %c0_62 = arith.constant 0 : index
    %c0_63 = arith.constant 0 : index
    %c0_64 = arith.constant 0 : index
    %389 = vector.load %arg6[%c0_62, %c0_63, %c0_64] : memref<1x8x512xf32, #tpu.memory_space<vmem>>, vector<1x8x512xf32>
    %390 = vector.shape_cast %389 : vector<1x8x512xf32> to vector<8x512xf32>
    %391 = vector.shape_cast %388 : vector<8x512xf32> to vector<1x8x512xf32>
    tpu.vector_store %arg6[%c0_62, %c0_63, %c0_64], %391 {strides = array<i32>} : memref<1x8x512xf32, #tpu.memory_space<vmem>>, vector<1x8x512xf32>,
    return
  }
  func.func @transform_0(%arg0: i32) -> (i32, i32, i32) {
    %c0_i32 = arith.constant 0 : i32
    %c0_i32_0 = arith.constant 0 : i32
    %c0_i32_1 = arith.constant 0 : i32
    return %arg0, %c0_i32, %c0_i32_0 : i32, i32, i32
  }
  func.func @transform_1(%arg0: i32) -> (i32, i32) {
    %c0_i32 = arith.constant 0 : i32
    %c0_i32_0 = arith.constant 0 : i32
    %c0_i32_1 = arith.constant 0 : i32
    return %c0_i32, %c0_i32_0 : i32, i32
  }
  func.func @transform_2(%arg0: i32) -> (i32, i32) {
    %c0_i32 = arith.constant 0 : i32
    %c0_i32_0 = arith.constant 0 : i32
    %c0_i32_1 = arith.constant 0 : i32
    return %c0_i32, %c0_i32_0 : i32, i32
  }
  func.func @transform_3(%arg0: i32) -> (i32, i32) {
    %c0_i32 = arith.constant 0 : i32
    %c0_i32_0 = arith.constant 0 : i32
    %c0_i32_1 = arith.constant 0 : i32
    return %c0_i32, %c0_i32_0 : i32, i32
  }
  func.func @transform_4(%arg0: i32) -> (i32, i32, i32) {
    %c0_i32 = arith.constant 0 : i32
    %c0_i32_0 = arith.constant 0 : i32
    %c0_i32_1 = arith.constant 0 : i32
    %c0_i32_2 = arith.constant 0 : i32
    return %c0_i32, %c0_i32_0, %c0_i32_1 : i32, i32, i32
  }
  func.func @transform_5(%arg0: i32) -> (i32, i32, i32) {
    %c0_i32 = arith.constant 0 : i32
    %c0_i32_0 = arith.constant 0 : i32
    %c0_i32_1 = arith.constant 0 : i32
    return %arg0, %c0_i32, %c0_i32_0 : i32, i32, i32
  }
}

</mosaic_0001>

<llo_original>
// kernel: tpu_custom_call.1
$region0: #{tpu_custom_call.1}
  #allocation0 [shape = 'u32[]', space=smem, size = 0x4, offset = 0x4, fixed_abs, tag = 'smem constant byte address 0x4 - core index']
  #allocation1 [shape = 'u32[144,128]{1,0:T(1,128)}', space=vmem, size = 0x12000, scoped, tag = 'internal scratch']
  %s0 = inlined_call_operand.vmem [shape: f32[2,8,512], index: 0, kind: input, shape index: {}]
  %s1 = inlined_call_operand.vmem [shape: f32[16,8], index: 1, kind: input, shape index: {}]
  %s2 = inlined_call_operand.vmem [shape: f32[432,16], index: 2, kind: input, shape index: {}]
  %s3 = inlined_call_operand.vmem [shape: f32[8,16], index: 3, kind: input, shape index: {}]
  %s4 = inlined_call_operand.vmem [shape: u32[1,1,512], index: 4, kind: input, shape index: {}]
  %s5 = inlined_call_operand.hbm [shape: f32[2,8,512], index: 5, kind: output, shape index: {}]
  %s6 = sld [smem:[#allocation0]]
  $region53: #{tpu_custom_call.1} parent=0
    _
  %s8 = ssub.s32 1, %s6
  %s9 = scalar_select 0, %s8, %s6
  $region1: #{tpu_custom_call.1} parent=0
    #allocation2 [shape = 'u8[32768]{0}', space=vmem, size = 0x8000, scoped, tag = 'output window, operand 0']
    #allocation3 [shape = 's32[2]{0}', space=sflag, size = 0x8, scoped, tag = 'scoped memory for tpu_custom_call.1']
    %10 = vsyncpa [#allocation3], 0
    %s11 = scalar_lea.sflag [#allocation3], 1
    %12 = vsyncpa %s11, 0
    loop: start=0, step=1, limit=4
    $region2: #{tpu_custom_call.1} parent=1 // loop_pre_header
      _
    $region3: #{tpu_custom_call.1} parent=1 // loop_header
      %s14 = sphi 0, %s18
      %p15 = scmp.ge.s32.totalorder %s14, 4
      %s24 = sphi 0, %s26
      %s27 = sphi 0, %s24
      %s28 = sphi 0, %s27
      %s44 = sphi 0, %s28
      %s48 = sphi 0, %s48
      %s50 = sphi 0, %s48
      %s51 = sphi 0, %s50
      %s65 = sphi 0, %s51
      %s69 = sphi 0, %s69
      %s71 = sphi 0, %s69
      %s72 = sphi 0, %s71
      %s86 = sphi 0, %s72
      %s90 = sphi 0, %s90
      %s92 = sphi 0, %s90
      %s93 = sphi 0, %s92
      %s107 = sphi 0, %s93
      %s111 = sphi 0, %s111
      %s113 = sphi 0, %s111
      %s114 = sphi 0, %s113
      %s128 = sphi 0, %s114
      %s134 = sphi 0, %s136
      %s137 = sphi 0, %s134
      %s138 = sphi 0, %s137
      %s154 = sphi 0, %s138
    $region4: #{tpu_custom_call.1} parent=1 // loop_header_branch
      %17 = sbr.rel (%p15) target = $region8
    $region5: #{tpu_custom_call.1} parent=1 // loop_body
      %s19 = ssub.s32 %s14, 1
      %s20 = ssub.s32 %s14, 2
      %s21 = sadd.s32 %s14, 1
      %s22 = ssub.s32 %s14, %s21
      %p23 = scmp.eq.s32.totalorder %s22, 0
      %s25 = sadd.s32 %s24, 1
      %s26 = scalar_select %p23, %s24, %s25
      %p29 = pneg %p23
      %p30 = scmp.eq.s32.totalorder %s14, 1
      %p31 = por %p29, %p30
      %p32 = scmp.ne.s32.totalorder %s24, %s27
      %p33 = scmp.eq.s32.totalorder %s14, 0
      %p34 = por %p32, %p33
      %p35 = scmp.ne.s32.totalorder %s24, %s27
      %p36 = scmp.eq.s32.totalorder %s19, 1
      %p37 = por %p35, %p36
      %p38 = scmp.ne.s32.totalorder %s27, %s28
      %p39 = scmp.eq.s32.totalorder %s19, 0
      %p40 = por %p38, %p39
      %p41 = scmp.ne.s32.totalorder %s27, %s28
      %p42 = scmp.eq.s32.totalorder %s20, 1
      %p43 = por %p41, %p42
      %p45 = scmp.ne.s32.totalorder %s28, %s44
      %p46 = scmp.eq.s32.totalorder %s20, 0
      %p47 = por %p45, %p46
      %s49 = sadd.s32 %s48, 1
      %p52 = scmp.eq.s32.totalorder %s14, 1
      %p53 = scmp.ne.s32.totalorder %s48, %s50
      %p54 = scmp.eq.s32.totalorder %s14, 0
      %p55 = por %p53, %p54
      %p56 = scmp.ne.s32.totalorder %s48, %s50
      %p57 = scmp.eq.s32.totalorder %s19, 1
      %p58 = por %p56, %p57
      %p59 = scmp.ne.s32.totalorder %s50, %s51
      %p60 = scmp.eq.s32.totalorder %s19, 0
      %p61 = por %p59, %p60
      %p62 = scmp.ne.s32.totalorder %s50, %s51
      %p63 = scmp.eq.s32.totalorder %s20, 1
      %p64 = por %p62, %p63
      %p66 = scmp.ne.s32.totalorder %s51, %s65
      %p67 = scmp.eq.s32.totalorder %s20, 0
      %p68 = por %p66, %p67
      %s70 = sadd.s32 %s69, 1
      %p73 = scmp.eq.s32.totalorder %s14, 1
      %p74 = scmp.ne.s32.totalorder %s69, %s71
      %p75 = scmp.eq.s32.totalorder %s14, 0
      %p76 = por %p74, %p75
      %p77 = scmp.ne.s32.totalorder %s69, %s71
      %p78 = scmp.eq.s32.totalorder %s19, 1
      %p79 = por %p77, %p78
      %p80 = scmp.ne.s32.totalorder %s71, %s72
      %p81 = scmp.eq.s32.totalorder %s19, 0
      %p82 = por %p80, %p81
      %p83 = scmp.ne.s32.totalorder %s71, %s72
      %p84 = scmp.eq.s32.totalorder %s20, 1
      %p85 = por %p83, %p84
      %p87 = scmp.ne.s32.totalorder %s72, %s86
      %p88 = scmp.eq.s32.totalorder %s20, 0
      %p89 = por %p87, %p88
      %s91 = sadd.s32 %s90, 1
      %p94 = scmp.eq.s32.totalorder %s14, 1
      %p95 = scmp.ne.s32.totalorder %s90, %s92
      %p96 = scmp.eq.s32.totalorder %s14, 0
      %p97 = por %p95, %p96
      %p98 = scmp.ne.s32.totalorder %s90, %s92
      %p99 = scmp.eq.s32.totalorder %s19, 1
      %p100 = por %p98, %p99
      %p101 = scmp.ne.s32.totalorder %s92, %s93
      %p102 = scmp.eq.s32.totalorder %s19, 0
      %p103 = por %p101, %p102
      %p104 = scmp.ne.s32.totalorder %s92, %s93
      %p105 = scmp.eq.s32.totalorder %s20, 1
      %p106 = por %p104, %p105
      %p108 = scmp.ne.s32.totalorder %s93, %s107
      %p109 = scmp.eq.s32.totalorder %s20, 0
      %p110 = por %p108, %p109
      %s112 = sadd.s32 %s111, 1
      %p115 = scmp.eq.s32.totalorder %s14, 1
      %p116 = scmp.ne.s32.totalorder %s111, %s113
      %p117 = scmp.eq.s32.totalorder %s14, 0
      %p118 = por %p116, %p117
      %p119 = scmp.ne.s32.totalorder %s111, %s113
      %p120 = scmp.eq.s32.totalorder %s19, 1
      %p121 = por %p119, %p120
      %p122 = scmp.ne.s32.totalorder %s113, %s114
      %p123 = scmp.eq.s32.totalorder %s19, 0
      %p124 = por %p122, %p123
      %p125 = scmp.ne.s32.totalorder %s113, %s114
      %p126 = scmp.eq.s32.totalorder %s20, 1
      %p127 = por %p125, %p126
      %p129 = scmp.ne.s32.totalorder %s114, %s128
      %p130 = scmp.eq.s32.totalorder %s20, 0
      %p131 = por %p129, %p130
      %s132 = ssub.s32 %s14, %s21
      %p133 = scmp.eq.s32.totalorder %s132, 0
      %s135 = sadd.s32 %s134, 1
      %s136 = scalar_select %p133, %s134, %s135
      %p139 = pneg %p133
      %p140 = scmp.eq.s32.totalorder %s14, 1
      %p141 = por %p139, %p140
      %p142 = scmp.ne.s32.totalorder %s134, %s137
      %p143 = scmp.eq.s32.totalorder %s14, 0
      %p144 = por %p142, %p143
      %p145 = scmp.ne.s32.totalorder %s134, %s137
      %p146 = scmp.eq.s32.totalorder %s19, 1
      %p147 = por %p145, %p146
      %p148 = scmp.ne.s32.totalorder %s137, %s138
      %p149 = scmp.eq.s32.totalorder %s19, 0
      %p150 = por %p148, %p149
      %p151 = scmp.ne.s32.totalorder %s137, %s138
      %p152 = scmp.eq.s32.totalorder %s20, 1
      %p153 = por %p151, %p152
      %p155 = scmp.ne.s32.totalorder %s138, %s154
      %p156 = scmp.eq.s32.totalorder %s20, 0
      %p157 = por %p155, %p156
      %p158 = scmp.le.s32.totalorder 1, %s14
      %p159 = scmp.lt.s32.totalorder %s14, 3
      %p160 = pnand %p158, %p159
      %p161 = pneg %p160
      // Predicated region
      $region9: #{tpu_custom_call.1} parent=5 // pred_check
        _
      $region10: #{tpu_custom_call.1} parent=5 // pred_check_branch
        %163 = sbr.rel (%p160) target = $region12
      $region11: #{tpu_custom_call.1} parent=5 // pred_region
        %s164 = ssub.s32 %s14, 1
        // Predicated region
        $region13: #{tpu_custom_call.1} parent=11 // pred_check
          %p165 = pneg %p61
        $region14: #{tpu_custom_call.1} parent=11 // pred_check_branch
          %167 = sbr.rel (%p165) target = $region16
        $region15: #{tpu_custom_call.1} parent=11 // pred_region
          _
        $region16: #{tpu_custom_call.1} parent=11 // pred_fallthru
          _
        // Predicated region
        $region17: #{tpu_custom_call.1} parent=11 // pred_check
          %p168 = pneg %p82
        $region18: #{tpu_custom_call.1} parent=11 // pred_check_branch
          %170 = sbr.rel (%p168) target = $region20
        $region19: #{tpu_custom_call.1} parent=11 // pred_region
          _
        $region20: #{tpu_custom_call.1} parent=11 // pred_fallthru
          _
        // Predicated region
        $region21: #{tpu_custom_call.1} parent=11 // pred_check
          %p171 = pneg %p103
        $region22: #{tpu_custom_call.1} parent=11 // pred_check_branch
          %173 = sbr.rel (%p171) target = $region24
        $region23: #{tpu_custom_call.1} parent=11 // pred_region
          _
        $region24: #{tpu_custom_call.1} parent=11 // pred_fallthru
          _
        // Predicated region
        $region25: #{tpu_custom_call.1} parent=11 // pred_check
          %p174 = pneg %p124
        $region26: #{tpu_custom_call.1} parent=11 // pred_check_branch
          %176 = sbr.rel (%p174) target = $region28
        $region27: #{tpu_custom_call.1} parent=11 // pred_region
          _
        $region28: #{tpu_custom_call.1} parent=11 // pred_fallthru
          _
      $region12: #{tpu_custom_call.1} parent=5 // pred_fallthru
        _
      %p177 = scmp.lt.s32.totalorder %s14, 2
      // Predicated region
      $region29: #{tpu_custom_call.1} parent=5 // pred_check
        %p178 = pneg %p177
      $region30: #{tpu_custom_call.1} parent=5 // pred_check_branch
        %180 = sbr.rel (%p178) target = $region32
      $region31: #{tpu_custom_call.1} parent=5 // pred_region
        // Predicated region
        $region33: #{tpu_custom_call.1} parent=31 // pred_check
          %p181 = pneg %p34
        $region34: #{tpu_custom_call.1} parent=31 // pred_check_branch
          %183 = sbr.rel (%p181) target = $region36
        $region35: #{tpu_custom_call.1} parent=31 // pred_region
          %p184 = scmp.lt.s32.totalorder %s14, 1
          %s185 = scalar_select %p184, %s14, 1
          %s186 = smul.addr %s185, 4
          %s187 = smul.addr %s186, 8
          %s188 = scalar_lea.vmem %s0, %s187
        $region36: #{tpu_custom_call.1} parent=31 // pred_fallthru
          _
      $region32: #{tpu_custom_call.1} parent=5 // pred_fallthru
        _
      %p189 = scmp.le.s32.totalorder 1, %s14
      %p190 = scmp.lt.s32.totalorder %s14, 3
      %p191 = pnand %p189, %p190
      %p192 = pneg %p191
      // Predicated region
      $region37: #{tpu_custom_call.1} parent=5 // pred_check
        _
      $region38: #{tpu_custom_call.1} parent=5 // pred_check_branch
        %194 = sbr.rel (%p191) target = $region40
      $region39: #{tpu_custom_call.1} parent=5 // pred_region
        %s195 = ssub.s32 %s14, 1
        %p196 = scmp.lt.s32.totalorder %s19, 1
        %s197 = scalar_select %p196, %s19, 1
        %s198 = smul.addr %s197, 4
        %s199 = smul.addr %s198, 8
        %s200 = scalar_lea.vmem %s0, %s199
        %p201 = pneg %p40
        %p202 = pneg %p37
        %p203 = pneg %p61
        %p204 = pneg %p58
        %p205 = pneg %p82
        %p206 = pneg %p79
        %p207 = pneg %p103
        %p208 = pneg %p100
        %p209 = pneg %p124
        %p210 = pneg %p121
        %p211 = pneg %p150
        %p212 = pneg %p147
        %s213 = sand.u32 %s137, 1
        %s214 = scalar_lea.sflag [#allocation3], %s213
        %s215 = sand.u32 %s137, 1
        %s216 = smul.addr %s215, 32
        %s217 = scalar_lea.vmem [#allocation2], %s216
        %p218 = scmp.lt.s32.totalorder %s19, 1
        %s219 = scalar_select %p218, %s19, 1
        %s220 = smul.addr %s219, 4
        %s221 = smul.addr %s220, 8
        %s222 = scalar_lea.vmem %s0, %s221
        %v223 = vld [vmem:[%s222] sm:$0xff]
        %v224 = vld [vmem:[%s222 + $0x8] sm:$0xff]
        %v225 = vld [vmem:[%s222 + $0x10] sm:$0xff]
        %v226 = vld [vmem:[%s222 + $0x18] sm:$0xff]
        %v227 = vld [vmem:[%s1] sm:$0xff]
        %v228 = vld [vmem:[%s1 + $0x8] sm:$0xff]
        %vm229 = vcmask 64512
        %v231 = vsel %vm229, %v227, 0
        %v234 = vsel %vm229, %v228, 0
        %236 = vmatprep.subr.mxu0 0.0
        %237 = vmatpush1.msra.mxu0 0.0
        %238 = vmatprep.subr.mxu0 0.0
        %239 = vmatpush1.msra.mxu0 0.0
        %240 = vmatprep.subr.mxu0 0.0
        %241 = vmatpush1.msra.mxu0 0.0
        %242 = vmatprep.subr.mxu0 0.0
        %243 = vmatpush1.msra.mxu0 0.0
        %244 = vmatprep.subr.mxu0 0.0
        %245 = vmatpush1.msra.mxu0 0.0
        %246 = vmatprep.subr.mxu0 0.0
        %247 = vmatpush1.msra.mxu0 0.0
        %248 = vmatprep.subr.mxu0 0.0
        %249 = vmatpush1.msra.mxu0 0.0
        %250 = vmatprep.subr.mxu0 0.0
        %251 = vmatpush1.msra.mxu0 0.0
        %252 = vmatprep.subr.mxu0 0.0
        %253 = vmatpush1.msra.mxu0 0.0
        %254 = vmatprep.subr.mxu0 0.0
        %255 = vmatpush1.msra.mxu0 0.0
        %256 = vmatprep.subr.mxu0 0.0
        %257 = vmatpush1.msra.mxu0 0.0
        %258 = vmatprep.subr.mxu0 0.0
        %259 = vmatpush1.msra.mxu0 0.0
        %260 = vmatprep.subr.mxu0 0.0
        %261 = vmatpush1.msra.mxu0 0.0
        %262 = vmatprep.subr.mxu0 0.0
        %263 = vmatpush1.msra.mxu0 0.0
        %264 = vmatprep.subr.mxu0 0.0
        %265 = vmatpush1.msra.mxu0 0.0
        %266 = vmatprep.subr.mxu0 %v224
        %267 = vmatpush1.msra.mxu0 %v223
        %268 = vmatprep.subr.mxu0 0.0
        %269 = vmatpush2.msra.mxu0 0.0
        %270 = vmatprep.subr.mxu0 0.0
        %271 = vmatpush2.msra.mxu0 0.0
        %272 = vmatprep.subr.mxu0 0.0
        %273 = vmatpush2.msra.mxu0 0.0
        %274 = vmatprep.subr.mxu0 0.0
        %275 = vmatpush2.msra.mxu0 0.0
        %276 = vmatprep.subr.mxu0 0.0
        %277 = vmatpush2.msra.mxu0 0.0
        %278 = vmatprep.subr.mxu0 0.0
        %279 = vmatpush2.msra.mxu0 0.0
        %280 = vmatprep.subr.mxu0 0.0
        %281 = vmatpush2.msra.mxu0 0.0
        %282 = vmatprep.subr.mxu0 0.0
        %283 = vmatpush2.msra.mxu0 0.0
        %284 = vmatprep.subr.mxu0 0.0
        %285 = vmatpush2.msra.mxu0 0.0
        %286 = vmatprep.subr.mxu0 0.0
        %287 = vmatpush2.msra.mxu0 0.0
        %288 = vmatprep.subr.mxu0 0.0
        %289 = vmatpush2.msra.mxu0 0.0
        %290 = vmatprep.subr.mxu0 0.0
        %291 = vmatpush2.msra.mxu0 0.0
        %292 = vmatprep.subr.mxu0 0.0
        %293 = vmatpush2.msra.mxu0 0.0
        %294 = vmatprep.subr.mxu0 0.0
        %295 = vmatpush2.msra.mxu0 0.0
        %296 = vmatprep.subr.mxu0 0.0
        %297 = vmatpush2.msra.mxu0 0.0
        %298 = vmatprep.subr.mxu0 0.0
        %299 = vmatpush2.msra.mxu0 0.0
        %300 = vmatprep.mubr.f32.mxu0 0.0
        %301 = vmatmul.mubr.f32.gmra.mxu0 %v231
        %v302 = vpop.f32.mrf.mxu0
        %v303 = vadd.f32 0.0, %v302
        %v304 = vpop.f32.mrf.mxu0
        %v305 = vadd.f32 0.0, %v304
        %306 = vmatprep.mubr.f32.mxu0 0.0
        %307 = vmatmul.mubr.f32.gmra.mxu0 %v234
        %v308 = vpop.f32.mrf.mxu0
        %v309 = vadd.f32 0.0, %v308
        %v310 = vpop.f32.mrf.mxu0
        %v311 = vadd.f32 0.0, %v310
        %312 = vdwg.mxu0
        %313 = vmatprep.subr.mxu0 0.0
        %314 = vmatpush1.msra.mxu0 0.0
        %315 = vmatprep.subr.mxu0 0.0
        %316 = vmatpush1.msra.mxu0 0.0
        %317 = vmatprep.subr.mxu0 0.0
        %318 = vmatpush1.msra.mxu0 0.0
        %319 = vmatprep.subr.mxu0 0.0
        %320 = vmatpush1.msra.mxu0 0.0
        %321 = vmatprep.subr.mxu0 0.0
        %322 = vmatpush1.msra.mxu0 0.0
        %323 = vmatprep.subr.mxu0 0.0
        %324 = vmatpush1.msra.mxu0 0.0
        %325 = vmatprep.subr.mxu0 0.0
        %326 = vmatpush1.msra.mxu0 0.0
        %327 = vmatprep.subr.mxu0 0.0
        %328 = vmatpush1.msra.mxu0 0.0
        %329 = vmatprep.subr.mxu0 0.0
        %330 = vmatpush1.msra.mxu0 0.0
        %331 = vmatprep.subr.mxu0 0.0
        %332 = vmatpush1.msra.mxu0 0.0
        %333 = vmatprep.subr.mxu0 0.0
        %334 = vmatpush1.msra.mxu0 0.0
        %335 = vmatprep.subr.mxu0 0.0
        %336 = vmatpush1.msra.mxu0 0.0
        %337 = vmatprep.subr.mxu0 0.0
        %338 = vmatpush1.msra.mxu0 0.0
        %339 = vmatprep.subr.mxu0 0.0
        %340 = vmatpush1.msra.mxu0 0.0
        %341 = vmatprep.subr.mxu0 0.0
        %342 = vmatpush1.msra.mxu0 0.0
        %343 = vmatprep.subr.mxu0 %v226
        %344 = vmatpush1.msra.mxu0 %v225
        %345 = vmatprep.subr.mxu0 0.0
        %346 = vmatpush2.msra.mxu0 0.0
        %347 = vmatprep.subr.mxu0 0.0
        %348 = vmatpush2.msra.mxu0 0.0
        %349 = vmatprep.subr.mxu0 0.0
        %350 = vmatpush2.msra.mxu0 0.0
        %351 = vmatprep.subr.mxu0 0.0
        %352 = vmatpush2.msra.mxu0 0.0
        %353 = vmatprep.subr.mxu0 0.0
        %354 = vmatpush2.msra.mxu0 0.0
        %355 = vmatprep.subr.mxu0 0.0
        %356 = vmatpush2.msra.mxu0 0.0
        %357 = vmatprep.subr.mxu0 0.0
        %358 = vmatpush2.msra.mxu0 0.0
        %359 = vmatprep.subr.mxu0 0.0
        %360 = vmatpush2.msra.mxu0 0.0
        %361 = vmatprep.subr.mxu0 0.0
        %362 = vmatpush2.msra.mxu0 0.0
        %363 = vmatprep.subr.mxu0 0.0
        %364 = vmatpush2.msra.mxu0 0.0
        %365 = vmatprep.subr.mxu0 0.0
        %366 = vmatpush2.msra.mxu0 0.0
        %367 = vmatprep.subr.mxu0 0.0
        %368 = vmatpush2.msra.mxu0 0.0
        %369 = vmatprep.subr.mxu0 0.0
        %370 = vmatpush2.msra.mxu0 0.0
        %371 = vmatprep.subr.mxu0 0.0
        %372 = vmatpush2.msra.mxu0 0.0
        %373 = vmatprep.subr.mxu0 0.0
        %374 = vmatpush2.msra.mxu0 0.0
        %375 = vmatprep.subr.mxu0 0.0
        %376 = vmatpush2.msra.mxu0 0.0
        %377 = vmatprep.mubr.f32.mxu0 0.0
        %378 = vmatmul.mubr.f32.gmra.mxu0 %v231
        %v379 = vpop.f32.mrf.mxu0
        %v380 = vadd.f32 0.0, %v379
        %v381 = vpop.f32.mrf.mxu0
        %v382 = vadd.f32 0.0, %v381
        %383 = vmatprep.mubr.f32.mxu0 0.0
        %384 = vmatmul.mubr.f32.gmra.mxu0 %v234
        %v385 = vpop.f32.mrf.mxu0
        %v386 = vadd.f32 0.0, %v385
        %v387 = vpop.f32.mrf.mxu0
        %v388 = vadd.f32 0.0, %v387
        %389 = vdwg.mxu0
        %v390 = vadd.f32 %v303, %v305
        %v391 = vadd.f32 %v390, %v380
        %v392 = vadd.f32 %v391, %v382
        %393 = vadd.xlane.f32.xlu0 %v392
        %v394 = vpop.xlane.xlu0 %393
        %v395 = vadd.f32 %v309, %v311
        %v396 = vadd.f32 %v395, %v386
        %v397 = vadd.f32 %v396, %v388
        %398 = vadd.xlane.f32.xlu0 %v397
        %v399 = vpop.xlane.xlu0 %398
        %v400 = vrcp.pop 512.0
        %v401 = vmul.f32 %v394, %v400
        %v402 = vmul.f32 %v399, %v400
        %v403 = vmul.f32 %v303, %v303
        %v404 = vmul.f32 %v305, %v305
        %v405 = vmul.f32 %v380, %v380
        %v406 = vmul.f32 %v382, %v382
        %v407 = vmul.f32 %v309, %v309
        %v408 = vmul.f32 %v311, %v311
        %v409 = vmul.f32 %v386, %v386
        %v410 = vmul.f32 %v388, %v388
        %v411 = vadd.f32 %v403, %v404
        %v412 = vadd.f32 %v411, %v405
        %v413 = vadd.f32 %v412, %v406
        %414 = vadd.xlane.f32.xlu0 %v413
        %v415 = vpop.xlane.xlu0 %414
        %v416 = vadd.f32 %v407, %v408
        %v417 = vadd.f32 %v416, %v409
        %v418 = vadd.f32 %v417, %v410
        %419 = vadd.xlane.f32.xlu0 %v418
        %v420 = vpop.xlane.xlu0 %419
        %v421 = vmul.f32 %v415, %v400
        %v422 = vmul.f32 %v420, %v400
        %v423 = vmul.f32 %v401, %v401
        %v424 = vmul.f32 %v402, %v402
        %v425 = vsub.f32 %v421, %v423
        %v426 = vsub.f32 %v422, %v424
        %v427 = vmax.f32 %v425, 0.0
        %v428 = vmax.f32 %v426, 0.0
        %v429 = vsub.f32 %v303, %v401
        %v430 = vsub.f32 %v305, %v401
        %v431 = vsub.f32 %v380, %v401
        %v432 = vsub.f32 %v382, %v401
        %v433 = vsub.f32 %v309, %v402
        %v434 = vsub.f32 %v311, %v402
        %v435 = vsub.f32 %v386, %v402
        %v436 = vsub.f32 %v388, %v402
        %v437 = vadd.f32 %v427, 1e-05
        %v438 = vadd.f32 %v428, 1e-05
        %v439 = vrsqrt.pop %v437
        %v440 = vrsqrt.pop %v438
        %v441 = vmul.f32 %v429, %v439
        %v442 = vmul.f32 %v430, %v439
        %v443 = vmul.f32 %v431, %v439
        %v444 = vmul.f32 %v432, %v439
        %v445 = vmul.f32 %v433, %v440
        %v446 = vmul.f32 %v434, %v440
        %v447 = vmul.f32 %v435, %v440
        %v448 = vmul.f32 %v436, %v440
        %v449 = vmax.f32 %v441, 0.0
        %v450 = vmax.f32 %v442, 0.0
        %v451 = vmax.f32 %v443, 0.0
        %v452 = vmax.f32 %v444, 0.0
        %v453 = vmax.f32 %v445, 0.0
        %v454 = vmax.f32 %v446, 0.0
        %v455 = vmax.f32 %v447, 0.0
        %v456 = vmax.f32 %v448, 0.0
        %v457 = vld [vmem:[%s2] sm:$0xff]
        %v458 = vld [vmem:[%s2 + $0x8] sm:$0xff]
        %v459 = vld [vmem:[%s2 + $0x10] sm:$0xff]
        %v460 = vld [vmem:[%s2 + $0x18] sm:$0xff]
        %v461 = vld [vmem:[%s2 + $0x20] sm:$0xff]
        %v462 = vld [vmem:[%s2 + $0x28] sm:$0xff]
        %v463 = vld [vmem:[%s2 + $0x30] sm:$0xff]
        %v464 = vld [vmem:[%s2 + $0x38] sm:$0xff]
        %v465 = vld [vmem:[%s2 + $0x40] sm:$0xff]
        %v466 = vld [vmem:[%s2 + $0x48] sm:$0xff]
        %v467 = vld [vmem:[%s2 + $0x50] sm:$0xff]
        %v468 = vld [vmem:[%s2 + $0x58] sm:$0xff]
        %v469 = vld [vmem:[%s2 + $0x60] sm:$0xff]
        %v470 = vld [vmem:[%s2 + $0x68] sm:$0xff]
        %v471 = vld [vmem:[%s2 + $0x70] sm:$0xff]
        %v472 = vld [vmem:[%s2 + $0x78] sm:$0xff]
        %v473 = vld [vmem:[%s2 + $0x80] sm:$0xff]
        %v474 = vld [vmem:[%s2 + $0x88] sm:$0xff]
        %v475 = vld [vmem:[%s2 + $0x90] sm:$0xff]
        %v476 = vld [vmem:[%s2 + $0x98] sm:$0xff]
        %v477 = vld [vmem:[%s2 + $0xa0] sm:$0xff]
        %v478 = vld [vmem:[%s2 + $0xa8] sm:$0xff]
        %v479 = vld [vmem:[%s2 + $0xb0] sm:$0xff]
        %v480 = vld [vmem:[%s2 + $0xb8] sm:$0xff]
        %v481 = vld [vmem:[%s2 + $0xc0] sm:$0xff]
        %v482 = vld [vmem:[%s2 + $0xc8] sm:$0xff]
        %v483 = vld [vmem:[%s2 + $0xd0] sm:$0xff]
        %v484 = vld [vmem:[%s2 + $0xd8] sm:$0xff]
        %v485 = vld [vmem:[%s2 + $0xe0] sm:$0xff]
        %v486 = vld [vmem:[%s2 + $0xe8] sm:$0xff]
        %v487 = vld [vmem:[%s2 + $0xf0] sm:$0xff]
        %v488 = vld [vmem:[%s2 + $0xf8] sm:$0xff]
        %v489 = vld [vmem:[%s2 + $0x100] sm:$0xff]
        %v490 = vld [vmem:[%s2 + $0x108] sm:$0xff]
        %v491 = vld [vmem:[%s2 + $0x110] sm:$0xff]
        %v492 = vld [vmem:[%s2 + $0x118] sm:$0xff]
        %v493 = vld [vmem:[%s2 + $0x120] sm:$0xff]
        %v494 = vld [vmem:[%s2 + $0x128] sm:$0xff]
        %v495 = vld [vmem:[%s2 + $0x130] sm:$0xff]
        %v496 = vld [vmem:[%s2 + $0x138] sm:$0xff]
        %v497 = vld [vmem:[%s2 + $0x140] sm:$0xff]
        %v498 = vld [vmem:[%s2 + $0x148] sm:$0xff]
        %v499 = vld [vmem:[%s2 + $0x150] sm:$0xff]
        %v500 = vld [vmem:[%s2 + $0x158] sm:$0xff]
        %v501 = vld [vmem:[%s2 + $0x160] sm:$0xff]
        %v502 = vld [vmem:[%s2 + $0x168] sm:$0xff]
        %v503 = vld [vmem:[%s2 + $0x170] sm:$0xff]
        %v504 = vld [vmem:[%s2 + $0x178] sm:$0xff]
        %v505 = vld [vmem:[%s2 + $0x180] sm:$0xff]
        %v506 = vld [vmem:[%s2 + $0x188] sm:$0xff]
        %v507 = vld [vmem:[%s2 + $0x190] sm:$0xff]
        %v508 = vld [vmem:[%s2 + $0x198] sm:$0xff]
        %v509 = vld [vmem:[%s2 + $0x1a0] sm:$0xff]
        %v510 = vld [vmem:[%s2 + $0x1a8] sm:$0xff]
        %vm511 = vcmask 130048
        %v513 = vsel %vm511, %v457, 0
        %v516 = vsel %vm511, %v458, 0
        %v519 = vsel %vm511, %v459, 0
        %v522 = vsel %vm511, %v460, 0
        %v525 = vsel %vm511, %v461, 0
        %v528 = vsel %vm511, %v462, 0
        %v531 = vsel %vm511, %v463, 0
        %v534 = vsel %vm511, %v464, 0
        %v537 = vsel %vm511, %v465, 0
        %v540 = vsel %vm511, %v466, 0
        %v543 = vsel %vm511, %v467, 0
        %v546 = vsel %vm511, %v468, 0
        %v549 = vsel %vm511, %v469, 0
        %v552 = vsel %vm511, %v470, 0
        %v555 = vsel %vm511, %v471, 0
        %v558 = vsel %vm511, %v472, 0
        %v561 = vsel %vm511, %v473, 0
        %v564 = vsel %vm511, %v474, 0
        %v567 = vsel %vm511, %v475, 0
        %v570 = vsel %vm511, %v476, 0
        %v573 = vsel %vm511, %v477, 0
        %v576 = vsel %vm511, %v478, 0
        %v579 = vsel %vm511, %v479, 0
        %v582 = vsel %vm511, %v480, 0
        %v585 = vsel %vm511, %v481, 0
        %v588 = vsel %vm511, %v482, 0
        %v591 = vsel %vm511, %v483, 0
        %v594 = vsel %vm511, %v484, 0
        %v597 = vsel %vm511, %v485, 0
        %v600 = vsel %vm511, %v486, 0
        %v603 = vsel %vm511, %v487, 0
        %v606 = vsel %vm511, %v488, 0
        %v609 = vsel %vm511, %v489, 0
        %v612 = vsel %vm511, %v490, 0
        %v615 = vsel %vm511, %v491, 0
        %v618 = vsel %vm511, %v492, 0
        %v621 = vsel %vm511, %v493, 0
        %v624 = vsel %vm511, %v494, 0
        %v627 = vsel %vm511, %v495, 0
        %v630 = vsel %vm511, %v496, 0
        %v633 = vsel %vm511, %v497, 0
        %v636 = vsel %vm511, %v498, 0
        %v639 = vsel %vm511, %v499, 0
        %v642 = vsel %vm511, %v500, 0
        %v645 = vsel %vm511, %v501, 0
        %v648 = vsel %vm511, %v502, 0
        %v651 = vsel %vm511, %v503, 0
        %v654 = vsel %vm511, %v504, 0
        %v657 = vsel %vm511, %v505, 0
        %v660 = vsel %vm511, %v506, 0
        %v663 = vsel %vm511, %v507, 0
        %v666 = vsel %vm511, %v508, 0
        %v669 = vsel %vm511, %v509, 0
        %v672 = vsel %vm511, %v510, 0
        %674 = vmatprep.subr.mxu0 0.0
        %675 = vmatpush1.msra.mxu0 0.0
        %676 = vmatprep.subr.mxu0 0.0
        %677 = vmatpush1.msra.mxu0 0.0
        %678 = vmatprep.subr.mxu0 0.0
        %679 = vmatpush1.msra.mxu0 0.0
        %680 = vmatprep.subr.mxu0 0.0
        %681 = vmatpush1.msra.mxu0 0.0
        %682 = vmatprep.subr.mxu0 0.0
        %683 = vmatpush1.msra.mxu0 0.0
        %684 = vmatprep.subr.mxu0 0.0
        %685 = vmatpush1.msra.mxu0 0.0
        %686 = vmatprep.subr.mxu0 0.0
        %687 = vmatpush1.msra.mxu0 0.0
        %688 = vmatprep.subr.mxu0 0.0
        %689 = vmatpush1.msra.mxu0 0.0
        %690 = vmatprep.subr.mxu0 0.0
        %691 = vmatpush1.msra.mxu0 0.0
        %692 = vmatprep.subr.mxu0 0.0
        %693 = vmatpush1.msra.mxu0 0.0
        %694 = vmatprep.subr.mxu0 0.0
        %695 = vmatpush1.msra.mxu0 0.0
        %696 = vmatprep.subr.mxu0 0.0
        %697 = vmatpush1.msra.mxu0 0.0
        %698 = vmatprep.subr.mxu0 0.0
        %699 = vmatpush1.msra.mxu0 0.0
        %700 = vmatprep.subr.mxu0 0.0
        %701 = vmatpush1.msra.mxu0 0.0
        %702 = vmatprep.subr.mxu0 %v454
        %703 = vmatpush1.msra.mxu0 %v453
        %704 = vmatprep.subr.mxu0 %v450
        %705 = vmatpush1.msra.mxu0 %v449
        %706 = vmatprep.subr.mxu0 0.0
        %707 = vmatpush2.msra.mxu0 0.0
        %708 = vmatprep.subr.mxu0 0.0
        %709 = vmatpush2.msra.mxu0 0.0
        %710 = vmatprep.subr.mxu0 0.0
        %711 = vmatpush2.msra.mxu0 0.0
        %712 = vmatprep.subr.mxu0 0.0
        %713 = vmatpush2.msra.mxu0 0.0
        %714 = vmatprep.subr.mxu0 0.0
        %715 = vmatpush2.msra.mxu0 0.0
        %716 = vmatprep.subr.mxu0 0.0
        %717 = vmatpush2.msra.mxu0 0.0
        %718 = vmatprep.subr.mxu0 0.0
        %719 = vmatpush2.msra.mxu0 0.0
        %720 = vmatprep.subr.mxu0 0.0
        %721 = vmatpush2.msra.mxu0 0.0
        %722 = vmatprep.subr.mxu0 0.0
        %723 = vmatpush2.msra.mxu0 0.0
        %724 = vmatprep.subr.mxu0 0.0
        %725 = vmatpush2.msra.mxu0 0.0
        %726 = vmatprep.subr.mxu0 0.0
        %727 = vmatpush2.msra.mxu0 0.0
        %728 = vmatprep.subr.mxu0 0.0
        %729 = vmatpush2.msra.mxu0 0.0
        %730 = vmatprep.subr.mxu0 0.0
        %731 = vmatpush2.msra.mxu0 0.0
        %732 = vmatprep.subr.mxu0 0.0
        %733 = vmatpush2.msra.mxu0 0.0
        %734 = vmatprep.subr.mxu0 0.0
        %735 = vmatpush2.msra.mxu0 0.0
        %736 = vmatprep.subr.mxu0 0.0
        %737 = vmatpush2.msra.mxu0 0.0
        %738 = vmatprep.mubr.f32.mxu0 0.0
        %739 = vmatmul.mubr.f32.gmra.mxu0 %v513
        %v740 = vpop.f32.mrf.mxu0
        %v741 = vadd.f32 0.0, %v740
        %v742 = vpop.f32.mrf.mxu0
        %v743 = vadd.f32 0.0, %v742
        %744 = vmatprep.mubr.f32.mxu0 0.0
        %745 = vmatmul.mubr.f32.gmra.mxu0 %v516
        %v746 = vpop.f32.mrf.mxu0
        %v747 = vadd.f32 0.0, %v746
        %v748 = vpop.f32.mrf.mxu0
        %v749 = vadd.f32 0.0, %v748
        %750 = vmatprep.mubr.f32.mxu0 0.0
        %751 = vmatmul.mubr.f32.gmra.mxu0 %v519
        %v752 = vpop.f32.mrf.mxu0
        %v753 = vadd.f32 0.0, %v752
        %v754 = vpop.f32.mrf.mxu0
        %v755 = vadd.f32 0.0, %v754
        %756 = vmatprep.mubr.f32.mxu0 0.0
        %757 = vmatmul.mubr.f32.gmra.mxu0 %v522
        %v758 = vpop.f32.mrf.mxu0
        %v759 = vadd.f32 0.0, %v758
        %v760 = vpop.f32.mrf.mxu0
        %v761 = vadd.f32 0.0, %v760
        %762 = vmatprep.mubr.f32.mxu0 0.0
        %763 = vmatmul.mubr.f32.gmra.mxu0 %v525
        %v764 = vpop.f32.mrf.mxu0
        %v765 = vadd.f32 0.0, %v764
        %v766 = vpop.f32.mrf.mxu0
        %v767 = vadd.f32 0.0, %v766
        %768 = vmatprep.mubr.f32.mxu0 0.0
        %769 = vmatmul.mubr.f32.gmra.mxu0 %v528
        %v770 = vpop.f32.mrf.mxu0
        %v771 = vadd.f32 0.0, %v770
        %v772 = vpop.f32.mrf.mxu0
        %v773 = vadd.f32 0.0, %v772
        %774 = vmatprep.mubr.f32.mxu0 0.0
        %775 = vmatmul.mubr.f32.gmra.mxu0 %v531
        %v776 = vpop.f32.mrf.mxu0
        %v777 = vadd.f32 0.0, %v776
        %v778 = vpop.f32.mrf.mxu0
        %v779 = vadd.f32 0.0, %v778
        %780 = vmatprep.mubr.f32.mxu0 0.0
        %781 = vmatmul.mubr.f32.gmra.mxu0 %v534
        %v782 = vpop.f32.mrf.mxu0
        %v783 = vadd.f32 0.0, %v782
        %v784 = vpop.f32.mrf.mxu0
        %v785 = vadd.f32 0.0, %v784
        %786 = vmatprep.mubr.f32.mxu0 0.0
        %787 = vmatmul.mubr.f32.gmra.mxu0 %v537
        %v788 = vpop.f32.mrf.mxu0
        %v789 = vadd.f32 0.0, %v788
        %v790 = vpop.f32.mrf.mxu0
        %v791 = vadd.f32 0.0, %v790
        %792 = vmatprep.mubr.f32.mxu0 0.0
        %793 = vmatmul.mubr.f32.gmra.mxu0 %v540
        %v794 = vpop.f32.mrf.mxu0
        %v795 = vadd.f32 0.0, %v794
        %v796 = vpop.f32.mrf.mxu0
        %v797 = vadd.f32 0.0, %v796
        %798 = vmatprep.mubr.f32.mxu0 0.0
        %799 = vmatmul.mubr.f32.gmra.mxu0 %v543
        %v800 = vpop.f32.mrf.mxu0
        %v801 = vadd.f32 0.0, %v800
        %v802 = vpop.f32.mrf.mxu0
        %v803 = vadd.f32 0.0, %v802
        %804 = vmatprep.mubr.f32.mxu0 0.0
        %805 = vmatmul.mubr.f32.gmra.mxu0 %v546
        %v806 = vpop.f32.mrf.mxu0
        %v807 = vadd.f32 0.0, %v806
        %v808 = vpop.f32.mrf.mxu0
        %v809 = vadd.f32 0.0, %v808
        %810 = vmatprep.mubr.f32.mxu0 0.0
        %811 = vmatmul.mubr.f32.gmra.mxu0 %v549
        %v812 = vpop.f32.mrf.mxu0
        %v813 = vadd.f32 0.0, %v812
        %v814 = vpop.f32.mrf.mxu0
        %v815 = vadd.f32 0.0, %v814
        %816 = vmatprep.mubr.f32.mxu0 0.0
        %817 = vmatmul.mubr.f32.gmra.mxu0 %v552
        %v818 = vpop.f32.mrf.mxu0
        %v819 = vadd.f32 0.0, %v818
        %v820 = vpop.f32.mrf.mxu0
        %v821 = vadd.f32 0.0, %v820
        %822 = vmatprep.mubr.f32.mxu0 0.0
        %823 = vmatmul.mubr.f32.gmra.mxu0 %v555
        %v824 = vpop.f32.mrf.mxu0
        %v825 = vadd.f32 0.0, %v824
        %v826 = vpop.f32.mrf.mxu0
        %v827 = vadd.f32 0.0, %v826
        %828 = vmatprep.mubr.f32.mxu0 0.0
        %829 = vmatmul.mubr.f32.gmra.mxu0 %v558
        %v830 = vpop.f32.mrf.mxu0
        %v831 = vadd.f32 0.0, %v830
        %v832 = vpop.f32.mrf.mxu0
        %v833 = vadd.f32 0.0, %v832
        %834 = vmatprep.mubr.f32.mxu0 0.0
        %835 = vmatmul.mubr.f32.gmra.mxu0 %v561
        %v836 = vpop.f32.mrf.mxu0
        %v837 = vadd.f32 0.0, %v836
        %v838 = vpop.f32.mrf.mxu0
        %v839 = vadd.f32 0.0, %v838
        %840 = vmatprep.mubr.f32.mxu0 0.0
        %841 = vmatmul.mubr.f32.gmra.mxu0 %v564
        %v842 = vpop.f32.mrf.mxu0
        %v843 = vadd.f32 0.0, %v842
        %v844 = vpop.f32.mrf.mxu0
        %v845 = vadd.f32 0.0, %v844
        %846 = vmatprep.mubr.f32.mxu0 0.0
        %847 = vmatmul.mubr.f32.gmra.mxu0 %v567
        %v848 = vpop.f32.mrf.mxu0
        %v849 = vadd.f32 0.0, %v848
        %v850 = vpop.f32.mrf.mxu0
        %v851 = vadd.f32 0.0, %v850
        %852 = vmatprep.mubr.f32.mxu0 0.0
        %853 = vmatmul.mubr.f32.gmra.mxu0 %v570
        %v854 = vpop.f32.mrf.mxu0
        %v855 = vadd.f32 0.0, %v854
        %v856 = vpop.f32.mrf.mxu0
        %v857 = vadd.f32 0.0, %v856
        %858 = vmatprep.mubr.f32.mxu0 0.0
        %859 = vmatmul.mubr.f32.gmra.mxu0 %v573
        %v860 = vpop.f32.mrf.mxu0
        %v861 = vadd.f32 0.0, %v860
        %v862 = vpop.f32.mrf.mxu0
        %v863 = vadd.f32 0.0, %v862
        %864 = vmatprep.mubr.f32.mxu0 0.0
        %865 = vmatmul.mubr.f32.gmra.mxu0 %v576
        %v866 = vpop.f32.mrf.mxu0
        %v867 = vadd.f32 0.0, %v866
        %v868 = vpop.f32.mrf.mxu0
        %v869 = vadd.f32 0.0, %v868
        %870 = vmatprep.mubr.f32.mxu0 0.0
        %871 = vmatmul.mubr.f32.gmra.mxu0 %v579
        %v872 = vpop.f32.mrf.mxu0
        %v873 = vadd.f32 0.0, %v872
        %v874 = vpop.f32.mrf.mxu0
        %v875 = vadd.f32 0.0, %v874
        %876 = vmatprep.mubr.f32.mxu0 0.0
        %877 = vmatmul.mubr.f32.gmra.mxu0 %v582
        %v878 = vpop.f32.mrf.mxu0
        %v879 = vadd.f32 0.0, %v878
        %v880 = vpop.f32.mrf.mxu0
        %v881 = vadd.f32 0.0, %v880
        %882 = vmatprep.mubr.f32.mxu0 0.0
        %883 = vmatmul.mubr.f32.gmra.mxu0 %v585
        %v884 = vpop.f32.mrf.mxu0
        %v885 = vadd.f32 0.0, %v884
        %v886 = vpop.f32.mrf.mxu0
        %v887 = vadd.f32 0.0, %v886
        %888 = vmatprep.mubr.f32.mxu0 0.0
        %889 = vmatmul.mubr.f32.gmra.mxu0 %v588
        %v890 = vpop.f32.mrf.mxu0
        %v891 = vadd.f32 0.0, %v890
        %v892 = vpop.f32.mrf.mxu0
        %v893 = vadd.f32 0.0, %v892
        %894 = vmatprep.mubr.f32.mxu0 0.0
        %895 = vmatmul.mubr.f32.gmra.mxu0 %v591
        %v896 = vpop.f32.mrf.mxu0
        %v897 = vadd.f32 0.0, %v896
        %v898 = vpop.f32.mrf.mxu0
        %v899 = vadd.f32 0.0, %v898
        %900 = vmatprep.mubr.f32.mxu0 0.0
        %901 = vmatmul.mubr.f32.gmra.mxu0 %v594
        %v902 = vpop.f32.mrf.mxu0
        %v903 = vadd.f32 0.0, %v902
        %v904 = vpop.f32.mrf.mxu0
        %v905 = vadd.f32 0.0, %v904
        %906 = vmatprep.mubr.f32.mxu0 0.0
        %907 = vmatmul.mubr.f32.gmra.mxu0 %v597
        %v908 = vpop.f32.mrf.mxu0
        %v909 = vadd.f32 0.0, %v908
        %v910 = vpop.f32.mrf.mxu0
        %v911 = vadd.f32 0.0, %v910
        %912 = vmatprep.mubr.f32.mxu0 0.0
        %913 = vmatmul.mubr.f32.gmra.mxu0 %v600
        %v914 = vpop.f32.mrf.mxu0
        %v915 = vadd.f32 0.0, %v914
        %v916 = vpop.f32.mrf.mxu0
        %v917 = vadd.f32 0.0, %v916
        %918 = vmatprep.mubr.f32.mxu0 0.0
        %919 = vmatmul.mubr.f32.gmra.mxu0 %v603
        %v920 = vpop.f32.mrf.mxu0
        %v921 = vadd.f32 0.0, %v920
        %v922 = vpop.f32.mrf.mxu0
        %v923 = vadd.f32 0.0, %v922
        %924 = vmatprep.mubr.f32.mxu0 0.0
        %925 = vmatmul.mubr.f32.gmra.mxu0 %v606
        %v926 = vpop.f32.mrf.mxu0
        %v927 = vadd.f32 0.0, %v926
        %v928 = vpop.f32.mrf.mxu0
        %v929 = vadd.f32 0.0, %v928
        %930 = vmatprep.mubr.f32.mxu0 0.0
        %931 = vmatmul.mubr.f32.gmra.mxu0 %v609
        %v932 = vpop.f32.mrf.mxu0
        %v933 = vadd.f32 0.0, %v932
        %v934 = vpop.f32.mrf.mxu0
        %v935 = vadd.f32 0.0, %v934
        %936 = vmatprep.mubr.f32.mxu0 0.0
        %937 = vmatmul.mubr.f32.gmra.mxu0 %v612
        %v938 = vpop.f32.mrf.mxu0
        %v939 = vadd.f32 0.0, %v938
        %v940 = vpop.f32.mrf.mxu0
        %v941 = vadd.f32 0.0, %v940
        %942 = vmatprep.mubr.f32.mxu0 0.0
        %943 = vmatmul.mubr.f32.gmra.mxu0 %v615
        %v944 = vpop.f32.mrf.mxu0
        %v945 = vadd.f32 0.0, %v944
        %v946 = vpop.f32.mrf.mxu0
        %v947 = vadd.f32 0.0, %v946
        %948 = vmatprep.mubr.f32.mxu0 0.0
        %949 = vmatmul.mubr.f32.gmra.mxu0 %v618
        %v950 = vpop.f32.mrf.mxu0
        %v951 = vadd.f32 0.0, %v950
        %v952 = vpop.f32.mrf.mxu0
        %v953 = vadd.f32 0.0, %v952
        %954 = vmatprep.mubr.f32.mxu0 0.0
        %955 = vmatmul.mubr.f32.gmra.mxu0 %v621
        %v956 = vpop.f32.mrf.mxu0
        %v957 = vadd.f32 0.0, %v956
        %v958 = vpop.f32.mrf.mxu0
        %v959 = vadd.f32 0.0, %v958
        %960 = vmatprep.mubr.f32.mxu0 0.0
        %961 = vmatmul.mubr.f32.gmra.mxu0 %v624
        %v962 = vpop.f32.mrf.mxu0
        %v963 = vadd.f32 0.0, %v962
        %v964 = vpop.f32.mrf.mxu0
        %v965 = vadd.f32 0.0, %v964
        %966 = vmatprep.mubr.f32.mxu0 0.0
        %967 = vmatmul.mubr.f32.gmra.mxu0 %v627
        %v968 = vpop.f32.mrf.mxu0
        %v969 = vadd.f32 0.0, %v968
        %v970 = vpop.f32.mrf.mxu0
        %v971 = vadd.f32 0.0, %v970
        %972 = vmatprep.mubr.f32.mxu0 0.0
        %973 = vmatmul.mubr.f32.gmra.mxu0 %v630
        %v974 = vpop.f32.mrf.mxu0
        %v975 = vadd.f32 0.0, %v974
        %v976 = vpop.f32.mrf.mxu0
        %v977 = vadd.f32 0.0, %v976
        %978 = vmatprep.mubr.f32.mxu0 0.0
        %979 = vmatmul.mubr.f32.gmra.mxu0 %v633
        %v980 = vpop.f32.mrf.mxu0
        %v981 = vadd.f32 0.0, %v980
        %v982 = vpop.f32.mrf.mxu0
        %v983 = vadd.f32 0.0, %v982
        %984 = vmatprep.mubr.f32.mxu0 0.0
        %985 = vmatmul.mubr.f32.gmra.mxu0 %v636
        %v986 = vpop.f32.mrf.mxu0
        %v987 = vadd.f32 0.0, %v986
        %v988 = vpop.f32.mrf.mxu0
        %v989 = vadd.f32 0.0, %v988
        %990 = vmatprep.mubr.f32.mxu0 0.0
        %991 = vmatmul.mubr.f32.gmra.mxu0 %v639
        %v992 = vpop.f32.mrf.mxu0
        %v993 = vadd.f32 0.0, %v992
        %v994 = vpop.f32.mrf.mxu0
        %v995 = vadd.f32 0.0, %v994
        %996 = vmatprep.mubr.f32.mxu0 0.0
        %997 = vmatmul.mubr.f32.gmra.mxu0 %v642
        %v998 = vpop.f32.mrf.mxu0
        %v999 = vadd.f32 0.0, %v998
        %v1000 = vpop.f32.mrf.mxu0
        %v1001 = vadd.f32 0.0, %v1000
        %1002 = vmatprep.mubr.f32.mxu0 0.0
        %1003 = vmatmul.mubr.f32.gmra.mxu0 %v645
        %v1004 = vpop.f32.mrf.mxu0
        %v1005 = vadd.f32 0.0, %v1004
        %v1006 = vpop.f32.mrf.mxu0
        %v1007 = vadd.f32 0.0, %v1006
        %1008 = vmatprep.mubr.f32.mxu0 0.0
        %1009 = vmatmul.mubr.f32.gmra.mxu0 %v648
        %v1010 = vpop.f32.mrf.mxu0
        %v1011 = vadd.f32 0.0, %v1010
        %v1012 = vpop.f32.mrf.mxu0
        %v1013 = vadd.f32 0.0, %v1012
        %1014 = vmatprep.mubr.f32.mxu0 0.0
        %1015 = vmatmul.mubr.f32.gmra.mxu0 %v651
        %v1016 = vpop.f32.mrf.mxu0
        %v1017 = vadd.f32 0.0, %v1016
        %v1018 = vpop.f32.mrf.mxu0
        %v1019 = vadd.f32 0.0, %v1018
        %1020 = vmatprep.mubr.f32.mxu0 0.0
        %1021 = vmatmul.mubr.f32.gmra.mxu0 %v654
        %v1022 = vpop.f32.mrf.mxu0
        %v1023 = vadd.f32 0.0, %v1022
        %v1024 = vpop.f32.mrf.mxu0
        %v1025 = vadd.f32 0.0, %v1024
        %1026 = vmatprep.mubr.f32.mxu0 0.0
        %1027 = vmatmul.mubr.f32.gmra.mxu0 %v657
        %v1028 = vpop.f32.mrf.mxu0
        %v1029 = vadd.f32 0.0, %v1028
        %v1030 = vpop.f32.mrf.mxu0
        %v1031 = vadd.f32 0.0, %v1030
        %1032 = vmatprep.mubr.f32.mxu0 0.0
        %1033 = vmatmul.mubr.f32.gmra.mxu0 %v660
        %v1034 = vpop.f32.mrf.mxu0
        %v1035 = vadd.f32 0.0, %v1034
        %v1036 = vpop.f32.mrf.mxu0
        %v1037 = vadd.f32 0.0, %v1036
        %1038 = vmatprep.mubr.f32.mxu0 0.0
        %1039 = vmatmul.mubr.f32.gmra.mxu0 %v663
        %v1040 = vpop.f32.mrf.mxu0
        %v1041 = vadd.f32 0.0, %v1040
        %v1042 = vpop.f32.mrf.mxu0
        %v1043 = vadd.f32 0.0, %v1042
        %1044 = vmatprep.mubr.f32.mxu0 0.0
        %1045 = vmatmul.mubr.f32.gmra.mxu0 %v666
        %v1046 = vpop.f32.mrf.mxu0
        %v1047 = vadd.f32 0.0, %v1046
        %v1048 = vpop.f32.mrf.mxu0
        %v1049 = vadd.f32 0.0, %v1048
        %1050 = vmatprep.mubr.f32.mxu0 0.0
        %1051 = vmatmul.mubr.f32.gmra.mxu0 %v669
        %v1052 = vpop.f32.mrf.mxu0
        %v1053 = vadd.f32 0.0, %v1052
        %v1054 = vpop.f32.mrf.mxu0
        %v1055 = vadd.f32 0.0, %v1054
        %1056 = vmatprep.mubr.f32.mxu0 0.0
        %1057 = vmatmul.mubr.f32.gmra.mxu0 %v672
        %v1058 = vpop.f32.mrf.mxu0
        %v1059 = vadd.f32 0.0, %v1058
        %v1060 = vpop.f32.mrf.mxu0
        %v1061 = vadd.f32 0.0, %v1060
        %1062 = vdwg.mxu0
        %1063 = vmatprep.subr.mxu0 0.0
        %1064 = vmatpush1.msra.mxu0 0.0
        %1065 = vmatprep.subr.mxu0 0.0
        %1066 = vmatpush1.msra.mxu0 0.0
        %1067 = vmatprep.subr.mxu0 0.0
        %1068 = vmatpush1.msra.mxu0 0.0
        %1069 = vmatprep.subr.mxu0 0.0
        %1070 = vmatpush1.msra.mxu0 0.0
        %1071 = vmatprep.subr.mxu0 0.0
        %1072 = vmatpush1.msra.mxu0 0.0
        %1073 = vmatprep.subr.mxu0 0.0
        %1074 = vmatpush1.msra.mxu0 0.0
        %1075 = vmatprep.subr.mxu0 0.0
        %1076 = vmatpush1.msra.mxu0 0.0
        %1077 = vmatprep.subr.mxu0 0.0
        %1078 = vmatpush1.msra.mxu0 0.0
        %1079 = vmatprep.subr.mxu0 0.0
        %1080 = vmatpush1.msra.mxu0 0.0
        %1081 = vmatprep.subr.mxu0 0.0
        %1082 = vmatpush1.msra.mxu0 0.0
        %1083 = vmatprep.subr.mxu0 0.0
        %1084 = vmatpush1.msra.mxu0 0.0
        %1085 = vmatprep.subr.mxu0 0.0
        %1086 = vmatpush1.msra.mxu0 0.0
        %1087 = vmatprep.subr.mxu0 0.0
        %1088 = vmatpush1.msra.mxu0 0.0
        %1089 = vmatprep.subr.mxu0 0.0
        %1090 = vmatpush1.msra.mxu0 0.0
        %1091 = vmatprep.subr.mxu0 %v456
        %1092 = vmatpush1.msra.mxu0 %v455
        %1093 = vmatprep.subr.mxu0 %v452
        %1094 = vmatpush1.msra.mxu0 %v451
        %1095 = vmatprep.subr.mxu0 0.0
        %1096 = vmatpush2.msra.mxu0 0.0
        %1097 = vmatprep.subr.mxu0 0.0
        %1098 = vmatpush2.msra.mxu0 0.0
        %1099 = vmatprep.subr.mxu0 0.0
        %1100 = vmatpush2.msra.mxu0 0.0
        %1101 = vmatprep.subr.mxu0 0.0
        %1102 = vmatpush2.msra.mxu0 0.0
        %1103 = vmatprep.subr.mxu0 0.0
        %1104 = vmatpush2.msra.mxu0 0.0
        %1105 = vmatprep.subr.mxu0 0.0
        %1106 = vmatpush2.msra.mxu0 0.0
        %1107 = vmatprep.subr.mxu0 0.0
        %1108 = vmatpush2.msra.mxu0 0.0
        %1109 = vmatprep.subr.mxu0 0.0
        %1110 = vmatpush2.msra.mxu0 0.0
        %1111 = vmatprep.subr.mxu0 0.0
        %1112 = vmatpush2.msra.mxu0 0.0
        %1113 = vmatprep.subr.mxu0 0.0
        %1114 = vmatpush2.msra.mxu0 0.0
        %1115 = vmatprep.subr.mxu0 0.0
        %1116 = vmatpush2.msra.mxu0 0.0
        %1117 = vmatprep.subr.mxu0 0.0
        %1118 = vmatpush2.msra.mxu0 0.0
        %1119 = vmatprep.subr.mxu0 0.0
        %1120 = vmatpush2.msra.mxu0 0.0
        %1121 = vmatprep.subr.mxu0 0.0
        %1122 = vmatpush2.msra.mxu0 0.0
        %1123 = vmatprep.subr.mxu0 0.0
        %1124 = vmatpush2.msra.mxu0 0.0
        %1125 = vmatprep.subr.mxu0 0.0
        %1126 = vmatpush2.msra.mxu0 0.0
        %1127 = vmatprep.mubr.f32.mxu0 0.0
        %1128 = vmatmul.mubr.f32.gmra.mxu0 %v513
        %v1129 = vpop.f32.mrf.mxu0
        %v1130 = vadd.f32 0.0, %v1129
        %v1131 = vpop.f32.mrf.mxu0
        %v1132 = vadd.f32 0.0, %v1131
        %1133 = vmatprep.mubr.f32.mxu0 0.0
        %1134 = vmatmul.mubr.f32.gmra.mxu0 %v516
        %v1135 = vpop.f32.mrf.mxu0
        %v1136 = vadd.f32 0.0, %v1135
        %v1137 = vpop.f32.mrf.mxu0
        %v1138 = vadd.f32 0.0, %v1137
        %1139 = vmatprep.mubr.f32.mxu0 0.0
        %1140 = vmatmul.mubr.f32.gmra.mxu0 %v519
        %v1141 = vpop.f32.mrf.mxu0
        %v1142 = vadd.f32 0.0, %v1141
        %v1143 = vpop.f32.mrf.mxu0
        %v1144 = vadd.f32 0.0, %v1143
        %1145 = vmatprep.mubr.f32.mxu0 0.0
        %1146 = vmatmul.mubr.f32.gmra.mxu0 %v522
        %v1147 = vpop.f32.mrf.mxu0
        %v1148 = vadd.f32 0.0, %v1147
        %v1149 = vpop.f32.mrf.mxu0
        %v1150 = vadd.f32 0.0, %v1149
        %1151 = vmatprep.mubr.f32.mxu0 0.0
        %1152 = vmatmul.mubr.f32.gmra.mxu0 %v525
        %v1153 = vpop.f32.mrf.mxu0
        %v1154 = vadd.f32 0.0, %v1153
        %v1155 = vpop.f32.mrf.mxu0
        %v1156 = vadd.f32 0.0, %v1155
        %1157 = vmatprep.mubr.f32.mxu0 0.0
        %1158 = vmatmul.mubr.f32.gmra.mxu0 %v528
        %v1159 = vpop.f32.mrf.mxu0
        %v1160 = vadd.f32 0.0, %v1159
        %v1161 = vpop.f32.mrf.mxu0
        %v1162 = vadd.f32 0.0, %v1161
        %1163 = vmatprep.mubr.f32.mxu0 0.0
        %1164 = vmatmul.mubr.f32.gmra.mxu0 %v531
        %v1165 = vpop.f32.mrf.mxu0
        %v1166 = vadd.f32 0.0, %v1165
        %v1167 = vpop.f32.mrf.mxu0
        %v1168 = vadd.f32 0.0, %v1167
        %1169 = vmatprep.mubr.f32.mxu0 0.0
        %1170 = vmatmul.mubr.f32.gmra.mxu0 %v534
        %v1171 = vpop.f32.mrf.mxu0
        %v1172 = vadd.f32 0.0, %v1171
        %v1173 = vpop.f32.mrf.mxu0
        %v1174 = vadd.f32 0.0, %v1173
        %1175 = vmatprep.mubr.f32.mxu0 0.0
        %1176 = vmatmul.mubr.f32.gmra.mxu0 %v537
        %v1177 = vpop.f32.mrf.mxu0
        %v1178 = vadd.f32 0.0, %v1177
        %v1179 = vpop.f32.mrf.mxu0
        %v1180 = vadd.f32 0.0, %v1179
        %1181 = vmatprep.mubr.f32.mxu0 0.0
        %1182 = vmatmul.mubr.f32.gmra.mxu0 %v540
        %v1183 = vpop.f32.mrf.mxu0
        %v1184 = vadd.f32 0.0, %v1183
        %v1185 = vpop.f32.mrf.mxu0
        %v1186 = vadd.f32 0.0, %v1185
        %1187 = vmatprep.mubr.f32.mxu0 0.0
        %1188 = vmatmul.mubr.f32.gmra.mxu0 %v543
        %v1189 = vpop.f32.mrf.mxu0
        %v1190 = vadd.f32 0.0, %v1189
        %v1191 = vpop.f32.mrf.mxu0
        %v1192 = vadd.f32 0.0, %v1191
        %1193 = vmatprep.mubr.f32.mxu0 0.0
        %1194 = vmatmul.mubr.f32.gmra.mxu0 %v546
        %v1195 = vpop.f32.mrf.mxu0
        %v1196 = vadd.f32 0.0, %v1195
        %v1197 = vpop.f32.mrf.mxu0
        %v1198 = vadd.f32 0.0, %v1197
        %1199 = vmatprep.mubr.f32.mxu0 0.0
        %1200 = vmatmul.mubr.f32.gmra.mxu0 %v549
        %v1201 = vpop.f32.mrf.mxu0
        %v1202 = vadd.f32 0.0, %v1201
        %v1203 = vpop.f32.mrf.mxu0
        %v1204 = vadd.f32 0.0, %v1203
        %1205 = vmatprep.mubr.f32.mxu0 0.0
        %1206 = vmatmul.mubr.f32.gmra.mxu0 %v552
        %v1207 = vpop.f32.mrf.mxu0
        %v1208 = vadd.f32 0.0, %v1207
        %v1209 = vpop.f32.mrf.mxu0
        %v1210 = vadd.f32 0.0, %v1209
        %1211 = vmatprep.mubr.f32.mxu0 0.0
        %1212 = vmatmul.mubr.f32.gmra.mxu0 %v555
        %v1213 = vpop.f32.mrf.mxu0
        %v1214 = vadd.f32 0.0, %v1213
        %v1215 = vpop.f32.mrf.mxu0
        %v1216 = vadd.f32 0.0, %v1215
        %1217 = vmatprep.mubr.f32.mxu0 0.0
        %1218 = vmatmul.mubr.f32.gmra.mxu0 %v558
        %v1219 = vpop.f32.mrf.mxu0
        %v1220 = vadd.f32 0.0, %v1219
        %v1221 = vpop.f32.mrf.mxu0
        %v1222 = vadd.f32 0.0, %v1221
        %1223 = vmatprep.mubr.f32.mxu0 0.0
        %1224 = vmatmul.mubr.f32.gmra.mxu0 %v561
        %v1225 = vpop.f32.mrf.mxu0
        %v1226 = vadd.f32 0.0, %v1225
        %v1227 = vpop.f32.mrf.mxu0
        %v1228 = vadd.f32 0.0, %v1227
        %1229 = vmatprep.mubr.f32.mxu0 0.0
        %1230 = vmatmul.mubr.f32.gmra.mxu0 %v564
        %v1231 = vpop.f32.mrf.mxu0
        %v1232 = vadd.f32 0.0, %v1231
        %v1233 = vpop.f32.mrf.mxu0
        %v1234 = vadd.f32 0.0, %v1233
        %1235 = vmatprep.mubr.f32.mxu0 0.0
        %1236 = vmatmul.mubr.f32.gmra.mxu0 %v567
        %v1237 = vpop.f32.mrf.mxu0
        %v1238 = vadd.f32 0.0, %v1237
        %v1239 = vpop.f32.mrf.mxu0
        %v1240 = vadd.f32 0.0, %v1239
        %1241 = vmatprep.mubr.f32.mxu0 0.0
        %1242 = vmatmul.mubr.f32.gmra.mxu0 %v570
        %v1243 = vpop.f32.mrf.mxu0
        %v1244 = vadd.f32 0.0, %v1243
        %v1245 = vpop.f32.mrf.mxu0
        %v1246 = vadd.f32 0.0, %v1245
        %1247 = vmatprep.mubr.f32.mxu0 0.0
        %1248 = vmatmul.mubr.f32.gmra.mxu0 %v573
        %v1249 = vpop.f32.mrf.mxu0
        %v1250 = vadd.f32 0.0, %v1249
        %v1251 = vpop.f32.mrf.mxu0
        %v1252 = vadd.f32 0.0, %v1251
        %1253 = vmatprep.mubr.f32.mxu0 0.0
        %1254 = vmatmul.mubr.f32.gmra.mxu0 %v576
        %v1255 = vpop.f32.mrf.mxu0
        %v1256 = vadd.f32 0.0, %v1255
        %v1257 = vpop.f32.mrf.mxu0
        %v1258 = vadd.f32 0.0, %v1257
        %1259 = vmatprep.mubr.f32.mxu0 0.0
        %1260 = vmatmul.mubr.f32.gmra.mxu0 %v579
        %v1261 = vpop.f32.mrf.mxu0
        %v1262 = vadd.f32 0.0, %v1261
        %v1263 = vpop.f32.mrf.mxu0
        %v1264 = vadd.f32 0.0, %v1263
        %1265 = vmatprep.mubr.f32.mxu0 0.0
        %1266 = vmatmul.mubr.f32.gmra.mxu0 %v582
        %v1267 = vpop.f32.mrf.mxu0
        %v1268 = vadd.f32 0.0, %v1267
        %v1269 = vpop.f32.mrf.mxu0
        %v1270 = vadd.f32 0.0, %v1269
        %1271 = vmatprep.mubr.f32.mxu0 0.0
        %1272 = vmatmul.mubr.f32.gmra.mxu0 %v585
        %v1273 = vpop.f32.mrf.mxu0
        %v1274 = vadd.f32 0.0, %v1273
        %v1275 = vpop.f32.mrf.mxu0
        %v1276 = vadd.f32 0.0, %v1275
        %1277 = vmatprep.mubr.f32.mxu0 0.0
        %1278 = vmatmul.mubr.f32.gmra.mxu0 %v588
        %v1279 = vpop.f32.mrf.mxu0
        %v1280 = vadd.f32 0.0, %v1279
        %v1281 = vpop.f32.mrf.mxu0
        %v1282 = vadd.f32 0.0, %v1281
        %1283 = vmatprep.mubr.f32.mxu0 0.0
        %1284 = vmatmul.mubr.f32.gmra.mxu0 %v591
        %v1285 = vpop.f32.mrf.mxu0
        %v1286 = vadd.f32 0.0, %v1285
        %v1287 = vpop.f32.mrf.mxu0
        %v1288 = vadd.f32 0.0, %v1287
        %1289 = vmatprep.mubr.f32.mxu0 0.0
        %1290 = vmatmul.mubr.f32.gmra.mxu0 %v594
        %v1291 = vpop.f32.mrf.mxu0
        %v1292 = vadd.f32 0.0, %v1291
        %v1293 = vpop.f32.mrf.mxu0
        %v1294 = vadd.f32 0.0, %v1293
        %1295 = vmatprep.mubr.f32.mxu0 0.0
        %1296 = vmatmul.mubr.f32.gmra.mxu0 %v597
        %v1297 = vpop.f32.mrf.mxu0
        %v1298 = vadd.f32 0.0, %v1297
        %v1299 = vpop.f32.mrf.mxu0
        %v1300 = vadd.f32 0.0, %v1299
        %1301 = vmatprep.mubr.f32.mxu0 0.0
        %1302 = vmatmul.mubr.f32.gmra.mxu0 %v600
        %v1303 = vpop.f32.mrf.mxu0
        %v1304 = vadd.f32 0.0, %v1303
        %v1305 = vpop.f32.mrf.mxu0
        %v1306 = vadd.f32 0.0, %v1305
        %1307 = vmatprep.mubr.f32.mxu0 0.0
        %1308 = vmatmul.mubr.f32.gmra.mxu0 %v603
        %v1309 = vpop.f32.mrf.mxu0
        %v1310 = vadd.f32 0.0, %v1309
        %v1311 = vpop.f32.mrf.mxu0
        %v1312 = vadd.f32 0.0, %v1311
        %1313 = vmatprep.mubr.f32.mxu0 0.0
        %1314 = vmatmul.mubr.f32.gmra.mxu0 %v606
        %v1315 = vpop.f32.mrf.mxu0
        %v1316 = vadd.f32 0.0, %v1315
        %v1317 = vpop.f32.mrf.mxu0
        %v1318 = vadd.f32 0.0, %v1317
        %1319 = vmatprep.mubr.f32.mxu0 0.0
        %1320 = vmatmul.mubr.f32.gmra.mxu0 %v609
        %v1321 = vpop.f32.mrf.mxu0
        %v1322 = vadd.f32 0.0, %v1321
        %v1323 = vpop.f32.mrf.mxu0
        %v1324 = vadd.f32 0.0, %v1323
        %1325 = vmatprep.mubr.f32.mxu0 0.0
        %1326 = vmatmul.mubr.f32.gmra.mxu0 %v612
        %v1327 = vpop.f32.mrf.mxu0
        %v1328 = vadd.f32 0.0, %v1327
        %v1329 = vpop.f32.mrf.mxu0
        %v1330 = vadd.f32 0.0, %v1329
        %1331 = vmatprep.mubr.f32.mxu0 0.0
        %1332 = vmatmul.mubr.f32.gmra.mxu0 %v615
        %v1333 = vpop.f32.mrf.mxu0
        %v1334 = vadd.f32 0.0, %v1333
        %v1335 = vpop.f32.mrf.mxu0
        %v1336 = vadd.f32 0.0, %v1335
        %1337 = vmatprep.mubr.f32.mxu0 0.0
        %1338 = vmatmul.mubr.f32.gmra.mxu0 %v618
        %v1339 = vpop.f32.mrf.mxu0
        %v1340 = vadd.f32 0.0, %v1339
        %v1341 = vpop.f32.mrf.mxu0
        %v1342 = vadd.f32 0.0, %v1341
        %1343 = vmatprep.mubr.f32.mxu0 0.0
        %1344 = vmatmul.mubr.f32.gmra.mxu0 %v621
        %v1345 = vpop.f32.mrf.mxu0
        %v1346 = vadd.f32 0.0, %v1345
        %v1347 = vpop.f32.mrf.mxu0
        %v1348 = vadd.f32 0.0, %v1347
        %1349 = vmatprep.mubr.f32.mxu0 0.0
        %1350 = vmatmul.mubr.f32.gmra.mxu0 %v624
        %v1351 = vpop.f32.mrf.mxu0
        %v1352 = vadd.f32 0.0, %v1351
        %v1353 = vpop.f32.mrf.mxu0
        %v1354 = vadd.f32 0.0, %v1353
        %1355 = vmatprep.mubr.f32.mxu0 0.0
        %1356 = vmatmul.mubr.f32.gmra.mxu0 %v627
        %v1357 = vpop.f32.mrf.mxu0
        %v1358 = vadd.f32 0.0, %v1357
        %v1359 = vpop.f32.mrf.mxu0
        %v1360 = vadd.f32 0.0, %v1359
        %1361 = vmatprep.mubr.f32.mxu0 0.0
        %1362 = vmatmul.mubr.f32.gmra.mxu0 %v630
        %v1363 = vpop.f32.mrf.mxu0
        %v1364 = vadd.f32 0.0, %v1363
        %v1365 = vpop.f32.mrf.mxu0
        %v1366 = vadd.f32 0.0, %v1365
        %1367 = vmatprep.mubr.f32.mxu0 0.0
        %1368 = vmatmul.mubr.f32.gmra.mxu0 %v633
        %v1369 = vpop.f32.mrf.mxu0
        %v1370 = vadd.f32 0.0, %v1369
        %v1371 = vpop.f32.mrf.mxu0
        %v1372 = vadd.f32 0.0, %v1371
        %1373 = vmatprep.mubr.f32.mxu0 0.0
        %1374 = vmatmul.mubr.f32.gmra.mxu0 %v636
        %v1375 = vpop.f32.mrf.mxu0
        %v1376 = vadd.f32 0.0, %v1375
        %v1377 = vpop.f32.mrf.mxu0
        %v1378 = vadd.f32 0.0, %v1377
        %1379 = vmatprep.mubr.f32.mxu0 0.0
        %1380 = vmatmul.mubr.f32.gmra.mxu0 %v639
        %v1381 = vpop.f32.mrf.mxu0
        %v1382 = vadd.f32 0.0, %v1381
        %v1383 = vpop.f32.mrf.mxu0
        %v1384 = vadd.f32 0.0, %v1383
        %1385 = vmatprep.mubr.f32.mxu0 0.0
        %1386 = vmatmul.mubr.f32.gmra.mxu0 %v642
        %v1387 = vpop.f32.mrf.mxu0
        %v1388 = vadd.f32 0.0, %v1387
        %v1389 = vpop.f32.mrf.mxu0
        %v1390 = vadd.f32 0.0, %v1389
        %1391 = vmatprep.mubr.f32.mxu0 0.0
        %1392 = vmatmul.mubr.f32.gmra.mxu0 %v645
        %v1393 = vpop.f32.mrf.mxu0
        %v1394 = vadd.f32 0.0, %v1393
        %v1395 = vpop.f32.mrf.mxu0
        %v1396 = vadd.f32 0.0, %v1395
        %1397 = vmatprep.mubr.f32.mxu0 0.0
        %1398 = vmatmul.mubr.f32.gmra.mxu0 %v648
        %v1399 = vpop.f32.mrf.mxu0
        %v1400 = vadd.f32 0.0, %v1399
        %v1401 = vpop.f32.mrf.mxu0
        %v1402 = vadd.f32 0.0, %v1401
        %1403 = vmatprep.mubr.f32.mxu0 0.0
        %1404 = vmatmul.mubr.f32.gmra.mxu0 %v651
        %v1405 = vpop.f32.mrf.mxu0
        %v1406 = vadd.f32 0.0, %v1405
        %v1407 = vpop.f32.mrf.mxu0
        %v1408 = vadd.f32 0.0, %v1407
        %1409 = vmatprep.mubr.f32.mxu0 0.0
        %1410 = vmatmul.mubr.f32.gmra.mxu0 %v654
        %v1411 = vpop.f32.mrf.mxu0
        %v1412 = vadd.f32 0.0, %v1411
        %v1413 = vpop.f32.mrf.mxu0
        %v1414 = vadd.f32 0.0, %v1413
        %1415 = vmatprep.mubr.f32.mxu0 0.0
        %1416 = vmatmul.mubr.f32.gmra.mxu0 %v657
        %v1417 = vpop.f32.mrf.mxu0
        %v1418 = vadd.f32 0.0, %v1417
        %v1419 = vpop.f32.mrf.mxu0
        %v1420 = vadd.f32 0.0, %v1419
        %1421 = vmatprep.mubr.f32.mxu0 0.0
        %1422 = vmatmul.mubr.f32.gmra.mxu0 %v660
        %v1423 = vpop.f32.mrf.mxu0
        %v1424 = vadd.f32 0.0, %v1423
        %v1425 = vpop.f32.mrf.mxu0
        %v1426 = vadd.f32 0.0, %v1425
        %1427 = vmatprep.mubr.f32.mxu0 0.0
        %1428 = vmatmul.mubr.f32.gmra.mxu0 %v663
        %v1429 = vpop.f32.mrf.mxu0
        %v1430 = vadd.f32 0.0, %v1429
        %v1431 = vpop.f32.mrf.mxu0
        %v1432 = vadd.f32 0.0, %v1431
        %1433 = vmatprep.mubr.f32.mxu0 0.0
        %1434 = vmatmul.mubr.f32.gmra.mxu0 %v666
        %v1435 = vpop.f32.mrf.mxu0
        %v1436 = vadd.f32 0.0, %v1435
        %v1437 = vpop.f32.mrf.mxu0
        %v1438 = vadd.f32 0.0, %v1437
        %1439 = vmatprep.mubr.f32.mxu0 0.0
        %1440 = vmatmul.mubr.f32.gmra.mxu0 %v669
        %v1441 = vpop.f32.mrf.mxu0
        %v1442 = vadd.f32 0.0, %v1441
        %v1443 = vpop.f32.mrf.mxu0
        %v1444 = vadd.f32 0.0, %v1443
        %1445 = vmatprep.mubr.f32.mxu0 0.0
        %1446 = vmatmul.mubr.f32.gmra.mxu0 %v672
        %v1447 = vpop.f32.mrf.mxu0
        %v1448 = vadd.f32 0.0, %v1447
        %v1449 = vpop.f32.mrf.mxu0
        %v1450 = vadd.f32 0.0, %v1449
        %1451 = vdwg.mxu0
        %v1452 = vld [vmem:[%s4] sm:$0xf]
        %1453 = vrot.lane.b32.xlu0 %v741, 73
        %v1454 = vpop.permute.xlu0 %1453
        %1455 = vrot.lane.b32.xlu0 %v747, 73
        %v1456 = vpop.permute.xlu0 %1455
        %1457 = vrot.lane.b32.xlu0 %v743, 73
        %v1458 = vpop.permute.xlu0 %1457
        %1459 = vrot.lane.b32.xlu0 %v749, 73
        %v1460 = vpop.permute.xlu0 %1459
        %1461 = vrot.lane.b32.xlu0 %v1130, 73
        %v1462 = vpop.permute.xlu0 %1461
        %1463 = vrot.lane.b32.xlu0 %v1136, 73
        %v1464 = vpop.permute.xlu0 %1463
        %1465 = vrot.lane.b32.xlu0 %v1132, 73
        %v1466 = vpop.permute.xlu0 %1465
        %1467 = vrot.lane.b32.xlu0 %v1138, 73
        %v1468 = vpop.permute.xlu0 %1467
        %v1469 = vlaneseq
        %v1470 = vand.u32 %v1469, 127
        %vm1471 = vcmp.lt.s32.totalorder %v1470, 73
        %v1472 = vsel %vm1471, %v1462, %v1466
        %v1473 = vsel %vm1471, %v1464, %v1468
        %v1474 = vsel %vm1471, %v1458, %v1462
        %v1475 = vsel %vm1471, %v1460, %v1464
        %v1476 = vsel %vm1471, %v1454, %v1458
        %v1477 = vsel %vm1471, %v1456, %v1460
        %v1478 = vsel %vm1471, %v1466, %v1454
        %v1479 = vsel %vm1471, %v1468, %v1456
        %v1480 = vand.u32 %v1452, 1
        %vm1481 = vcmp.ne.s32.totalorder %v1480, 0
        %v1482 = vsel %vm1481, 1, 0
        %v1483 = vcvt.s32.f32 %v1482
        %v1485 = vlaneseq
        %v1486 = vshrl.u32 %v1485, 7
        %v1487 = vsub.s32 0, %v1486
        %v1488 = vrot.slane %v1483, %v1487
        %v1489 = vlaneseq
        %v1490 = vshrl.u32 %v1489, 7
        %v1491 = vsub.s32 1, %v1490
        %v1492 = vrot.slane %v1483, %v1491
        %v1493 = vlaneseq
        %v1494 = vshrl.u32 %v1493, 7
        %v1495 = vsub.s32 2, %v1494
        %v1496 = vrot.slane %v1483, %v1495
        %v1497 = vlaneseq
        %v1498 = vshrl.u32 %v1497, 7
        %v1499 = vsub.s32 3, %v1498
        %v1500 = vrot.slane %v1483, %v1499
        %v1505 = vmul.f32 %v1478, %v1488
        %v1506 = vmul.f32 %v1476, %v1492
        %v1507 = vmul.f32 %v1474, %v1496
        %v1508 = vmul.f32 %v1472, %v1500
        %v1509 = vmul.f32 %v1479, %v1488
        %v1510 = vmul.f32 %v1477, %v1492
        %v1511 = vmul.f32 %v1475, %v1496
        %v1512 = vmul.f32 %v1473, %v1500
        %1513 = vrot.lane.b32.xlu0 %v753, 72
        %v1514 = vpop.permute.xlu0 %1513
        %1515 = vrot.lane.b32.xlu0 %v759, 72
        %v1516 = vpop.permute.xlu0 %1515
        %1517 = vrot.lane.b32.xlu0 %v755, 72
        %v1518 = vpop.permute.xlu0 %1517
        %1519 = vrot.lane.b32.xlu0 %v761, 72
        %v1520 = vpop.permute.xlu0 %1519
        %1521 = vrot.lane.b32.xlu0 %v1142, 72
        %v1522 = vpop.permute.xlu0 %1521
        %1523 = vrot.lane.b32.xlu0 %v1148, 72
        %v1524 = vpop.permute.xlu0 %1523
        %1525 = vrot.lane.b32.xlu0 %v1144, 72
        %v1526 = vpop.permute.xlu0 %1525
        %1527 = vrot.lane.b32.xlu0 %v1150, 72
        %v1528 = vpop.permute.xlu0 %1527
        %vm1529 = vcmp.lt.s32.totalorder %v1470, 72
        %v1530 = vsel %vm1529, %v1522, %v1526
        %v1531 = vsel %vm1529, %v1524, %v1528
        %v1532 = vsel %vm1529, %v1518, %v1522
        %v1533 = vsel %vm1529, %v1520, %v1524
        %v1534 = vsel %vm1529, %v1514, %v1518
        %v1535 = vsel %vm1529, %v1516, %v1520
        %v1536 = vsel %vm1529, %v1526, %v1514
        %v1537 = vsel %vm1529, %v1528, %v1516
        %v1538 = vand.u32 %v1452, 2
        %vm1539 = vcmp.ne.s32.totalorder %v1538, 0
        %v1540 = vsel %vm1539, 1, 0
        %v1541 = vcvt.s32.f32 %v1540
        %v1543 = vlaneseq
        %v1544 = vshrl.u32 %v1543, 7
        %v1545 = vsub.s32 0, %v1544
        %v1546 = vrot.slane %v1541, %v1545
        %v1547 = vlaneseq
        %v1548 = vshrl.u32 %v1547, 7
        %v1549 = vsub.s32 1, %v1548
        %v1550 = vrot.slane %v1541, %v1549
        %v1551 = vlaneseq
        %v1552 = vshrl.u32 %v1551, 7
        %v1553 = vsub.s32 2, %v1552
        %v1554 = vrot.slane %v1541, %v1553
        %v1555 = vlaneseq
        %v1556 = vshrl.u32 %v1555, 7
        %v1557 = vsub.s32 3, %v1556
        %v1558 = vrot.slane %v1541, %v1557
        %v1563 = vmul.f32 %v1536, %v1546
        %v1564 = vmul.f32 %v1534, %v1550
        %v1565 = vmul.f32 %v1532, %v1554
        %v1566 = vmul.f32 %v1530, %v1558
        %v1567 = vmul.f32 %v1537, %v1546
        %v1568 = vmul.f32 %v1535, %v1550
        %v1569 = vmul.f32 %v1533, %v1554
        %v1570 = vmul.f32 %v1531, %v1558
        %v1571 = vadd.f32 %v1505, %v1563
        %v1572 = vadd.f32 %v1506, %v1564
        %v1573 = vadd.f32 %v1507, %v1565
        %v1574 = vadd.f32 %v1508, %v1566
        %v1575 = vadd.f32 %v1509, %v1567
        %v1576 = vadd.f32 %v1510, %v1568
        %v1577 = vadd.f32 %v1511, %v1569
        %v1578 = vadd.f32 %v1512, %v1570
        %1579 = vrot.lane.b32.xlu0 %v765, 71
        %v1580 = vpop.permute.xlu0 %1579
        %1581 = vrot.lane.b32.xlu0 %v771, 71
        %v1582 = vpop.permute.xlu0 %1581
        %1583 = vrot.lane.b32.xlu0 %v767, 71
        %v1584 = vpop.permute.xlu0 %1583
        %1585 = vrot.lane.b32.xlu0 %v773, 71
        %v1586 = vpop.permute.xlu0 %1585
        %1587 = vrot.lane.b32.xlu0 %v1154, 71
        %v1588 = vpop.permute.xlu0 %1587
        %1589 = vrot.lane.b32.xlu0 %v1160, 71
        %v1590 = vpop.permute.xlu0 %1589
        %1591 = vrot.lane.b32.xlu0 %v1156, 71
        %v1592 = vpop.permute.xlu0 %1591
        %1593 = vrot.lane.b32.xlu0 %v1162, 71
        %v1594 = vpop.permute.xlu0 %1593
        %vm1595 = vcmp.lt.s32.totalorder %v1470, 71
        %v1596 = vsel %vm1595, %v1588, %v1592
        %v1597 = vsel %vm1595, %v1590, %v1594
        %v1598 = vsel %vm1595, %v1584, %v1588
        %v1599 = vsel %vm1595, %v1586, %v1590
        %v1600 = vsel %vm1595, %v1580, %v1584
        %v1601 = vsel %vm1595, %v1582, %v1586
        %v1602 = vsel %vm1595, %v1592, %v1580
        %v1603 = vsel %vm1595, %v1594, %v1582
        %v1604 = vand.u32 %v1452, 4
        %vm1605 = vcmp.ne.s32.totalorder %v1604, 0
        %v1606 = vsel %vm1605, 1, 0
        %v1607 = vcvt.s32.f32 %v1606
        %v1609 = vlaneseq
        %v1610 = vshrl.u32 %v1609, 7
        %v1611 = vsub.s32 0, %v1610
        %v1612 = vrot.slane %v1607, %v1611
        %v1613 = vlaneseq
        %v1614 = vshrl.u32 %v1613, 7
        %v1615 = vsub.s32 1, %v1614
        %v1616 = vrot.slane %v1607, %v1615
        %v1617 = vlaneseq
        %v1618 = vshrl.u32 %v1617, 7
        %v1619 = vsub.s32 2, %v1618
        %v1620 = vrot.slane %v1607, %v1619
        %v1621 = vlaneseq
        %v1622 = vshrl.u32 %v1621, 7
        %v1623 = vsub.s32 3, %v1622
        %v1624 = vrot.slane %v1607, %v1623
        %v1629 = vmul.f32 %v1602, %v1612
        %v1630 = vmul.f32 %v1600, %v1616
        %v1631 = vmul.f32 %v1598, %v1620
        %v1632 = vmul.f32 %v1596, %v1624
        %v1633 = vmul.f32 %v1603, %v1612
        %v1634 = vmul.f32 %v1601, %v1616
        %v1635 = vmul.f32 %v1599, %v1620
        %v1636 = vmul.f32 %v1597, %v1624
        %v1637 = vadd.f32 %v1571, %v1629
        %v1638 = vadd.f32 %v1572, %v1630
        %v1639 = vadd.f32 %v1573, %v1631
        %v1640 = vadd.f32 %v1574, %v1632
        %v1641 = vadd.f32 %v1575, %v1633
        %v1642 = vadd.f32 %v1576, %v1634
        %v1643 = vadd.f32 %v1577, %v1635
        %v1644 = vadd.f32 %v1578, %v1636
        %1645 = vrot.lane.b32.xlu0 %v777, 65
        %v1646 = vpop.permute.xlu0 %1645
        %1647 = vrot.lane.b32.xlu0 %v783, 65
        %v1648 = vpop.permute.xlu0 %1647
        %1649 = vrot.lane.b32.xlu0 %v779, 65
        %v1650 = vpop.permute.xlu0 %1649
        %1651 = vrot.lane.b32.xlu0 %v785, 65
        %v1652 = vpop.permute.xlu0 %1651
        %1653 = vrot.lane.b32.xlu0 %v1166, 65
        %v1654 = vpop.permute.xlu0 %1653
        %1655 = vrot.lane.b32.xlu0 %v1172, 65
        %v1656 = vpop.permute.xlu0 %1655
        %1657 = vrot.lane.b32.xlu0 %v1168, 65
        %v1658 = vpop.permute.xlu0 %1657
        %1659 = vrot.lane.b32.xlu0 %v1174, 65
        %v1660 = vpop.permute.xlu0 %1659
        %vm1661 = vcmp.lt.s32.totalorder %v1470, 65
        %v1662 = vsel %vm1661, %v1654, %v1658
        %v1663 = vsel %vm1661, %v1656, %v1660
        %v1664 = vsel %vm1661, %v1650, %v1654
        %v1665 = vsel %vm1661, %v1652, %v1656
        %v1666 = vsel %vm1661, %v1646, %v1650
        %v1667 = vsel %vm1661, %v1648, %v1652
        %v1668 = vsel %vm1661, %v1658, %v1646
        %v1669 = vsel %vm1661, %v1660, %v1648
        %v1670 = vand.u32 %v1452, 8
        %vm1671 = vcmp.ne.s32.totalorder %v1670, 0
        %v1672 = vsel %vm1671, 1, 0
        %v1673 = vcvt.s32.f32 %v1672
        %v1675 = vlaneseq
        %v1676 = vshrl.u32 %v1675, 7
        %v1677 = vsub.s32 0, %v1676
        %v1678 = vrot.slane %v1673, %v1677
        %v1679 = vlaneseq
        %v1680 = vshrl.u32 %v1679, 7
        %v1681 = vsub.s32 1, %v1680
        %v1682 = vrot.slane %v1673, %v1681
        %v1683 = vlaneseq
        %v1684 = vshrl.u32 %v1683, 7
        %v1685 = vsub.s32 2, %v1684
        %v1686 = vrot.slane %v1673, %v1685
        %v1687 = vlaneseq
        %v1688 = vshrl.u32 %v1687, 7
        %v1689 = vsub.s32 3, %v1688
        %v1690 = vrot.slane %v1673, %v1689
        %v1695 = vmul.f32 %v1668, %v1678
        %v1696 = vmul.f32 %v1666, %v1682
        %v1697 = vmul.f32 %v1664, %v1686
        %v1698 = vmul.f32 %v1662, %v1690
        %v1699 = vmul.f32 %v1669, %v1678
        %v1700 = vmul.f32 %v1667, %v1682
        %v1701 = vmul.f32 %v1665, %v1686
        %v1702 = vmul.f32 %v1663, %v1690
        %v1703 = vadd.f32 %v1637, %v1695
        %v1704 = vadd.f32 %v1638, %v1696
        %v1705 = vadd.f32 %v1639, %v1697
        %v1706 = vadd.f32 %v1640, %v1698
        %v1707 = vadd.f32 %v1641, %v1699
        %v1708 = vadd.f32 %v1642, %v1700
        %v1709 = vadd.f32 %v1643, %v1701
        %v1710 = vadd.f32 %v1644, %v1702
        %1711 = vrot.lane.b32.xlu0 %v789, 64
        %v1712 = vpop.permute.xlu0 %1711
        %1713 = vrot.lane.b32.xlu0 %v795, 64
        %v1714 = vpop.permute.xlu0 %1713
        %1715 = vrot.lane.b32.xlu0 %v791, 64
        %v1716 = vpop.permute.xlu0 %1715
        %1717 = vrot.lane.b32.xlu0 %v797, 64
        %v1718 = vpop.permute.xlu0 %1717
        %1719 = vrot.lane.b32.xlu0 %v1178, 64
        %v1720 = vpop.permute.xlu0 %1719
        %1721 = vrot.lane.b32.xlu0 %v1184, 64
        %v1722 = vpop.permute.xlu0 %1721
        %1723 = vrot.lane.b32.xlu0 %v1180, 64
        %v1724 = vpop.permute.xlu0 %1723
        %1725 = vrot.lane.b32.xlu0 %v1186, 64
        %v1726 = vpop.permute.xlu0 %1725
        %vm1727 = vcmp.lt.s32.totalorder %v1470, 64
        %v1728 = vsel %vm1727, %v1720, %v1724
        %v1729 = vsel %vm1727, %v1722, %v1726
        %v1730 = vsel %vm1727, %v1716, %v1720
        %v1731 = vsel %vm1727, %v1718, %v1722
        %v1732 = vsel %vm1727, %v1712, %v1716
        %v1733 = vsel %vm1727, %v1714, %v1718
        %v1734 = vsel %vm1727, %v1724, %v1712
        %v1735 = vsel %vm1727, %v1726, %v1714
        %v1736 = vand.u32 %v1452, 16
        %vm1737 = vcmp.ne.s32.totalorder %v1736, 0
        %v1738 = vsel %vm1737, 1, 0
        %v1739 = vcvt.s32.f32 %v1738
        %v1741 = vlaneseq
        %v1742 = vshrl.u32 %v1741, 7
        %v1743 = vsub.s32 0, %v1742
        %v1744 = vrot.slane %v1739, %v1743
        %v1745 = vlaneseq
        %v1746 = vshrl.u32 %v1745, 7
        %v1747 = vsub.s32 1, %v1746
        %v1748 = vrot.slane %v1739, %v1747
        %v1749 = vlaneseq
        %v1750 = vshrl.u32 %v1749, 7
        %v1751 = vsub.s32 2, %v1750
        %v1752 = vrot.slane %v1739, %v1751
        %v1753 = vlaneseq
        %v1754 = vshrl.u32 %v1753, 7
        %v1755 = vsub.s32 3, %v1754
        %v1756 = vrot.slane %v1739, %v1755
        %v1761 = vmul.f32 %v1734, %v1744
        %v1762 = vmul.f32 %v1732, %v1748
        %v1763 = vmul.f32 %v1730, %v1752
        %v1764 = vmul.f32 %v1728, %v1756
        %v1765 = vmul.f32 %v1735, %v1744
        %v1766 = vmul.f32 %v1733, %v1748
        %v1767 = vmul.f32 %v1731, %v1752
        %v1768 = vmul.f32 %v1729, %v1756
        %v1769 = vadd.f32 %v1703, %v1761
        %v1770 = vadd.f32 %v1704, %v1762
        %v1771 = vadd.f32 %v1705, %v1763
        %v1772 = vadd.f32 %v1706, %v1764
        %v1773 = vadd.f32 %v1707, %v1765
        %v1774 = vadd.f32 %v1708, %v1766
        %v1775 = vadd.f32 %v1709, %v1767
        %v1776 = vadd.f32 %v1710, %v1768
        %1777 = vrot.lane.b32.xlu0 %v801, 63
        %v1778 = vpop.permute.xlu0 %1777
        %1779 = vrot.lane.b32.xlu0 %v807, 63
        %v1780 = vpop.permute.xlu0 %1779
        %1781 = vrot.lane.b32.xlu0 %v803, 63
        %v1782 = vpop.permute.xlu0 %1781
        %1783 = vrot.lane.b32.xlu0 %v809, 63
        %v1784 = vpop.permute.xlu0 %1783
        %1785 = vrot.lane.b32.xlu0 %v1190, 63
        %v1786 = vpop.permute.xlu0 %1785
        %1787 = vrot.lane.b32.xlu0 %v1196, 63
        %v1788 = vpop.permute.xlu0 %1787
        %1789 = vrot.lane.b32.xlu0 %v1192, 63
        %v1790 = vpop.permute.xlu0 %1789
        %1791 = vrot.lane.b32.xlu0 %v1198, 63
        %v1792 = vpop.permute.xlu0 %1791
        %vm1793 = vcmp.lt.s32.totalorder %v1470, 63
        %v1794 = vsel %vm1793, %v1786, %v1790
        %v1795 = vsel %vm1793, %v1788, %v1792
        %v1796 = vsel %vm1793, %v1782, %v1786
        %v1797 = vsel %vm1793, %v1784, %v1788
        %v1798 = vsel %vm1793, %v1778, %v1782
        %v1799 = vsel %vm1793, %v1780, %v1784
        %v1800 = vsel %vm1793, %v1790, %v1778
        %v1801 = vsel %vm1793, %v1792, %v1780
        %v1802 = vand.u32 %v1452, 32
        %vm1803 = vcmp.ne.s32.totalorder %v1802, 0
        %v1804 = vsel %vm1803, 1, 0
        %v1805 = vcvt.s32.f32 %v1804
        %v1807 = vlaneseq
        %v1808 = vshrl.u32 %v1807, 7
        %v1809 = vsub.s32 0, %v1808
        %v1810 = vrot.slane %v1805, %v1809
        %v1811 = vlaneseq
        %v1812 = vshrl.u32 %v1811, 7
        %v1813 = vsub.s32 1, %v1812
        %v1814 = vrot.slane %v1805, %v1813
        %v1815 = vlaneseq
        %v1816 = vshrl.u32 %v1815, 7
        %v1817 = vsub.s32 2, %v1816
        %v1818 = vrot.slane %v1805, %v1817
        %v1819 = vlaneseq
        %v1820 = vshrl.u32 %v1819, 7
        %v1821 = vsub.s32 3, %v1820
        %v1822 = vrot.slane %v1805, %v1821
        %v1827 = vmul.f32 %v1800, %v1810
        %v1828 = vmul.f32 %v1798, %v1814
        %v1829 = vmul.f32 %v1796, %v1818
        %v1830 = vmul.f32 %v1794, %v1822
        %v1831 = vmul.f32 %v1801, %v1810
        %v1832 = vmul.f32 %v1799, %v1814
        %v1833 = vmul.f32 %v1797, %v1818
        %v1834 = vmul.f32 %v1795, %v1822
        %v1835 = vadd.f32 %v1769, %v1827
        %v1836 = vadd.f32 %v1770, %v1828
        %v1837 = vadd.f32 %v1771, %v1829
        %v1838 = vadd.f32 %v1772, %v1830
        %v1839 = vadd.f32 %v1773, %v1831
        %v1840 = vadd.f32 %v1774, %v1832
        %v1841 = vadd.f32 %v1775, %v1833
        %v1842 = vadd.f32 %v1776, %v1834
        %1843 = vrot.lane.b32.xlu0 %v813, 57
        %v1844 = vpop.permute.xlu0 %1843
        %1845 = vrot.lane.b32.xlu0 %v819, 57
        %v1846 = vpop.permute.xlu0 %1845
        %1847 = vrot.lane.b32.xlu0 %v815, 57
        %v1848 = vpop.permute.xlu0 %1847
        %1849 = vrot.lane.b32.xlu0 %v821, 57
        %v1850 = vpop.permute.xlu0 %1849
        %1851 = vrot.lane.b32.xlu0 %v1202, 57
        %v1852 = vpop.permute.xlu0 %1851
        %1853 = vrot.lane.b32.xlu0 %v1208, 57
        %v1854 = vpop.permute.xlu0 %1853
        %1855 = vrot.lane.b32.xlu0 %v1204, 57
        %v1856 = vpop.permute.xlu0 %1855
        %1857 = vrot.lane.b32.xlu0 %v1210, 57
        %v1858 = vpop.permute.xlu0 %1857
        %vm1859 = vcmp.lt.s32.totalorder %v1470, 57
        %v1860 = vsel %vm1859, %v1852, %v1856
        %v1861 = vsel %vm1859, %v1854, %v1858
        %v1862 = vsel %vm1859, %v1848, %v1852
        %v1863 = vsel %vm1859, %v1850, %v1854
        %v1864 = vsel %vm1859, %v1844, %v1848
        %v1865 = vsel %vm1859, %v1846, %v1850
        %v1866 = vsel %vm1859, %v1856, %v1844
        %v1867 = vsel %vm1859, %v1858, %v1846
        %v1868 = vand.u32 %v1452, 64
        %vm1869 = vcmp.ne.s32.totalorder %v1868, 0
        %v1870 = vsel %vm1869, 1, 0
        %v1871 = vcvt.s32.f32 %v1870
        %v1873 = vlaneseq
        %v1874 = vshrl.u32 %v1873, 7
        %v1875 = vsub.s32 0, %v1874
        %v1876 = vrot.slane %v1871, %v1875
        %v1877 = vlaneseq
        %v1878 = vshrl.u32 %v1877, 7
        %v1879 = vsub.s32 1, %v1878
        %v1880 = vrot.slane %v1871, %v1879
        %v1881 = vlaneseq
        %v1882 = vshrl.u32 %v1881, 7
        %v1883 = vsub.s32 2, %v1882
        %v1884 = vrot.slane %v1871, %v1883
        %v1885 = vlaneseq
        %v1886 = vshrl.u32 %v1885, 7
        %v1887 = vsub.s32 3, %v1886
        %v1888 = vrot.slane %v1871, %v1887
        %v1893 = vmul.f32 %v1866, %v1876
        %v1894 = vmul.f32 %v1864, %v1880
        %v1895 = vmul.f32 %v1862, %v1884
        %v1896 = vmul.f32 %v1860, %v1888
        %v1897 = vmul.f32 %v1867, %v1876
        %v1898 = vmul.f32 %v1865, %v1880
        %v1899 = vmul.f32 %v1863, %v1884
        %v1900 = vmul.f32 %v1861, %v1888
        %v1901 = vadd.f32 %v1835, %v1893
        %v1902 = vadd.f32 %v1836, %v1894
        %v1903 = vadd.f32 %v1837, %v1895
        %v1904 = vadd.f32 %v1838, %v1896
        %v1905 = vadd.f32 %v1839, %v1897
        %v1906 = vadd.f32 %v1840, %v1898
        %v1907 = vadd.f32 %v1841, %v1899
        %v1908 = vadd.f32 %v1842, %v1900
        %1909 = vrot.lane.b32.xlu0 %v825, 56
        %v1910 = vpop.permute.xlu0 %1909
        %1911 = vrot.lane.b32.xlu0 %v831, 56
        %v1912 = vpop.permute.xlu0 %1911
        %1913 = vrot.lane.b32.xlu0 %v827, 56
        %v1914 = vpop.permute.xlu0 %1913
        %1915 = vrot.lane.b32.xlu0 %v833, 56
        %v1916 = vpop.permute.xlu0 %1915
        %1917 = vrot.lane.b32.xlu0 %v1214, 56
        %v1918 = vpop.permute.xlu0 %1917
        %1919 = vrot.lane.b32.xlu0 %v1220, 56
        %v1920 = vpop.permute.xlu0 %1919
        %1921 = vrot.lane.b32.xlu0 %v1216, 56
        %v1922 = vpop.permute.xlu0 %1921
        %1923 = vrot.lane.b32.xlu0 %v1222, 56
        %v1924 = vpop.permute.xlu0 %1923
        %vm1925 = vcmp.lt.s32.totalorder %v1470, 56
        %v1926 = vsel %vm1925, %v1918, %v1922
        %v1927 = vsel %vm1925, %v1920, %v1924
        %v1928 = vsel %vm1925, %v1914, %v1918
        %v1929 = vsel %vm1925, %v1916, %v1920
        %v1930 = vsel %vm1925, %v1910, %v1914
        %v1931 = vsel %vm1925, %v1912, %v1916
        %v1932 = vsel %vm1925, %v1922, %v1910
        %v1933 = vsel %vm1925, %v1924, %v1912
        %v1934 = vand.u32 %v1452, 128
        %vm1935 = vcmp.ne.s32.totalorder %v1934, 0
        %v1936 = vsel %vm1935, 1, 0
        %v1937 = vcvt.s32.f32 %v1936
        %v1939 = vlaneseq
        %v1940 = vshrl.u32 %v1939, 7
        %v1941 = vsub.s32 0, %v1940
        %v1942 = vrot.slane %v1937, %v1941
        %v1943 = vlaneseq
        %v1944 = vshrl.u32 %v1943, 7
        %v1945 = vsub.s32 1, %v1944
        %v1946 = vrot.slane %v1937, %v1945
        %v1947 = vlaneseq
        %v1948 = vshrl.u32 %v1947, 7
        %v1949 = vsub.s32 2, %v1948
        %v1950 = vrot.slane %v1937, %v1949
        %v1951 = vlaneseq
        %v1952 = vshrl.u32 %v1951, 7
        %v1953 = vsub.s32 3, %v1952
        %v1954 = vrot.slane %v1937, %v1953
        %v1959 = vmul.f32 %v1932, %v1942
        %v1960 = vmul.f32 %v1930, %v1946
        %v1961 = vmul.f32 %v1928, %v1950
        %v1962 = vmul.f32 %v1926, %v1954
        %v1963 = vmul.f32 %v1933, %v1942
        %v1964 = vmul.f32 %v1931, %v1946
        %v1965 = vmul.f32 %v1929, %v1950
        %v1966 = vmul.f32 %v1927, %v1954
        %v1967 = vadd.f32 %v1901, %v1959
        %v1968 = vadd.f32 %v1902, %v1960
        %v1969 = vadd.f32 %v1903, %v1961
        %v1970 = vadd.f32 %v1904, %v1962
        %v1971 = vadd.f32 %v1905, %v1963
        %v1972 = vadd.f32 %v1906, %v1964
        %v1973 = vadd.f32 %v1907, %v1965
        %v1974 = vadd.f32 %v1908, %v1966
        %1975 = vrot.lane.b32.xlu0 %v837, 55
        %v1976 = vpop.permute.xlu0 %1975
        %1977 = vrot.lane.b32.xlu0 %v843, 55
        %v1978 = vpop.permute.xlu0 %1977
        %1979 = vrot.lane.b32.xlu0 %v839, 55
        %v1980 = vpop.permute.xlu0 %1979
        %1981 = vrot.lane.b32.xlu0 %v845, 55
        %v1982 = vpop.permute.xlu0 %1981
        %1983 = vrot.lane.b32.xlu0 %v1226, 55
        %v1984 = vpop.permute.xlu0 %1983
        %1985 = vrot.lane.b32.xlu0 %v1232, 55
        %v1986 = vpop.permute.xlu0 %1985
        %1987 = vrot.lane.b32.xlu0 %v1228, 55
        %v1988 = vpop.permute.xlu0 %1987
        %1989 = vrot.lane.b32.xlu0 %v1234, 55
        %v1990 = vpop.permute.xlu0 %1989
        %vm1991 = vcmp.lt.s32.totalorder %v1470, 55
        %v1992 = vsel %vm1991, %v1984, %v1988
        %v1993 = vsel %vm1991, %v1986, %v1990
        %v1994 = vsel %vm1991, %v1980, %v1984
        %v1995 = vsel %vm1991, %v1982, %v1986
        %v1996 = vsel %vm1991, %v1976, %v1980
        %v1997 = vsel %vm1991, %v1978, %v1982
        %v1998 = vsel %vm1991, %v1988, %v1976
        %v1999 = vsel %vm1991, %v1990, %v1978
        %v2000 = vand.u32 %v1452, 256
        %vm2001 = vcmp.ne.s32.totalorder %v2000, 0
        %v2002 = vsel %vm2001, 1, 0
        %v2003 = vcvt.s32.f32 %v2002
        %v2005 = vlaneseq
        %v2006 = vshrl.u32 %v2005, 7
        %v2007 = vsub.s32 0, %v2006
        %v2008 = vrot.slane %v2003, %v2007
        %v2009 = vlaneseq
        %v2010 = vshrl.u32 %v2009, 7
        %v2011 = vsub.s32 1, %v2010
        %v2012 = vrot.slane %v2003, %v2011
        %v2013 = vlaneseq
        %v2014 = vshrl.u32 %v2013, 7
        %v2015 = vsub.s32 2, %v2014
        %v2016 = vrot.slane %v2003, %v2015
        %v2017 = vlaneseq
        %v2018 = vshrl.u32 %v2017, 7
        %v2019 = vsub.s32 3, %v2018
        %v2020 = vrot.slane %v2003, %v2019
        %v2025 = vmul.f32 %v1998, %v2008
        %v2026 = vmul.f32 %v1996, %v2012
        %v2027 = vmul.f32 %v1994, %v2016
        %v2028 = vmul.f32 %v1992, %v2020
        %v2029 = vmul.f32 %v1999, %v2008
        %v2030 = vmul.f32 %v1997, %v2012
        %v2031 = vmul.f32 %v1995, %v2016
        %v2032 = vmul.f32 %v1993, %v2020
        %v2033 = vadd.f32 %v1967, %v2025
        %v2034 = vadd.f32 %v1968, %v2026
        %v2035 = vadd.f32 %v1969, %v2027
        %v2036 = vadd.f32 %v1970, %v2028
        %v2037 = vadd.f32 %v1971, %v2029
        %v2038 = vadd.f32 %v1972, %v2030
        %v2039 = vadd.f32 %v1973, %v2031
        %v2040 = vadd.f32 %v1974, %v2032
        %2041 = vrot.lane.b32.xlu0 %v849, 9
        %v2042 = vpop.permute.xlu0 %2041
        %2043 = vrot.lane.b32.xlu0 %v855, 9
        %v2044 = vpop.permute.xlu0 %2043
        %2045 = vrot.lane.b32.xlu0 %v851, 9
        %v2046 = vpop.permute.xlu0 %2045
        %2047 = vrot.lane.b32.xlu0 %v857, 9
        %v2048 = vpop.permute.xlu0 %2047
        %2049 = vrot.lane.b32.xlu0 %v1238, 9
        %v2050 = vpop.permute.xlu0 %2049
        %2051 = vrot.lane.b32.xlu0 %v1244, 9
        %v2052 = vpop.permute.xlu0 %2051
        %2053 = vrot.lane.b32.xlu0 %v1240, 9
        %v2054 = vpop.permute.xlu0 %2053
        %2055 = vrot.lane.b32.xlu0 %v1246, 9
        %v2056 = vpop.permute.xlu0 %2055
        %vm2057 = vcmp.lt.s32.totalorder %v1470, 9
        %v2058 = vsel %vm2057, %v2050, %v2054
        %v2059 = vsel %vm2057, %v2052, %v2056
        %v2060 = vsel %vm2057, %v2046, %v2050
        %v2061 = vsel %vm2057, %v2048, %v2052
        %v2062 = vsel %vm2057, %v2042, %v2046
        %v2063 = vsel %vm2057, %v2044, %v2048
        %v2064 = vsel %vm2057, %v2054, %v2042
        %v2065 = vsel %vm2057, %v2056, %v2044
        %v2066 = vand.u32 %v1452, 512
        %vm2067 = vcmp.ne.s32.totalorder %v2066, 0
        %v2068 = vsel %vm2067, 1, 0
        %v2069 = vcvt.s32.f32 %v2068
        %v2071 = vlaneseq
        %v2072 = vshrl.u32 %v2071, 7
        %v2073 = vsub.s32 0, %v2072
        %v2074 = vrot.slane %v2069, %v2073
        %v2075 = vlaneseq
        %v2076 = vshrl.u32 %v2075, 7
        %v2077 = vsub.s32 1, %v2076
        %v2078 = vrot.slane %v2069, %v2077
        %v2079 = vlaneseq
        %v2080 = vshrl.u32 %v2079, 7
        %v2081 = vsub.s32 2, %v2080
        %v2082 = vrot.slane %v2069, %v2081
        %v2083 = vlaneseq
        %v2084 = vshrl.u32 %v2083, 7
        %v2085 = vsub.s32 3, %v2084
        %v2086 = vrot.slane %v2069, %v2085
        %v2091 = vmul.f32 %v2064, %v2074
        %v2092 = vmul.f32 %v2062, %v2078
        %v2093 = vmul.f32 %v2060, %v2082
        %v2094 = vmul.f32 %v2058, %v2086
        %v2095 = vmul.f32 %v2065, %v2074
        %v2096 = vmul.f32 %v2063, %v2078
        %v2097 = vmul.f32 %v2061, %v2082
        %v2098 = vmul.f32 %v2059, %v2086
        %v2099 = vadd.f32 %v2033, %v2091
        %v2100 = vadd.f32 %v2034, %v2092
        %v2101 = vadd.f32 %v2035, %v2093
        %v2102 = vadd.f32 %v2036, %v2094
        %v2103 = vadd.f32 %v2037, %v2095
        %v2104 = vadd.f32 %v2038, %v2096
        %v2105 = vadd.f32 %v2039, %v2097
        %v2106 = vadd.f32 %v2040, %v2098
        %2107 = vrot.lane.b32.xlu0 %v861, 8
        %v2108 = vpop.permute.xlu0 %2107
        %2109 = vrot.lane.b32.xlu0 %v867, 8
        %v2110 = vpop.permute.xlu0 %2109
        %2111 = vrot.lane.b32.xlu0 %v863, 8
        %v2112 = vpop.permute.xlu0 %2111
        %2113 = vrot.lane.b32.xlu0 %v869, 8
        %v2114 = vpop.permute.xlu0 %2113
        %2115 = vrot.lane.b32.xlu0 %v1250, 8
        %v2116 = vpop.permute.xlu0 %2115
        %2117 = vrot.lane.b32.xlu0 %v1256, 8
        %v2118 = vpop.permute.xlu0 %2117
        %2119 = vrot.lane.b32.xlu0 %v1252, 8
        %v2120 = vpop.permute.xlu0 %2119
        %2121 = vrot.lane.b32.xlu0 %v1258, 8
        %v2122 = vpop.permute.xlu0 %2121
        %vm2123 = vcmp.lt.s32.totalorder %v1470, 8
        %v2124 = vsel %vm2123, %v2116, %v2120
        %v2125 = vsel %vm2123, %v2118, %v2122
        %v2126 = vsel %vm2123, %v2112, %v2116
        %v2127 = vsel %vm2123, %v2114, %v2118
        %v2128 = vsel %vm2123, %v2108, %v2112
        %v2129 = vsel %vm2123, %v2110, %v2114
        %v2130 = vsel %vm2123, %v2120, %v2108
        %v2131 = vsel %vm2123, %v2122, %v2110
        %v2132 = vand.u32 %v1452, 1024
        %vm2133 = vcmp.ne.s32.totalorder %v2132, 0
        %v2134 = vsel %vm2133, 1, 0
        %v2135 = vcvt.s32.f32 %v2134
        %v2137 = vlaneseq
        %v2138 = vshrl.u32 %v2137, 7
        %v2139 = vsub.s32 0, %v2138
        %v2140 = vrot.slane %v2135, %v2139
        %v2141 = vlaneseq
        %v2142 = vshrl.u32 %v2141, 7
        %v2143 = vsub.s32 1, %v2142
        %v2144 = vrot.slane %v2135, %v2143
        %v2145 = vlaneseq
        %v2146 = vshrl.u32 %v2145, 7
        %v2147 = vsub.s32 2, %v2146
        %v2148 = vrot.slane %v2135, %v2147
        %v2149 = vlaneseq
        %v2150 = vshrl.u32 %v2149, 7
        %v2151 = vsub.s32 3, %v2150
        %v2152 = vrot.slane %v2135, %v2151
        %v2157 = vmul.f32 %v2130, %v2140
        %v2158 = vmul.f32 %v2128, %v2144
        %v2159 = vmul.f32 %v2126, %v2148
        %v2160 = vmul.f32 %v2124, %v2152
        %v2161 = vmul.f32 %v2131, %v2140
        %v2162 = vmul.f32 %v2129, %v2144
        %v2163 = vmul.f32 %v2127, %v2148
        %v2164 = vmul.f32 %v2125, %v2152
        %v2165 = vadd.f32 %v2099, %v2157
        %v2166 = vadd.f32 %v2100, %v2158
        %v2167 = vadd.f32 %v2101, %v2159
        %v2168 = vadd.f32 %v2102, %v2160
        %v2169 = vadd.f32 %v2103, %v2161
        %v2170 = vadd.f32 %v2104, %v2162
        %v2171 = vadd.f32 %v2105, %v2163
        %v2172 = vadd.f32 %v2106, %v2164
        %2173 = vrot.lane.b32.xlu0 %v873, 7
        %v2174 = vpop.permute.xlu0 %2173
        %2175 = vrot.lane.b32.xlu0 %v879, 7
        %v2176 = vpop.permute.xlu0 %2175
        %2177 = vrot.lane.b32.xlu0 %v875, 7
        %v2178 = vpop.permute.xlu0 %2177
        %2179 = vrot.lane.b32.xlu0 %v881, 7
        %v2180 = vpop.permute.xlu0 %2179
        %2181 = vrot.lane.b32.xlu0 %v1262, 7
        %v2182 = vpop.permute.xlu0 %2181
        %2183 = vrot.lane.b32.xlu0 %v1268, 7
        %v2184 = vpop.permute.xlu0 %2183
        %2185 = vrot.lane.b32.xlu0 %v1264, 7
        %v2186 = vpop.permute.xlu0 %2185
        %2187 = vrot.lane.b32.xlu0 %v1270, 7
        %v2188 = vpop.permute.xlu0 %2187
        %vm2189 = vcmp.lt.s32.totalorder %v1470, 7
        %v2190 = vsel %vm2189, %v2182, %v2186
        %v2191 = vsel %vm2189, %v2184, %v2188
        %v2192 = vsel %vm2189, %v2178, %v2182
        %v2193 = vsel %vm2189, %v2180, %v2184
        %v2194 = vsel %vm2189, %v2174, %v2178
        %v2195 = vsel %vm2189, %v2176, %v2180
        %v2196 = vsel %vm2189, %v2186, %v2174
        %v2197 = vsel %vm2189, %v2188, %v2176
        %v2198 = vand.u32 %v1452, 2048
        %vm2199 = vcmp.ne.s32.totalorder %v2198, 0
        %v2200 = vsel %vm2199, 1, 0
        %v2201 = vcvt.s32.f32 %v2200
        %v2203 = vlaneseq
        %v2204 = vshrl.u32 %v2203, 7
        %v2205 = vsub.s32 0, %v2204
        %v2206 = vrot.slane %v2201, %v2205
        %v2207 = vlaneseq
        %v2208 = vshrl.u32 %v2207, 7
        %v2209 = vsub.s32 1, %v2208
        %v2210 = vrot.slane %v2201, %v2209
        %v2211 = vlaneseq
        %v2212 = vshrl.u32 %v2211, 7
        %v2213 = vsub.s32 2, %v2212
        %v2214 = vrot.slane %v2201, %v2213
        %v2215 = vlaneseq
        %v2216 = vshrl.u32 %v2215, 7
        %v2217 = vsub.s32 3, %v2216
        %v2218 = vrot.slane %v2201, %v2217
        %v2223 = vmul.f32 %v2196, %v2206
        %v2224 = vmul.f32 %v2194, %v2210
        %v2225 = vmul.f32 %v2192, %v2214
        %v2226 = vmul.f32 %v2190, %v2218
        %v2227 = vmul.f32 %v2197, %v2206
        %v2228 = vmul.f32 %v2195, %v2210
        %v2229 = vmul.f32 %v2193, %v2214
        %v2230 = vmul.f32 %v2191, %v2218
        %v2231 = vadd.f32 %v2165, %v2223
        %v2232 = vadd.f32 %v2166, %v2224
        %v2233 = vadd.f32 %v2167, %v2225
        %v2234 = vadd.f32 %v2168, %v2226
        %v2235 = vadd.f32 %v2169, %v2227
        %v2236 = vadd.f32 %v2170, %v2228
        %v2237 = vadd.f32 %v2171, %v2229
        %v2238 = vadd.f32 %v2172, %v2230
        %2239 = vrot.lane.b32.xlu0 %v885, 1
        %v2240 = vpop.permute.xlu0 %2239
        %2241 = vrot.lane.b32.xlu0 %v891, 1
        %v2242 = vpop.permute.xlu0 %2241
        %2243 = vrot.lane.b32.xlu0 %v887, 1
        %v2244 = vpop.permute.xlu0 %2243
        %2245 = vrot.lane.b32.xlu0 %v893, 1
        %v2246 = vpop.permute.xlu0 %2245
        %2247 = vrot.lane.b32.xlu0 %v1274, 1
        %v2248 = vpop.permute.xlu0 %2247
        %2249 = vrot.lane.b32.xlu0 %v1280, 1
        %v2250 = vpop.permute.xlu0 %2249
        %2251 = vrot.lane.b32.xlu0 %v1276, 1
        %v2252 = vpop.permute.xlu0 %2251
        %2253 = vrot.lane.b32.xlu0 %v1282, 1
        %v2254 = vpop.permute.xlu0 %2253
        %vm2255 = vcmp.lt.s32.totalorder %v1470, 1
        %v2256 = vsel %vm2255, %v2248, %v2252
        %v2257 = vsel %vm2255, %v2250, %v2254
        %v2258 = vsel %vm2255, %v2244, %v2248
        %v2259 = vsel %vm2255, %v2246, %v2250
        %v2260 = vsel %vm2255, %v2240, %v2244
        %v2261 = vsel %vm2255, %v2242, %v2246
        %v2262 = vsel %vm2255, %v2252, %v2240
        %v2263 = vsel %vm2255, %v2254, %v2242
        %v2264 = vand.u32 %v1452, 4096
        %vm2265 = vcmp.ne.s32.totalorder %v2264, 0
        %v2266 = vsel %vm2265, 1, 0
        %v2267 = vcvt.s32.f32 %v2266
        %v2269 = vlaneseq
        %v2270 = vshrl.u32 %v2269, 7
        %v2271 = vsub.s32 0, %v2270
        %v2272 = vrot.slane %v2267, %v2271
        %v2273 = vlaneseq
        %v2274 = vshrl.u32 %v2273, 7
        %v2275 = vsub.s32 1, %v2274
        %v2276 = vrot.slane %v2267, %v2275
        %v2277 = vlaneseq
        %v2278 = vshrl.u32 %v2277, 7
        %v2279 = vsub.s32 2, %v2278
        %v2280 = vrot.slane %v2267, %v2279
        %v2281 = vlaneseq
        %v2282 = vshrl.u32 %v2281, 7
        %v2283 = vsub.s32 3, %v2282
        %v2284 = vrot.slane %v2267, %v2283
        %v2289 = vmul.f32 %v2262, %v2272
        %v2290 = vmul.f32 %v2260, %v2276
        %v2291 = vmul.f32 %v2258, %v2280
        %v2292 = vmul.f32 %v2256, %v2284
        %v2293 = vmul.f32 %v2263, %v2272
        %v2294 = vmul.f32 %v2261, %v2276
        %v2295 = vmul.f32 %v2259, %v2280
        %v2296 = vmul.f32 %v2257, %v2284
        %v2297 = vadd.f32 %v2231, %v2289
        %v2298 = vadd.f32 %v2232, %v2290
        %v2299 = vadd.f32 %v2233, %v2291
        %v2300 = vadd.f32 %v2234, %v2292
        %v2301 = vadd.f32 %v2235, %v2293
        %v2302 = vadd.f32 %v2236, %v2294
        %v2303 = vadd.f32 %v2237, %v2295
        %v2304 = vadd.f32 %v2238, %v2296
        %v2305 = vadd.f32 %v2297, %v897
        %v2306 = vadd.f32 %v2298, %v899
        %v2307 = vadd.f32 %v2299, %v1286
        %v2308 = vadd.f32 %v2300, %v1288
        %v2309 = vadd.f32 %v2301, %v903
        %v2310 = vadd.f32 %v2302, %v905
        %v2311 = vadd.f32 %v2303, %v1292
        %v2312 = vadd.f32 %v2304, %v1294
        %2313 = vrot.lane.b32.xlu0 %v909, 127
        %v2314 = vpop.permute.xlu0 %2313
        %2315 = vrot.lane.b32.xlu0 %v915, 127
        %v2316 = vpop.permute.xlu0 %2315
        %2317 = vrot.lane.b32.xlu0 %v911, 127
        %v2318 = vpop.permute.xlu0 %2317
        %2319 = vrot.lane.b32.xlu0 %v917, 127
        %v2320 = vpop.permute.xlu0 %2319
        %2321 = vrot.lane.b32.xlu0 %v1298, 127
        %v2322 = vpop.permute.xlu0 %2321
        %2323 = vrot.lane.b32.xlu0 %v1304, 127
        %v2324 = vpop.permute.xlu0 %2323
        %2325 = vrot.lane.b32.xlu0 %v1300, 127
        %v2326 = vpop.permute.xlu0 %2325
        %2327 = vrot.lane.b32.xlu0 %v1306, 127
        %v2328 = vpop.permute.xlu0 %2327
        %vm2329 = vcmp.lt.s32.totalorder %v1470, 127
        %v2330 = vsel %vm2329, %v2322, %v2326
        %v2331 = vsel %vm2329, %v2324, %v2328
        %v2332 = vsel %vm2329, %v2318, %v2322
        %v2333 = vsel %vm2329, %v2320, %v2324
        %v2334 = vsel %vm2329, %v2314, %v2318
        %v2335 = vsel %vm2329, %v2316, %v2320
        %v2336 = vsel %vm2329, %v2326, %v2314
        %v2337 = vsel %vm2329, %v2328, %v2316
        %v2338 = vand.u32 %v1452, 16384
        %vm2339 = vcmp.ne.s32.totalorder %v2338, 0
        %v2340 = vsel %vm2339, 1, 0
        %v2341 = vcvt.s32.f32 %v2340
        %v2343 = vlaneseq
        %v2344 = vshrl.u32 %v2343, 7
        %v2345 = vsub.s32 0, %v2344
        %v2346 = vrot.slane %v2341, %v2345
        %v2347 = vlaneseq
        %v2348 = vshrl.u32 %v2347, 7
        %v2349 = vsub.s32 1, %v2348
        %v2350 = vrot.slane %v2341, %v2349
        %v2351 = vlaneseq
        %v2352 = vshrl.u32 %v2351, 7
        %v2353 = vsub.s32 2, %v2352
        %v2354 = vrot.slane %v2341, %v2353
        %v2355 = vlaneseq
        %v2356 = vshrl.u32 %v2355, 7
        %v2357 = vsub.s32 3, %v2356
        %v2358 = vrot.slane %v2341, %v2357
        %v2363 = vmul.f32 %v2334, %v2346
        %v2364 = vmul.f32 %v2332, %v2350
        %v2365 = vmul.f32 %v2330, %v2354
        %v2366 = vmul.f32 %v2336, %v2358
        %v2367 = vmul.f32 %v2335, %v2346
        %v2368 = vmul.f32 %v2333, %v2350
        %v2369 = vmul.f32 %v2331, %v2354
        %v2370 = vmul.f32 %v2337, %v2358
        %v2371 = vadd.f32 %v2305, %v2363
        %v2372 = vadd.f32 %v2306, %v2364
        %v2373 = vadd.f32 %v2307, %v2365
        %v2374 = vadd.f32 %v2308, %v2366
        %v2375 = vadd.f32 %v2309, %v2367
        %v2376 = vadd.f32 %v2310, %v2368
        %v2377 = vadd.f32 %v2311, %v2369
        %v2378 = vadd.f32 %v2312, %v2370
        %2379 = vrot.lane.b32.xlu0 %v921, 121
        %v2380 = vpop.permute.xlu0 %2379
        %2381 = vrot.lane.b32.xlu0 %v927, 121
        %v2382 = vpop.permute.xlu0 %2381
        %2383 = vrot.lane.b32.xlu0 %v923, 121
        %v2384 = vpop.permute.xlu0 %2383
        %2385 = vrot.lane.b32.xlu0 %v929, 121
        %v2386 = vpop.permute.xlu0 %2385
        %2387 = vrot.lane.b32.xlu0 %v1310, 121
        %v2388 = vpop.permute.xlu0 %2387
        %2389 = vrot.lane.b32.xlu0 %v1316, 121
        %v2390 = vpop.permute.xlu0 %2389
        %2391 = vrot.lane.b32.xlu0 %v1312, 121
        %v2392 = vpop.permute.xlu0 %2391
        %2393 = vrot.lane.b32.xlu0 %v1318, 121
        %v2394 = vpop.permute.xlu0 %2393
        %vm2395 = vcmp.lt.s32.totalorder %v1470, 121
        %v2396 = vsel %vm2395, %v2388, %v2392
        %v2397 = vsel %vm2395, %v2390, %v2394
        %v2398 = vsel %vm2395, %v2384, %v2388
        %v2399 = vsel %vm2395, %v2386, %v2390
        %v2400 = vsel %vm2395, %v2380, %v2384
        %v2401 = vsel %vm2395, %v2382, %v2386
        %v2402 = vsel %vm2395, %v2392, %v2380
        %v2403 = vsel %vm2395, %v2394, %v2382
        %v2404 = vand.u32 %v1452, 32768
        %vm2405 = vcmp.ne.s32.totalorder %v2404, 0
        %v2406 = vsel %vm2405, 1, 0
        %v2407 = vcvt.s32.f32 %v2406
        %v2409 = vlaneseq
        %v2410 = vshrl.u32 %v2409, 7
        %v2411 = vsub.s32 0, %v2410
        %v2412 = vrot.slane %v2407, %v2411
        %v2413 = vlaneseq
        %v2414 = vshrl.u32 %v2413, 7
        %v2415 = vsub.s32 1, %v2414
        %v2416 = vrot.slane %v2407, %v2415
        %v2417 = vlaneseq
        %v2418 = vshrl.u32 %v2417, 7
        %v2419 = vsub.s32 2, %v2418
        %v2420 = vrot.slane %v2407, %v2419
        %v2421 = vlaneseq
        %v2422 = vshrl.u32 %v2421, 7
        %v2423 = vsub.s32 3, %v2422
        %v2424 = vrot.slane %v2407, %v2423
        %v2429 = vmul.f32 %v2400, %v2412
        %v2430 = vmul.f32 %v2398, %v2416
        %v2431 = vmul.f32 %v2396, %v2420
        %v2432 = vmul.f32 %v2402, %v2424
        %v2433 = vmul.f32 %v2401, %v2412
        %v2434 = vmul.f32 %v2399, %v2416
        %v2435 = vmul.f32 %v2397, %v2420
        %v2436 = vmul.f32 %v2403, %v2424
        %v2437 = vadd.f32 %v2371, %v2429
        %v2438 = vadd.f32 %v2372, %v2430
        %v2439 = vadd.f32 %v2373, %v2431
        %v2440 = vadd.f32 %v2374, %v2432
        %v2441 = vadd.f32 %v2375, %v2433
        %v2442 = vadd.f32 %v2376, %v2434
        %v2443 = vadd.f32 %v2377, %v2435
        %v2444 = vadd.f32 %v2378, %v2436
        %2445 = vrot.lane.b32.xlu0 %v933, 120
        %v2446 = vpop.permute.xlu0 %2445
        %2447 = vrot.lane.b32.xlu0 %v939, 120
        %v2448 = vpop.permute.xlu0 %2447
        %2449 = vrot.lane.b32.xlu0 %v935, 120
        %v2450 = vpop.permute.xlu0 %2449
        %2451 = vrot.lane.b32.xlu0 %v941, 120
        %v2452 = vpop.permute.xlu0 %2451
        %2453 = vrot.lane.b32.xlu0 %v1322, 120
        %v2454 = vpop.permute.xlu0 %2453
        %2455 = vrot.lane.b32.xlu0 %v1328, 120
        %v2456 = vpop.permute.xlu0 %2455
        %2457 = vrot.lane.b32.xlu0 %v1324, 120
        %v2458 = vpop.permute.xlu0 %2457
        %2459 = vrot.lane.b32.xlu0 %v1330, 120
        %v2460 = vpop.permute.xlu0 %2459
        %vm2461 = vcmp.lt.s32.totalorder %v1470, 120
        %v2462 = vsel %vm2461, %v2454, %v2458
        %v2463 = vsel %vm2461, %v2456, %v2460
        %v2464 = vsel %vm2461, %v2450, %v2454
        %v2465 = vsel %vm2461, %v2452, %v2456
        %v2466 = vsel %vm2461, %v2446, %v2450
        %v2467 = vsel %vm2461, %v2448, %v2452
        %v2468 = vsel %vm2461, %v2458, %v2446
        %v2469 = vsel %vm2461, %v2460, %v2448
        %v2470 = vand.u32 %v1452, 65536
        %vm2471 = vcmp.ne.s32.totalorder %v2470, 0
        %v2472 = vsel %vm2471, 1, 0
        %v2473 = vcvt.s32.f32 %v2472
        %v2475 = vlaneseq
        %v2476 = vshrl.u32 %v2475, 7
        %v2477 = vsub.s32 0, %v2476
        %v2478 = vrot.slane %v2473, %v2477
        %v2479 = vlaneseq
        %v2480 = vshrl.u32 %v2479, 7
        %v2481 = vsub.s32 1, %v2480
        %v2482 = vrot.slane %v2473, %v2481
        %v2483 = vlaneseq
        %v2484 = vshrl.u32 %v2483, 7
        %v2485 = vsub.s32 2, %v2484
        %v2486 = vrot.slane %v2473, %v2485
        %v2487 = vlaneseq
        %v2488 = vshrl.u32 %v2487, 7
        %v2489 = vsub.s32 3, %v2488
        %v2490 = vrot.slane %v2473, %v2489
        %v2495 = vmul.f32 %v2466, %v2478
        %v2496 = vmul.f32 %v2464, %v2482
        %v2497 = vmul.f32 %v2462, %v2486
        %v2498 = vmul.f32 %v2468, %v2490
        %v2499 = vmul.f32 %v2467, %v2478
        %v2500 = vmul.f32 %v2465, %v2482
        %v2501 = vmul.f32 %v2463, %v2486
        %v2502 = vmul.f32 %v2469, %v2490
        %v2503 = vadd.f32 %v2437, %v2495
        %v2504 = vadd.f32 %v2438, %v2496
        %v2505 = vadd.f32 %v2439, %v2497
        %v2506 = vadd.f32 %v2440, %v2498
        %v2507 = vadd.f32 %v2441, %v2499
        %v2508 = vadd.f32 %v2442, %v2500
        %v2509 = vadd.f32 %v2443, %v2501
        %v2510 = vadd.f32 %v2444, %v2502
        %2511 = vrot.lane.b32.xlu0 %v945, 119
        %v2512 = vpop.permute.xlu0 %2511
        %2513 = vrot.lane.b32.xlu0 %v951, 119
        %v2514 = vpop.permute.xlu0 %2513
        %2515 = vrot.lane.b32.xlu0 %v947, 119
        %v2516 = vpop.permute.xlu0 %2515
        %2517 = vrot.lane.b32.xlu0 %v953, 119
        %v2518 = vpop.permute.xlu0 %2517
        %2519 = vrot.lane.b32.xlu0 %v1334, 119
        %v2520 = vpop.permute.xlu0 %2519
        %2521 = vrot.lane.b32.xlu0 %v1340, 119
        %v2522 = vpop.permute.xlu0 %2521
        %2523 = vrot.lane.b32.xlu0 %v1336, 119
        %v2524 = vpop.permute.xlu0 %2523
        %2525 = vrot.lane.b32.xlu0 %v1342, 119
        %v2526 = vpop.permute.xlu0 %2525
        %vm2527 = vcmp.lt.s32.totalorder %v1470, 119
        %v2528 = vsel %vm2527, %v2520, %v2524
        %v2529 = vsel %vm2527, %v2522, %v2526
        %v2530 = vsel %vm2527, %v2516, %v2520
        %v2531 = vsel %vm2527, %v2518, %v2522
        %v2532 = vsel %vm2527, %v2512, %v2516
        %v2533 = vsel %vm2527, %v2514, %v2518
        %v2534 = vsel %vm2527, %v2524, %v2512
        %v2535 = vsel %vm2527, %v2526, %v2514
        %v2536 = vand.u32 %v1452, 131072
        %vm2537 = vcmp.ne.s32.totalorder %v2536, 0
        %v2538 = vsel %vm2537, 1, 0
        %v2539 = vcvt.s32.f32 %v2538
        %v2541 = vlaneseq
        %v2542 = vshrl.u32 %v2541, 7
        %v2543 = vsub.s32 0, %v2542
        %v2544 = vrot.slane %v2539, %v2543
        %v2545 = vlaneseq
        %v2546 = vshrl.u32 %v2545, 7
        %v2547 = vsub.s32 1, %v2546
        %v2548 = vrot.slane %v2539, %v2547
        %v2549 = vlaneseq
        %v2550 = vshrl.u32 %v2549, 7
        %v2551 = vsub.s32 2, %v2550
        %v2552 = vrot.slane %v2539, %v2551
        %v2553 = vlaneseq
        %v2554 = vshrl.u32 %v2553, 7
        %v2555 = vsub.s32 3, %v2554
        %v2556 = vrot.slane %v2539, %v2555
        %v2561 = vmul.f32 %v2532, %v2544
        %v2562 = vmul.f32 %v2530, %v2548
        %v2563 = vmul.f32 %v2528, %v2552
        %v2564 = vmul.f32 %v2534, %v2556
        %v2565 = vmul.f32 %v2533, %v2544
        %v2566 = vmul.f32 %v2531, %v2548
        %v2567 = vmul.f32 %v2529, %v2552
        %v2568 = vmul.f32 %v2535, %v2556
        %v2569 = vadd.f32 %v2503, %v2561
        %v2570 = vadd.f32 %v2504, %v2562
        %v2571 = vadd.f32 %v2505, %v2563
        %v2572 = vadd.f32 %v2506, %v2564
        %v2573 = vadd.f32 %v2507, %v2565
        %v2574 = vadd.f32 %v2508, %v2566
        %v2575 = vadd.f32 %v2509, %v2567
        %v2576 = vadd.f32 %v2510, %v2568
        %2577 = vrot.lane.b32.xlu0 %v957, 73
        %v2578 = vpop.permute.xlu0 %2577
        %2579 = vrot.lane.b32.xlu0 %v963, 73
        %v2580 = vpop.permute.xlu0 %2579
        %2581 = vrot.lane.b32.xlu0 %v959, 73
        %v2582 = vpop.permute.xlu0 %2581
        %2583 = vrot.lane.b32.xlu0 %v965, 73
        %v2584 = vpop.permute.xlu0 %2583
        %2585 = vrot.lane.b32.xlu0 %v1346, 73
        %v2586 = vpop.permute.xlu0 %2585
        %2587 = vrot.lane.b32.xlu0 %v1352, 73
        %v2588 = vpop.permute.xlu0 %2587
        %2589 = vrot.lane.b32.xlu0 %v1348, 73
        %v2590 = vpop.permute.xlu0 %2589
        %2591 = vrot.lane.b32.xlu0 %v1354, 73
        %v2592 = vpop.permute.xlu0 %2591
        %v2593 = vsel %vm1471, %v2586, %v2590
        %v2594 = vsel %vm1471, %v2588, %v2592
        %v2595 = vsel %vm1471, %v2582, %v2586
        %v2596 = vsel %vm1471, %v2584, %v2588
        %v2597 = vsel %vm1471, %v2578, %v2582
        %v2598 = vsel %vm1471, %v2580, %v2584
        %v2599 = vsel %vm1471, %v2590, %v2578
        %v2600 = vsel %vm1471, %v2592, %v2580
        %v2601 = vand.u32 %v1452, 262144
        %vm2602 = vcmp.ne.s32.totalorder %v2601, 0
        %v2603 = vsel %vm2602, 1, 0
        %v2604 = vcvt.s32.f32 %v2603
        %v2606 = vlaneseq
        %v2607 = vshrl.u32 %v2606, 7
        %v2608 = vsub.s32 0, %v2607
        %v2609 = vrot.slane %v2604, %v2608
        %v2610 = vlaneseq
        %v2611 = vshrl.u32 %v2610, 7
        %v2612 = vsub.s32 1, %v2611
        %v2613 = vrot.slane %v2604, %v2612
        %v2614 = vlaneseq
        %v2615 = vshrl.u32 %v2614, 7
        %v2616 = vsub.s32 2, %v2615
        %v2617 = vrot.slane %v2604, %v2616
        %v2618 = vlaneseq
        %v2619 = vshrl.u32 %v2618, 7
        %v2620 = vsub.s32 3, %v2619
        %v2621 = vrot.slane %v2604, %v2620
        %v2626 = vmul.f32 %v2597, %v2609
        %v2627 = vmul.f32 %v2595, %v2613
        %v2628 = vmul.f32 %v2593, %v2617
        %v2629 = vmul.f32 %v2599, %v2621
        %v2630 = vmul.f32 %v2598, %v2609
        %v2631 = vmul.f32 %v2596, %v2613
        %v2632 = vmul.f32 %v2594, %v2617
        %v2633 = vmul.f32 %v2600, %v2621
        %v2634 = vadd.f32 %v2569, %v2626
        %v2635 = vadd.f32 %v2570, %v2627
        %v2636 = vadd.f32 %v2571, %v2628
        %v2637 = vadd.f32 %v2572, %v2629
        %v2638 = vadd.f32 %v2573, %v2630
        %v2639 = vadd.f32 %v2574, %v2631
        %v2640 = vadd.f32 %v2575, %v2632
        %v2641 = vadd.f32 %v2576, %v2633
        %2642 = vrot.lane.b32.xlu0 %v969, 72
        %v2643 = vpop.permute.xlu0 %2642
        %2644 = vrot.lane.b32.xlu0 %v975, 72
        %v2645 = vpop.permute.xlu0 %2644
        %2646 = vrot.lane.b32.xlu0 %v971, 72
        %v2647 = vpop.permute.xlu0 %2646
        %2648 = vrot.lane.b32.xlu0 %v977, 72
        %v2649 = vpop.permute.xlu0 %2648
        %2650 = vrot.lane.b32.xlu0 %v1358, 72
        %v2651 = vpop.permute.xlu0 %2650
        %2652 = vrot.lane.b32.xlu0 %v1364, 72
        %v2653 = vpop.permute.xlu0 %2652
        %2654 = vrot.lane.b32.xlu0 %v1360, 72
        %v2655 = vpop.permute.xlu0 %2654
        %2656 = vrot.lane.b32.xlu0 %v1366, 72
        %v2657 = vpop.permute.xlu0 %2656
        %v2658 = vsel %vm1529, %v2651, %v2655
        %v2659 = vsel %vm1529, %v2653, %v2657
        %v2660 = vsel %vm1529, %v2647, %v2651
        %v2661 = vsel %vm1529, %v2649, %v2653
        %v2662 = vsel %vm1529, %v2643, %v2647
        %v2663 = vsel %vm1529, %v2645, %v2649
        %v2664 = vsel %vm1529, %v2655, %v2643
        %v2665 = vsel %vm1529, %v2657, %v2645
        %v2666 = vand.u32 %v1452, 524288
        %vm2667 = vcmp.ne.s32.totalorder %v2666, 0
        %v2668 = vsel %vm2667, 1, 0
        %v2669 = vcvt.s32.f32 %v2668
        %v2671 = vlaneseq
        %v2672 = vshrl.u32 %v2671, 7
        %v2673 = vsub.s32 0, %v2672
        %v2674 = vrot.slane %v2669, %v2673
        %v2675 = vlaneseq
        %v2676 = vshrl.u32 %v2675, 7
        %v2677 = vsub.s32 1, %v2676
        %v2678 = vrot.slane %v2669, %v2677
        %v2679 = vlaneseq
        %v2680 = vshrl.u32 %v2679, 7
        %v2681 = vsub.s32 2, %v2680
        %v2682 = vrot.slane %v2669, %v2681
        %v2683 = vlaneseq
        %v2684 = vshrl.u32 %v2683, 7
        %v2685 = vsub.s32 3, %v2684
        %v2686 = vrot.slane %v2669, %v2685
        %v2691 = vmul.f32 %v2662, %v2674
        %v2692 = vmul.f32 %v2660, %v2678
        %v2693 = vmul.f32 %v2658, %v2682
        %v2694 = vmul.f32 %v2664, %v2686
        %v2695 = vmul.f32 %v2663, %v2674
        %v2696 = vmul.f32 %v2661, %v2678
        %v2697 = vmul.f32 %v2659, %v2682
        %v2698 = vmul.f32 %v2665, %v2686
        %v2699 = vadd.f32 %v2634, %v2691
        %v2700 = vadd.f32 %v2635, %v2692
        %v2701 = vadd.f32 %v2636, %v2693
        %v2702 = vadd.f32 %v2637, %v2694
        %v2703 = vadd.f32 %v2638, %v2695
        %v2704 = vadd.f32 %v2639, %v2696
        %v2705 = vadd.f32 %v2640, %v2697
        %v2706 = vadd.f32 %v2641, %v2698
        %2707 = vrot.lane.b32.xlu0 %v981, 71
        %v2708 = vpop.permute.xlu0 %2707
        %2709 = vrot.lane.b32.xlu0 %v987, 71
        %v2710 = vpop.permute.xlu0 %2709
        %2711 = vrot.lane.b32.xlu0 %v983, 71
        %v2712 = vpop.permute.xlu0 %2711
        %2713 = vrot.lane.b32.xlu0 %v989, 71
        %v2714 = vpop.permute.xlu0 %2713
        %2715 = vrot.lane.b32.xlu0 %v1370, 71
        %v2716 = vpop.permute.xlu0 %2715
        %2717 = vrot.lane.b32.xlu0 %v1376, 71
        %v2718 = vpop.permute.xlu0 %2717
        %2719 = vrot.lane.b32.xlu0 %v1372, 71
        %v2720 = vpop.permute.xlu0 %2719
        %2721 = vrot.lane.b32.xlu0 %v1378, 71
        %v2722 = vpop.permute.xlu0 %2721
        %v2723 = vsel %vm1595, %v2716, %v2720
        %v2724 = vsel %vm1595, %v2718, %v2722
        %v2725 = vsel %vm1595, %v2712, %v2716
        %v2726 = vsel %vm1595, %v2714, %v2718
        %v2727 = vsel %vm1595, %v2708, %v2712
        %v2728 = vsel %vm1595, %v2710, %v2714
        %v2729 = vsel %vm1595, %v2720, %v2708
        %v2730 = vsel %vm1595, %v2722, %v2710
        %v2731 = vand.u32 %v1452, 1048576
        %vm2732 = vcmp.ne.s32.totalorder %v2731, 0
        %v2733 = vsel %vm2732, 1, 0
        %v2734 = vcvt.s32.f32 %v2733
        %v2736 = vlaneseq
        %v2737 = vshrl.u32 %v2736, 7
        %v2738 = vsub.s32 0, %v2737
        %v2739 = vrot.slane %v2734, %v2738
        %v2740 = vlaneseq
        %v2741 = vshrl.u32 %v2740, 7
        %v2742 = vsub.s32 1, %v2741
        %v2743 = vrot.slane %v2734, %v2742
        %v2744 = vlaneseq
        %v2745 = vshrl.u32 %v2744, 7
        %v2746 = vsub.s32 2, %v2745
        %v2747 = vrot.slane %v2734, %v2746
        %v2748 = vlaneseq
        %v2749 = vshrl.u32 %v2748, 7
        %v2750 = vsub.s32 3, %v2749
        %v2751 = vrot.slane %v2734, %v2750
        %v2756 = vmul.f32 %v2727, %v2739
        %v2757 = vmul.f32 %v2725, %v2743
        %v2758 = vmul.f32 %v2723, %v2747
        %v2759 = vmul.f32 %v2729, %v2751
        %v2760 = vmul.f32 %v2728, %v2739
        %v2761 = vmul.f32 %v2726, %v2743
        %v2762 = vmul.f32 %v2724, %v2747
        %v2763 = vmul.f32 %v2730, %v2751
        %v2764 = vadd.f32 %v2699, %v2756
        %v2765 = vadd.f32 %v2700, %v2757
        %v2766 = vadd.f32 %v2701, %v2758
        %v2767 = vadd.f32 %v2702, %v2759
        %v2768 = vadd.f32 %v2703, %v2760
        %v2769 = vadd.f32 %v2704, %v2761
        %v2770 = vadd.f32 %v2705, %v2762
        %v2771 = vadd.f32 %v2706, %v2763
        %2772 = vrot.lane.b32.xlu0 %v993, 65
        %v2773 = vpop.permute.xlu0 %2772
        %2774 = vrot.lane.b32.xlu0 %v999, 65
        %v2775 = vpop.permute.xlu0 %2774
        %2776 = vrot.lane.b32.xlu0 %v995, 65
        %v2777 = vpop.permute.xlu0 %2776
        %2778 = vrot.lane.b32.xlu0 %v1001, 65
        %v2779 = vpop.permute.xlu0 %2778
        %2780 = vrot.lane.b32.xlu0 %v1382, 65
        %v2781 = vpop.permute.xlu0 %2780
        %2782 = vrot.lane.b32.xlu0 %v1388, 65
        %v2783 = vpop.permute.xlu0 %2782
        %2784 = vrot.lane.b32.xlu0 %v1384, 65
        %v2785 = vpop.permute.xlu0 %2784
        %2786 = vrot.lane.b32.xlu0 %v1390, 65
        %v2787 = vpop.permute.xlu0 %2786
        %v2788 = vsel %vm1661, %v2781, %v2785
        %v2789 = vsel %vm1661, %v2783, %v2787
        %v2790 = vsel %vm1661, %v2777, %v2781
        %v2791 = vsel %vm1661, %v2779, %v2783
        %v2792 = vsel %vm1661, %v2773, %v2777
        %v2793 = vsel %vm1661, %v2775, %v2779
        %v2794 = vsel %vm1661, %v2785, %v2773
        %v2795 = vsel %vm1661, %v2787, %v2775
        %v2796 = vand.u32 %v1452, 2097152
        %vm2797 = vcmp.ne.s32.totalorder %v2796, 0
        %v2798 = vsel %vm2797, 1, 0
        %v2799 = vcvt.s32.f32 %v2798
        %v2801 = vlaneseq
        %v2802 = vshrl.u32 %v2801, 7
        %v2803 = vsub.s32 0, %v2802
        %v2804 = vrot.slane %v2799, %v2803
        %v2805 = vlaneseq
        %v2806 = vshrl.u32 %v2805, 7
        %v2807 = vsub.s32 1, %v2806
        %v2808 = vrot.slane %v2799, %v2807
        %v2809 = vlaneseq
        %v2810 = vshrl.u32 %v2809, 7
        %v2811 = vsub.s32 2, %v2810
        %v2812 = vrot.slane %v2799, %v2811
        %v2813 = vlaneseq
        %v2814 = vshrl.u32 %v2813, 7
        %v2815 = vsub.s32 3, %v2814
        %v2816 = vrot.slane %v2799, %v2815
        %v2821 = vmul.f32 %v2792, %v2804
        %v2822 = vmul.f32 %v2790, %v2808
        %v2823 = vmul.f32 %v2788, %v2812
        %v2824 = vmul.f32 %v2794, %v2816
        %v2825 = vmul.f32 %v2793, %v2804
        %v2826 = vmul.f32 %v2791, %v2808
        %v2827 = vmul.f32 %v2789, %v2812
        %v2828 = vmul.f32 %v2795, %v2816
        %v2829 = vadd.f32 %v2764, %v2821
        %v2830 = vadd.f32 %v2765, %v2822
        %v2831 = vadd.f32 %v2766, %v2823
        %v2832 = vadd.f32 %v2767, %v2824
        %v2833 = vadd.f32 %v2768, %v2825
        %v2834 = vadd.f32 %v2769, %v2826
        %v2835 = vadd.f32 %v2770, %v2827
        %v2836 = vadd.f32 %v2771, %v2828
        %2837 = vrot.lane.b32.xlu0 %v1005, 64
        %v2838 = vpop.permute.xlu0 %2837
        %2839 = vrot.lane.b32.xlu0 %v1011, 64
        %v2840 = vpop.permute.xlu0 %2839
        %2841 = vrot.lane.b32.xlu0 %v1007, 64
        %v2842 = vpop.permute.xlu0 %2841
        %2843 = vrot.lane.b32.xlu0 %v1013, 64
        %v2844 = vpop.permute.xlu0 %2843
        %2845 = vrot.lane.b32.xlu0 %v1394, 64
        %v2846 = vpop.permute.xlu0 %2845
        %2847 = vrot.lane.b32.xlu0 %v1400, 64
        %v2848 = vpop.permute.xlu0 %2847
        %2849 = vrot.lane.b32.xlu0 %v1396, 64
        %v2850 = vpop.permute.xlu0 %2849
        %2851 = vrot.lane.b32.xlu0 %v1402, 64
        %v2852 = vpop.permute.xlu0 %2851
        %v2853 = vsel %vm1727, %v2846, %v2850
        %v2854 = vsel %vm1727, %v2848, %v2852
        %v2855 = vsel %vm1727, %v2842, %v2846
        %v2856 = vsel %vm1727, %v2844, %v2848
        %v2857 = vsel %vm1727, %v2838, %v2842
        %v2858 = vsel %vm1727, %v2840, %v2844
        %v2859 = vsel %vm1727, %v2850, %v2838
        %v2860 = vsel %vm1727, %v2852, %v2840
        %v2861 = vand.u32 %v1452, 4194304
        %vm2862 = vcmp.ne.s32.totalorder %v2861, 0
        %v2863 = vsel %vm2862, 1, 0
        %v2864 = vcvt.s32.f32 %v2863
        %v2866 = vlaneseq
        %v2867 = vshrl.u32 %v2866, 7
        %v2868 = vsub.s32 0, %v2867
        %v2869 = vrot.slane %v2864, %v2868
        %v2870 = vlaneseq
        %v2871 = vshrl.u32 %v2870, 7
        %v2872 = vsub.s32 1, %v2871
        %v2873 = vrot.slane %v2864, %v2872
        %v2874 = vlaneseq
        %v2875 = vshrl.u32 %v2874, 7
        %v2876 = vsub.s32 2, %v2875
        %v2877 = vrot.slane %v2864, %v2876
        %v2878 = vlaneseq
        %v2879 = vshrl.u32 %v2878, 7
        %v2880 = vsub.s32 3, %v2879
        %v2881 = vrot.slane %v2864, %v2880
        %v2886 = vmul.f32 %v2857, %v2869
        %v2887 = vmul.f32 %v2855, %v2873
        %v2888 = vmul.f32 %v2853, %v2877
        %v2889 = vmul.f32 %v2859, %v2881
        %v2890 = vmul.f32 %v2858, %v2869
        %v2891 = vmul.f32 %v2856, %v2873
        %v2892 = vmul.f32 %v2854, %v2877
        %v2893 = vmul.f32 %v2860, %v2881
        %v2894 = vadd.f32 %v2829, %v2886
        %v2895 = vadd.f32 %v2830, %v2887
        %v2896 = vadd.f32 %v2831, %v2888
        %v2897 = vadd.f32 %v2832, %v2889
        %v2898 = vadd.f32 %v2833, %v2890
        %v2899 = vadd.f32 %v2834, %v2891
        %v2900 = vadd.f32 %v2835, %v2892
        %v2901 = vadd.f32 %v2836, %v2893
        %2902 = vrot.lane.b32.xlu0 %v1017, 63
        %v2903 = vpop.permute.xlu0 %2902
        %2904 = vrot.lane.b32.xlu0 %v1023, 63
        %v2905 = vpop.permute.xlu0 %2904
        %2906 = vrot.lane.b32.xlu0 %v1019, 63
        %v2907 = vpop.permute.xlu0 %2906
        %2908 = vrot.lane.b32.xlu0 %v1025, 63
        %v2909 = vpop.permute.xlu0 %2908
        %2910 = vrot.lane.b32.xlu0 %v1406, 63
        %v2911 = vpop.permute.xlu0 %2910
        %2912 = vrot.lane.b32.xlu0 %v1412, 63
        %v2913 = vpop.permute.xlu0 %2912
        %2914 = vrot.lane.b32.xlu0 %v1408, 63
        %v2915 = vpop.permute.xlu0 %2914
        %2916 = vrot.lane.b32.xlu0 %v1414, 63
        %v2917 = vpop.permute.xlu0 %2916
        %v2918 = vsel %vm1793, %v2911, %v2915
        %v2919 = vsel %vm1793, %v2913, %v2917
        %v2920 = vsel %vm1793, %v2907, %v2911
        %v2921 = vsel %vm1793, %v2909, %v2913
        %v2922 = vsel %vm1793, %v2903, %v2907
        %v2923 = vsel %vm1793, %v2905, %v2909
        %v2924 = vsel %vm1793, %v2915, %v2903
        %v2925 = vsel %vm1793, %v2917, %v2905
        %v2926 = vand.u32 %v1452, 8388608
        %vm2927 = vcmp.ne.s32.totalorder %v2926, 0
        %v2928 = vsel %vm2927, 1, 0
        %v2929 = vcvt.s32.f32 %v2928
        %v2931 = vlaneseq
        %v2932 = vshrl.u32 %v2931, 7
        %v2933 = vsub.s32 0, %v2932
        %v2934 = vrot.slane %v2929, %v2933
        %v2935 = vlaneseq
        %v2936 = vshrl.u32 %v2935, 7
        %v2937 = vsub.s32 1, %v2936
        %v2938 = vrot.slane %v2929, %v2937
        %v2939 = vlaneseq
        %v2940 = vshrl.u32 %v2939, 7
        %v2941 = vsub.s32 2, %v2940
        %v2942 = vrot.slane %v2929, %v2941
        %v2943 = vlaneseq
        %v2944 = vshrl.u32 %v2943, 7
        %v2945 = vsub.s32 3, %v2944
        %v2946 = vrot.slane %v2929, %v2945
        %v2951 = vmul.f32 %v2922, %v2934
        %v2952 = vmul.f32 %v2920, %v2938
        %v2953 = vmul.f32 %v2918, %v2942
        %v2954 = vmul.f32 %v2924, %v2946
        %v2955 = vmul.f32 %v2923, %v2934
        %v2956 = vmul.f32 %v2921, %v2938
        %v2957 = vmul.f32 %v2919, %v2942
        %v2958 = vmul.f32 %v2925, %v2946
        %v2959 = vadd.f32 %v2894, %v2951
        %v2960 = vadd.f32 %v2895, %v2952
        %v2961 = vadd.f32 %v2896, %v2953
        %v2962 = vadd.f32 %v2897, %v2954
        %v2963 = vadd.f32 %v2898, %v2955
        %v2964 = vadd.f32 %v2899, %v2956
        %v2965 = vadd.f32 %v2900, %v2957
        %v2966 = vadd.f32 %v2901, %v2958
        %2967 = vrot.lane.b32.xlu0 %v1029, 57
        %v2968 = vpop.permute.xlu0 %2967
        %2969 = vrot.lane.b32.xlu0 %v1035, 57
        %v2970 = vpop.permute.xlu0 %2969
        %2971 = vrot.lane.b32.xlu0 %v1031, 57
        %v2972 = vpop.permute.xlu0 %2971
        %2973 = vrot.lane.b32.xlu0 %v1037, 57
        %v2974 = vpop.permute.xlu0 %2973
        %2975 = vrot.lane.b32.xlu0 %v1418, 57
        %v2976 = vpop.permute.xlu0 %2975
        %2977 = vrot.lane.b32.xlu0 %v1424, 57
        %v2978 = vpop.permute.xlu0 %2977
        %2979 = vrot.lane.b32.xlu0 %v1420, 57
        %v2980 = vpop.permute.xlu0 %2979
        %2981 = vrot.lane.b32.xlu0 %v1426, 57
        %v2982 = vpop.permute.xlu0 %2981
        %v2983 = vsel %vm1859, %v2976, %v2980
        %v2984 = vsel %vm1859, %v2978, %v2982
        %v2985 = vsel %vm1859, %v2972, %v2976
        %v2986 = vsel %vm1859, %v2974, %v2978
        %v2987 = vsel %vm1859, %v2968, %v2972
        %v2988 = vsel %vm1859, %v2970, %v2974
        %v2989 = vsel %vm1859, %v2980, %v2968
        %v2990 = vsel %vm1859, %v2982, %v2970
        %v2991 = vand.u32 %v1452, 16777216
        %vm2992 = vcmp.ne.s32.totalorder %v2991, 0
        %v2993 = vsel %vm2992, 1, 0
        %v2994 = vcvt.s32.f32 %v2993
        %v2996 = vlaneseq
        %v2997 = vshrl.u32 %v2996, 7
        %v2998 = vsub.s32 0, %v2997
        %v2999 = vrot.slane %v2994, %v2998
        %v3000 = vlaneseq
        %v3001 = vshrl.u32 %v3000, 7
        %v3002 = vsub.s32 1, %v3001
        %v3003 = vrot.slane %v2994, %v3002
        %v3004 = vlaneseq
        %v3005 = vshrl.u32 %v3004, 7
        %v3006 = vsub.s32 2, %v3005
        %v3007 = vrot.slane %v2994, %v3006
        %v3008 = vlaneseq
        %v3009 = vshrl.u32 %v3008, 7
        %v3010 = vsub.s32 3, %v3009
        %v3011 = vrot.slane %v2994, %v3010
        %v3016 = vmul.f32 %v2987, %v2999
        %v3017 = vmul.f32 %v2985, %v3003
        %v3018 = vmul.f32 %v2983, %v3007
        %v3019 = vmul.f32 %v2989, %v3011
        %v3020 = vmul.f32 %v2988, %v2999
        %v3021 = vmul.f32 %v2986, %v3003
        %v3022 = vmul.f32 %v2984, %v3007
        %v3023 = vmul.f32 %v2990, %v3011
        %v3024 = vadd.f32 %v2959, %v3016
        %v3025 = vadd.f32 %v2960, %v3017
        %v3026 = vadd.f32 %v2961, %v3018
        %v3027 = vadd.f32 %v2962, %v3019
        %v3028 = vadd.f32 %v2963, %v3020
        %v3029 = vadd.f32 %v2964, %v3021
        %v3030 = vadd.f32 %v2965, %v3022
        %v3031 = vadd.f32 %v2966, %v3023
        %3032 = vrot.lane.b32.xlu0 %v1041, 56
        %v3033 = vpop.permute.xlu0 %3032
        %3034 = vrot.lane.b32.xlu0 %v1047, 56
        %v3035 = vpop.permute.xlu0 %3034
        %3036 = vrot.lane.b32.xlu0 %v1043, 56
        %v3037 = vpop.permute.xlu0 %3036
        %3038 = vrot.lane.b32.xlu0 %v1049, 56
        %v3039 = vpop.permute.xlu0 %3038
        %3040 = vrot.lane.b32.xlu0 %v1430, 56
        %v3041 = vpop.permute.xlu0 %3040
        %3042 = vrot.lane.b32.xlu0 %v1436, 56
        %v3043 = vpop.permute.xlu0 %3042
        %3044 = vrot.lane.b32.xlu0 %v1432, 56
        %v3045 = vpop.permute.xlu0 %3044
        %3046 = vrot.lane.b32.xlu0 %v1438, 56
        %v3047 = vpop.permute.xlu0 %3046
        %v3048 = vsel %vm1925, %v3041, %v3045
        %v3049 = vsel %vm1925, %v3043, %v3047
        %v3050 = vsel %vm1925, %v3037, %v3041
        %v3051 = vsel %vm1925, %v3039, %v3043
        %v3052 = vsel %vm1925, %v3033, %v3037
        %v3053 = vsel %vm1925, %v3035, %v3039
        %v3054 = vsel %vm1925, %v3045, %v3033
        %v3055 = vsel %vm1925, %v3047, %v3035
        %v3056 = vand.u32 %v1452, 33554432
        %vm3057 = vcmp.ne.s32.totalorder %v3056, 0
        %v3058 = vsel %vm3057, 1, 0
        %v3059 = vcvt.s32.f32 %v3058
        %v3061 = vlaneseq
        %v3062 = vshrl.u32 %v3061, 7
        %v3063 = vsub.s32 0, %v3062
        %v3064 = vrot.slane %v3059, %v3063
        %v3065 = vlaneseq
        %v3066 = vshrl.u32 %v3065, 7
        %v3067 = vsub.s32 1, %v3066
        %v3068 = vrot.slane %v3059, %v3067
        %v3069 = vlaneseq
        %v3070 = vshrl.u32 %v3069, 7
        %v3071 = vsub.s32 2, %v3070
        %v3072 = vrot.slane %v3059, %v3071
        %v3073 = vlaneseq
        %v3074 = vshrl.u32 %v3073, 7
        %v3075 = vsub.s32 3, %v3074
        %v3076 = vrot.slane %v3059, %v3075
        %v3081 = vmul.f32 %v3052, %v3064
        %v3082 = vmul.f32 %v3050, %v3068
        %v3083 = vmul.f32 %v3048, %v3072
        %v3084 = vmul.f32 %v3054, %v3076
        %v3085 = vmul.f32 %v3053, %v3064
        %v3086 = vmul.f32 %v3051, %v3068
        %v3087 = vmul.f32 %v3049, %v3072
        %v3088 = vmul.f32 %v3055, %v3076
        %v3089 = vadd.f32 %v3024, %v3081
        %v3090 = vadd.f32 %v3025, %v3082
        %v3091 = vadd.f32 %v3026, %v3083
        %v3092 = vadd.f32 %v3027, %v3084
        %v3093 = vadd.f32 %v3028, %v3085
        %v3094 = vadd.f32 %v3029, %v3086
        %v3095 = vadd.f32 %v3030, %v3087
        %v3096 = vadd.f32 %v3031, %v3088
        %3097 = vrot.lane.b32.xlu0 %v1053, 55
        %v3098 = vpop.permute.xlu0 %3097
        %3099 = vrot.lane.b32.xlu0 %v1059, 55
        %v3100 = vpop.permute.xlu0 %3099
        %3101 = vrot.lane.b32.xlu0 %v1055, 55
        %v3102 = vpop.permute.xlu0 %3101
        %3103 = vrot.lane.b32.xlu0 %v1061, 55
        %v3104 = vpop.permute.xlu0 %3103
        %3105 = vrot.lane.b32.xlu0 %v1442, 55
        %v3106 = vpop.permute.xlu0 %3105
        %3107 = vrot.lane.b32.xlu0 %v1448, 55
        %v3108 = vpop.permute.xlu0 %3107
        %3109 = vrot.lane.b32.xlu0 %v1444, 55
        %v3110 = vpop.permute.xlu0 %3109
        %3111 = vrot.lane.b32.xlu0 %v1450, 55
        %v3112 = vpop.permute.xlu0 %3111
        %v3113 = vsel %vm1991, %v3106, %v3110
        %v3114 = vsel %vm1991, %v3108, %v3112
        %v3115 = vsel %vm1991, %v3102, %v3106
        %v3116 = vsel %vm1991, %v3104, %v3108
        %v3117 = vsel %vm1991, %v3098, %v3102
        %v3118 = vsel %vm1991, %v3100, %v3104
        %v3119 = vsel %vm1991, %v3110, %v3098
        %v3120 = vsel %vm1991, %v3112, %v3100
        %v3121 = vand.u32 %v1452, 67108864
        %vm3122 = vcmp.ne.s32.totalorder %v3121, 0
        %v3123 = vsel %vm3122, 1, 0
        %v3124 = vcvt.s32.f32 %v3123
        %v3126 = vlaneseq
        %v3127 = vshrl.u32 %v3126, 7
        %v3128 = vsub.s32 0, %v3127
        %v3129 = vrot.slane %v3124, %v3128
        %v3130 = vlaneseq
        %v3131 = vshrl.u32 %v3130, 7
        %v3132 = vsub.s32 1, %v3131
        %v3133 = vrot.slane %v3124, %v3132
        %v3134 = vlaneseq
        %v3135 = vshrl.u32 %v3134, 7
        %v3136 = vsub.s32 2, %v3135
        %v3137 = vrot.slane %v3124, %v3136
        %v3138 = vlaneseq
        %v3139 = vshrl.u32 %v3138, 7
        %v3140 = vsub.s32 3, %v3139
        %v3141 = vrot.slane %v3124, %v3140
        %v3146 = vmul.f32 %v3117, %v3129
        %v3147 = vmul.f32 %v3115, %v3133
        %v3148 = vmul.f32 %v3113, %v3137
        %v3149 = vmul.f32 %v3119, %v3141
        %v3150 = vmul.f32 %v3118, %v3129
        %v3151 = vmul.f32 %v3116, %v3133
        %v3152 = vmul.f32 %v3114, %v3137
        %v3153 = vmul.f32 %v3120, %v3141
        %v3154 = vadd.f32 %v3089, %v3146
        %v3155 = vadd.f32 %v3090, %v3147
        %v3156 = vadd.f32 %v3091, %v3148
        %v3157 = vadd.f32 %v3092, %v3149
        %v3158 = vadd.f32 %v3093, %v3150
        %v3159 = vadd.f32 %v3094, %v3151
        %v3160 = vadd.f32 %v3095, %v3152
        %v3161 = vadd.f32 %v3096, %v3153
        %v3162 = vadd.f32 %v3154, %v3155
        %v3163 = vadd.f32 %v3162, %v3156
        %v3164 = vadd.f32 %v3163, %v3157
        %3165 = vadd.xlane.f32.xlu0 %v3164
        %v3166 = vpop.xlane.xlu0 %3165
        %v3167 = vadd.f32 %v3158, %v3159
        %v3168 = vadd.f32 %v3167, %v3160
        %v3169 = vadd.f32 %v3168, %v3161
        %3170 = vadd.xlane.f32.xlu0 %v3169
        %v3171 = vpop.xlane.xlu0 %3170
        %v3172 = vmul.f32 %v3166, %v400
        %v3173 = vmul.f32 %v3171, %v400
        %v3174 = vmul.f32 %v3154, %v3154
        %v3175 = vmul.f32 %v3155, %v3155
        %v3176 = vmul.f32 %v3156, %v3156
        %v3177 = vmul.f32 %v3157, %v3157
        %v3178 = vmul.f32 %v3158, %v3158
        %v3179 = vmul.f32 %v3159, %v3159
        %v3180 = vmul.f32 %v3160, %v3160
        %v3181 = vmul.f32 %v3161, %v3161
        %v3182 = vadd.f32 %v3174, %v3175
        %v3183 = vadd.f32 %v3182, %v3176
        %v3184 = vadd.f32 %v3183, %v3177
        %3185 = vadd.xlane.f32.xlu0 %v3184
        %v3186 = vpop.xlane.xlu0 %3185
        %v3187 = vadd.f32 %v3178, %v3179
        %v3188 = vadd.f32 %v3187, %v3180
        %v3189 = vadd.f32 %v3188, %v3181
        %3190 = vadd.xlane.f32.xlu0 %v3189
        %v3191 = vpop.xlane.xlu0 %3190
        %v3192 = vmul.f32 %v3186, %v400
        %v3193 = vmul.f32 %v3191, %v400
        %v3194 = vmul.f32 %v3172, %v3172
        %v3195 = vmul.f32 %v3173, %v3173
        %v3196 = vsub.f32 %v3192, %v3194
        %v3197 = vsub.f32 %v3193, %v3195
        %v3198 = vmax.f32 %v3196, 0.0
        %v3199 = vmax.f32 %v3197, 0.0
        %v3200 = vsub.f32 %v3154, %v3172
        %v3201 = vsub.f32 %v3155, %v3172
        %v3202 = vsub.f32 %v3156, %v3172
        %v3203 = vsub.f32 %v3157, %v3172
        %v3204 = vsub.f32 %v3158, %v3173
        %v3205 = vsub.f32 %v3159, %v3173
        %v3206 = vsub.f32 %v3160, %v3173
        %v3207 = vsub.f32 %v3161, %v3173
        %v3208 = vadd.f32 %v3198, 1e-05
        %v3209 = vadd.f32 %v3199, 1e-05
        %v3210 = vrsqrt.pop %v3208
        %v3211 = vrsqrt.pop %v3209
        %v3212 = vmul.f32 %v3200, %v3210
        %v3213 = vmul.f32 %v3201, %v3210
        %v3214 = vmul.f32 %v3202, %v3210
        %v3215 = vmul.f32 %v3203, %v3210
        %v3216 = vmul.f32 %v3204, %v3211
        %v3217 = vmul.f32 %v3205, %v3211
        %v3218 = vmul.f32 %v3206, %v3211
        %v3219 = vmul.f32 %v3207, %v3211
        %v3220 = vmax.f32 %v3212, 0.0
        %v3221 = vmax.f32 %v3213, 0.0
        %v3222 = vmax.f32 %v3214, 0.0
        %v3223 = vmax.f32 %v3215, 0.0
        %v3224 = vmax.f32 %v3216, 0.0
        %v3225 = vmax.f32 %v3217, 0.0
        %v3226 = vmax.f32 %v3218, 0.0
        %v3227 = vmax.f32 %v3219, 0.0
        %v3228 = vld [vmem:[%s3] sm:$0xff]
        %v3230 = vsel %vm511, %v3228, 0
        %3232 = vmatprep.subr.mxu0 0.0
        %3233 = vmatpush1.msra.mxu0 0.0
        %3234 = vmatprep.subr.mxu0 0.0
        %3235 = vmatpush1.msra.mxu0 0.0
        %3236 = vmatprep.subr.mxu0 0.0
        %3237 = vmatpush1.msra.mxu0 0.0
        %3238 = vmatprep.subr.mxu0 0.0
        %3239 = vmatpush1.msra.mxu0 0.0
        %3240 = vmatprep.subr.mxu0 0.0
        %3241 = vmatpush1.msra.mxu0 0.0
        %3242 = vmatprep.subr.mxu0 0.0
        %3243 = vmatpush1.msra.mxu0 0.0
        %3244 = vmatprep.subr.mxu0 0.0
        %3245 = vmatpush1.msra.mxu0 0.0
        %3246 = vmatprep.subr.mxu0 0.0
        %3247 = vmatpush1.msra.mxu0 0.0
        %3248 = vmatprep.subr.mxu0 0.0
        %3249 = vmatpush1.msra.mxu0 0.0
        %3250 = vmatprep.subr.mxu0 0.0
        %3251 = vmatpush1.msra.mxu0 0.0
        %3252 = vmatprep.subr.mxu0 0.0
        %3253 = vmatpush1.msra.mxu0 0.0
        %3254 = vmatprep.subr.mxu0 0.0
        %3255 = vmatpush1.msra.mxu0 0.0
        %3256 = vmatprep.subr.mxu0 0.0
        %3257 = vmatpush1.msra.mxu0 0.0
        %3258 = vmatprep.subr.mxu0 0.0
        %3259 = vmatpush1.msra.mxu0 0.0
        %3260 = vmatprep.subr.mxu0 %v3225
        %3261 = vmatpush1.msra.mxu0 %v3224
        %3262 = vmatprep.subr.mxu0 %v3221
        %3263 = vmatpush1.msra.mxu0 %v3220
        %3264 = vmatprep.subr.mxu0 0.0
        %3265 = vmatpush2.msra.mxu0 0.0
        %3266 = vmatprep.subr.mxu0 0.0
        %3267 = vmatpush2.msra.mxu0 0.0
        %3268 = vmatprep.subr.mxu0 0.0
        %3269 = vmatpush2.msra.mxu0 0.0
        %3270 = vmatprep.subr.mxu0 0.0
        %3271 = vmatpush2.msra.mxu0 0.0
        %3272 = vmatprep.subr.mxu0 0.0
        %3273 = vmatpush2.msra.mxu0 0.0
        %3274 = vmatprep.subr.mxu0 0.0
        %3275 = vmatpush2.msra.mxu0 0.0
        %3276 = vmatprep.subr.mxu0 0.0
        %3277 = vmatpush2.msra.mxu0 0.0
        %3278 = vmatprep.subr.mxu0 0.0
        %3279 = vmatpush2.msra.mxu0 0.0
        %3280 = vmatprep.subr.mxu0 0.0
        %3281 = vmatpush2.msra.mxu0 0.0
        %3282 = vmatprep.subr.mxu0 0.0
        %3283 = vmatpush2.msra.mxu0 0.0
        %3284 = vmatprep.subr.mxu0 0.0
        %3285 = vmatpush2.msra.mxu0 0.0
        %3286 = vmatprep.subr.mxu0 0.0
        %3287 = vmatpush2.msra.mxu0 0.0
        %3288 = vmatprep.subr.mxu0 0.0
        %3289 = vmatpush2.msra.mxu0 0.0
        %3290 = vmatprep.subr.mxu0 0.0
        %3291 = vmatpush2.msra.mxu0 0.0
        %3292 = vmatprep.subr.mxu0 0.0
        %3293 = vmatpush2.msra.mxu0 0.0
        %3294 = vmatprep.subr.mxu0 0.0
        %3295 = vmatpush2.msra.mxu0 0.0
        %3296 = vmatprep.mubr.f32.mxu0 0.0
        %3297 = vmatmul.mubr.f32.gmra.mxu0 %v3230
        %v3298 = vpop.f32.mrf.mxu0
        %v3299 = vadd.f32 0.0, %v3298
        %v3300 = vpop.f32.mrf.mxu0
        %v3301 = vadd.f32 0.0, %v3300
        %3302 = vdwg.mxu0
        %3303 = vmatprep.subr.mxu0 0.0
        %3304 = vmatpush1.msra.mxu0 0.0
        %3305 = vmatprep.subr.mxu0 0.0
        %3306 = vmatpush1.msra.mxu0 0.0
        %3307 = vmatprep.subr.mxu0 0.0
        %3308 = vmatpush1.msra.mxu0 0.0
        %3309 = vmatprep.subr.mxu0 0.0
        %3310 = vmatpush1.msra.mxu0 0.0
        %3311 = vmatprep.subr.mxu0 0.0
        %3312 = vmatpush1.msra.mxu0 0.0
        %3313 = vmatprep.subr.mxu0 0.0
        %3314 = vmatpush1.msra.mxu0 0.0
        %3315 = vmatprep.subr.mxu0 0.0
        %3316 = vmatpush1.msra.mxu0 0.0
        %3317 = vmatprep.subr.mxu0 0.0
        %3318 = vmatpush1.msra.mxu0 0.0
        %3319 = vmatprep.subr.mxu0 0.0
        %3320 = vmatpush1.msra.mxu0 0.0
        %3321 = vmatprep.subr.mxu0 0.0
        %3322 = vmatpush1.msra.mxu0 0.0
        %3323 = vmatprep.subr.mxu0 0.0
        %3324 = vmatpush1.msra.mxu0 0.0
        %3325 = vmatprep.subr.mxu0 0.0
        %3326 = vmatpush1.msra.mxu0 0.0
        %3327 = vmatprep.subr.mxu0 0.0
        %3328 = vmatpush1.msra.mxu0 0.0
        %3329 = vmatprep.subr.mxu0 0.0
        %3330 = vmatpush1.msra.mxu0 0.0
        %3331 = vmatprep.subr.mxu0 %v3227
        %3332 = vmatpush1.msra.mxu0 %v3226
        %3333 = vmatprep.subr.mxu0 %v3223
        %3334 = vmatpush1.msra.mxu0 %v3222
        %3335 = vmatprep.subr.mxu0 0.0
        %3336 = vmatpush2.msra.mxu0 0.0
        %3337 = vmatprep.subr.mxu0 0.0
        %3338 = vmatpush2.msra.mxu0 0.0
        %3339 = vmatprep.subr.mxu0 0.0
        %3340 = vmatpush2.msra.mxu0 0.0
        %3341 = vmatprep.subr.mxu0 0.0
        %3342 = vmatpush2.msra.mxu0 0.0
        %3343 = vmatprep.subr.mxu0 0.0
        %3344 = vmatpush2.msra.mxu0 0.0
        %3345 = vmatprep.subr.mxu0 0.0
        %3346 = vmatpush2.msra.mxu0 0.0
        %3347 = vmatprep.subr.mxu0 0.0
        %3348 = vmatpush2.msra.mxu0 0.0
        %3349 = vmatprep.subr.mxu0 0.0
        %3350 = vmatpush2.msra.mxu0 0.0
        %3351 = vmatprep.subr.mxu0 0.0
        %3352 = vmatpush2.msra.mxu0 0.0
        %3353 = vmatprep.subr.mxu0 0.0
        %3354 = vmatpush2.msra.mxu0 0.0
        %3355 = vmatprep.subr.mxu0 0.0
        %3356 = vmatpush2.msra.mxu0 0.0
        %3357 = vmatprep.subr.mxu0 0.0
        %3358 = vmatpush2.msra.mxu0 0.0
        %3359 = vmatprep.subr.mxu0 0.0
        %3360 = vmatpush2.msra.mxu0 0.0
        %3361 = vmatprep.subr.mxu0 0.0
        %3362 = vmatpush2.msra.mxu0 0.0
        %3363 = vmatprep.subr.mxu0 0.0
        %3364 = vmatpush2.msra.mxu0 0.0
        %3365 = vmatprep.subr.mxu0 0.0
        %3366 = vmatpush2.msra.mxu0 0.0
        %3367 = vmatprep.mubr.f32.mxu0 0.0
        %3368 = vmatmul.mubr.f32.gmra.mxu0 %v3230
        %v3369 = vpop.f32.mrf.mxu0
        %v3370 = vadd.f32 0.0, %v3369
        %v3371 = vpop.f32.mrf.mxu0
        %v3372 = vadd.f32 0.0, %v3371
        %3373 = vdwg.mxu0
        %v3374 = vadd.f32 %v3299, %v3301
        %v3375 = vadd.f32 %v3374, %v3370
        %v3376 = vadd.f32 %v3375, %v3372
        %3377 = vadd.xlane.f32.xlu0 %v3376
        %v3378 = vpop.xlane.xlu0 %3377
        %v3379 = vmul.f32 %v3378, %v400
        %v3380 = vmul.f32 %v3299, %v3299
        %v3381 = vmul.f32 %v3301, %v3301
        %v3382 = vmul.f32 %v3370, %v3370
        %v3383 = vmul.f32 %v3372, %v3372
        %v3384 = vadd.f32 %v3380, %v3381
        %v3385 = vadd.f32 %v3384, %v3382
        %v3386 = vadd.f32 %v3385, %v3383
        %3387 = vadd.xlane.f32.xlu0 %v3386
        %v3388 = vpop.xlane.xlu0 %3387
        %v3389 = vmul.f32 %v3388, %v400
        %v3390 = vmul.f32 %v3379, %v3379
        %v3391 = vsub.f32 %v3389, %v3390
        %v3392 = vmax.f32 %v3391, 0.0
        %v3393 = vsub.f32 %v3299, %v3379
        %v3394 = vsub.f32 %v3301, %v3379
        %v3395 = vsub.f32 %v3370, %v3379
        %v3396 = vsub.f32 %v3372, %v3379
        %v3397 = vadd.f32 %v3392, 1e-05
        %v3398 = vrsqrt.pop %v3397
        %v3399 = vmul.f32 %v3393, %v3398
        %v3400 = vmul.f32 %v3394, %v3398
        %v3401 = vmul.f32 %v3395, %v3398
        %v3402 = vmul.f32 %v3396, %v3398
        %v3403 = vadd.f32 %v3399, %v223
        %v3404 = vadd.f32 %v3400, %v224
        %v3405 = vadd.f32 %v3401, %v225
        %v3406 = vadd.f32 %v3402, %v226
        %v3407 = vmax.f32 %v3403, 0.0
        %v3408 = vmax.f32 %v3404, 0.0
        %v3409 = vmax.f32 %v3405, 0.0
        %v3410 = vmax.f32 %v3406, 0.0
        %3411 = vst [vmem:[%s217] sm:$0xff] %v3407
        %3412 = vst [vmem:[%s217 + $0x8] sm:$0xff] %v3408
        %3413 = vst [vmem:[%s217 + $0x10] sm:$0xff] %v3409
        %3414 = vst [vmem:[%s217 + $0x18] sm:$0xff] %v3410
        %s3415 = sand.u32 %s137, 1
        %s3416 = scalar_lea.sflag [#allocation3], %s3415
        %s3417 = sand.u32 %s137, 1
        %s3418 = smul.addr %s3417, 32
        %s3419 = scalar_lea.vmem [#allocation2], %s3418
        // Predicated region
        $region41: #{tpu_custom_call.1} parent=39 // pred_check
          %p3420 = pneg %p147
        $region42: #{tpu_custom_call.1} parent=39 // pred_check_branch
          %3422 = sbr.rel (%p3420) target = $region44
        $region43: #{tpu_custom_call.1} parent=39 // pred_region
          %s3424 = ssub.s32 512, 512
          %3425 = vsyncadd %s3416, %s3424
          %s3426 = smul.addr %s19, 4
          %s3427 = smul.addr %s3426, 128
          %s3428 = scalar_lea.hbm %s5, %s3427
          %s3430 = sshll.u32 %s3419, 4
          %s3431 = int_to_ptr.vmem [resolvable:$true] %s3430
          %3433 = dma.vmem_to_hbm [thread:$0]  %s3431, 512, %s3428, %s3416
        $region44: #{tpu_custom_call.1} parent=39 // pred_fallthru
          _
      $region40: #{tpu_custom_call.1} parent=5 // pred_fallthru
        _
      %p3434 = scmp.le.s32.totalorder 2, %s14
      // Predicated region
      $region45: #{tpu_custom_call.1} parent=5 // pred_check
        %p3435 = pneg %p3434
      $region46: #{tpu_custom_call.1} parent=5 // pred_check_branch
        %3437 = sbr.rel (%p3435) target = $region48
      $region47: #{tpu_custom_call.1} parent=5 // pred_region
        %s3438 = ssub.s32 %s14, 2
        // Predicated region
        $region49: #{tpu_custom_call.1} parent=47 // pred_check
          %p3439 = pneg %p153
        $region50: #{tpu_custom_call.1} parent=47 // pred_check_branch
          %3441 = sbr.rel (%p3439) target = $region52
        $region51: #{tpu_custom_call.1} parent=47 // pred_region
          %s3442 = sand.u32 %s138, 1
          %s3443 = scalar_lea.sflag [#allocation3], %s3442
          %s3444 = sand.u32 %s138, 1
          %s3445 = smul.addr %s3444, 32
          %s3446 = scalar_lea.vmem [#allocation2], %s3445
          %3447 = dma.done %s3443, 512
        $region52: #{tpu_custom_call.1} parent=47 // pred_fallthru
          _
      $region48: #{tpu_custom_call.1} parent=5 // pred_fallthru
        _
    $region6: #{tpu_custom_call.1} parent=1 // loop_footer
      %s18 = sadd.s32 1, %s14
    $region7: #{tpu_custom_call.1} parent=1 // loop_footer_branch
      %13 = sbr.rel target = $region3
    $region8: #{tpu_custom_call.1} parent=1 // loop_exit
      _
    %3448 = vsyncpa [#allocation3], 1
    %s3449 = scalar_lea.sflag [#allocation3], 1
    %3450 = vsyncpa %s3449, 1

</llo_original>
